<compile_context>
chip_gen: v5e
topology: v5e:2x2
jax: 0.10.0
libtpu: 0.0.40
codegen_flags: <defaults>
</compile_context>

<pallas_src>
import functools

import jax
import jax.numpy as jnp
from jax import lax
from jax.experimental import pallas as pl
from jax.experimental.pallas import tpu as pltpu

# Globals referenced by the original PyTorch module.
SOS = 1
MAX_LENGTH = 8


def formula_decoder_kernel(z_ref, w_ref, words_ref, *,
                           n_hiddens, n_characters, n_latents,
                           max_length, sos, offs):
    H, C, L = n_hiddens, n_characters, n_latents
    H2, H3, H5, H6 = 2 * H, 3 * H, 5 * H, 6 * H
    o_s0, o_s1, o_wih0z, o_bias, o_wz2h, o_wh2oh, o_wh2oz = offs

    # --- one-time weight loads: static, sublane-aligned slices of ONE slab.
    slab0 = w_ref[o_s0:o_s0 + C + H, 0:H6]      # blkdiag[swish(embed)@Wih0e | Whh0^T]
    slab1 = w_ref[o_s1:o_s1 + 2 * H, 0:H6]      # blkdiag[Wih1^T | Whh1^T]
    wih0z = w_ref[o_wih0z:o_wih0z + L, 0:H3]    # (L, 3H): z part of layer-0 gates
    b0    = w_ref[o_bias + 0:o_bias + 1, 0:H3]  # bih0 + [bhh0_r, bhh0_u, 0]
    b1    = w_ref[o_bias + 1:o_bias + 2, 0:H3]  # bih1 + [bhh1_r, bhh1_u, 0]
    bhh0n = w_ref[o_bias + 2:o_bias + 3, 0:H]   # bhh0 n-slice
    bhh1n = w_ref[o_bias + 3:o_bias + 4, 0:H]   # bhh1 n-slice
    bz2h  = w_ref[o_bias + 4:o_bias + 5, 0:H]
    bh2o  = w_ref[o_bias + 5:o_bias + 6, 0:C]
    wz2h  = w_ref[o_wz2h:o_wz2h + L, 0:H]       # (L, H)
    wh2oh = w_ref[o_wh2oh:o_wh2oh + H, 0:C]     # (H, C)
    wh2oz = w_ref[o_wh2oz:o_wh2oz + L, 0:C]     # (L, C)

    z = z_ref[...]                              # (B, L) f32
    B = z.shape[0]

    # --- loop-invariant precompute (hoisted out of the unrolled decode loop)
    # h = z2h(z), replicated for both GRU layers (torch: .repeat(2, 1, 1)).
    h_init = jnp.dot(z, wz2h, preferred_element_type=jnp.float32) + bz2h
    h0 = h_init
    h1 = h_init
    zg0 = jnp.dot(z, wih0z, preferred_element_type=jnp.float32) + b0    # (B, 3H)
    zlo = jnp.dot(z, wh2oz, preferred_element_type=jnp.float32) + bh2o  # (B, C)
    b1_b = jnp.broadcast_to(b1, (B, H3))
    bhh0n_b = jnp.broadcast_to(bhh0n, (B, H))
    bhh1n_b = jnp.broadcast_to(bhh1n, (B, H))

    # Initial token = SOS as a one-hot row (MXU-friendly gather for tiny vocab).
    col_c = lax.broadcasted_iota(jnp.int32, (B, C), 1)
    onehot = (col_c == sos).astype(jnp.float32)

    def fused_cell(x, h, slab, gib, bhhn_b):
        # ONE block-diagonal matmul yields both gate pre-activations:
        #   f[:, 0:3H] = input-gate term, f[:, 3H:6H] = hidden-gate term.
        f = jnp.dot(x, slab, preferred_element_type=jnp.float32)
        # r and u with a single sigmoid; their b_hh slices are folded in `gib`.
        ru = jax.nn.sigmoid(f[:, 0:H2] + f[:, H3:H5] + gib[:, 0:H2])
        r = ru[:, 0:H]
        u = ru[:, H:H2]
        n = jnp.tanh(f[:, H2:H3] + gib[:, H2:H3] + r * (f[:, H5:H6] + bhhn_b))
        return (1.0 - u) * n + u * h

    # MAX_LENGTH is small -> fully unrolled static loop.
    for t in range(max_length):
        # embed + swish + input-gate matmul folded into the slab0 lookup rows.
        x0 = jnp.concatenate([onehot, h0], axis=1)         # (B, C+H)
        h0 = fused_cell(x0, h0, slab0, zg0, bhh0n_b)

        # GRU layer 1 (input = layer-0 output).
        # TODO(synk): nn.GRU inter-layer dropout(0.1) is training-only; this
        # implements inference (eval) semantics.
        x1 = jnp.concatenate([h0, h1], axis=1)             # (B, 2H)
        h1 = fused_cell(x1, h1, slab1, b1_b, bhh1n_b)

        # h2o(cat([h1, z])) as split matmul (z part hoisted into zlo).
        logits = jnp.dot(h1, wh2oh, preferred_element_type=jnp.float32) + zlo

        # Greedy feedback straight from logits (argmax invariant under the
        # monotone log-softmax shift).  row_max is reused by log_softmax, so
        # only the min-of-where reduce is extra on the serial chain; ties
        # break to the lowest index.
        row_max = jnp.max(logits, axis=1, keepdims=True)
        idx = jnp.min(jnp.where(logits >= row_max, col_c, C),
                      axis=1, keepdims=True)
        onehot = (col_c == idx).astype(jnp.float32)

        # log_softmax only feeds the output store.
        logp = logits - row_max - jnp.log(
            jnp.sum(jnp.exp(logits - row_max), axis=1, keepdims=True))
        # Per-step static-slice store into the output block (off the critical
        # path); HBM writeback of the full (bt, ML*C) block stays lane-dense.
        words_ref[:, t * C:(t + 1) * C] = logp


def _build_slab(blocks, width):
    """Pack 2-D blocks row-wise: pad cols to `width`, rows to multiples of 8."""
    offs, parts, off = [], [], 0
    for blk in blocks:
        blk = jnp.pad(blk, ((0, (-blk.shape[0]) % 8),
                            (0, width - blk.shape[1])))
        offs.append(off)
        parts.append(blk)
        off += blk.shape[0]
    return jnp.concatenate(parts, axis=0), tuple(offs)


def formula_decoder(z, p, *, n_hiddens, n_characters,
                    max_length=MAX_LENGTH, sos=SOS, batch_tile=None):
    """FormulaDecoder.forward(z) -> (B, MAX_LENGTH, n_characters) log-probs.

    batch_tile: None -> single program (best on single-TC v5e/v6e).  On v7x
      pass batch_tile = round_up(B // 2, 8) so grid=(2,) gives exactly one
      parallel program per TensorCore; finer splits only add sequential grid
      overhead (~0.35 us/step) on this latency-bound kernel.
    """
    B, L = z.shape
    H, C = n_hiddens, n_characters
    H2, H3, H6 = 2 * H, 3 * H, 6 * H
    f32 = jnp.float32
    z = z.astype(f32)

    # ---- weight prep: transpose / split / fold so each GRU layer is a single
    # block-diagonal matmul per step and the kernel never concats weights.
    embed = p["embed"].astype(f32)                 # (C, H)
    wih0_t = p["gru_wih0"].T.astype(f32)           # (H+L, 3H)
    wih0e, wih0z = wih0_t[:H], wih0_t[H:]          # (H,3H), (L,3H)
    # swish(embed) @ Wih0e : exact fold because the kernel input is one-hot.
    # NOTE: default TPU matmul precision (bf16 passes) is used here and in the
    # kernel; pass precision=HIGHEST on the dots if fp32 token parity is needed.
    embed_gates = (embed * jax.nn.sigmoid(embed)) @ wih0e   # (C, 3H)
    whh0_t = p["gru_whh0"].T.astype(f32)           # (H, 3H)
    wih1_t = p["gru_wih1"].T.astype(f32)           # (H, 3H)
    whh1_t = p["gru_whh1"].T.astype(f32)           # (H, 3H)

    zc = jnp.zeros((C, H3), f32)
    zh = jnp.zeros((H, H3), f32)
    slab0 = jnp.concatenate(                        # (C+H, 6H) block-diagonal
        [jnp.concatenate([embed_gates, zc], axis=1),
         jnp.concatenate([zh, whh0_t], axis=1)], axis=0)
    slab1 = jnp.concatenate(                        # (2H, 6H) block-diagonal
        [jnp.concatenate([wih1_t, zh], axis=1),
         jnp.concatenate([zh, whh1_t], axis=1)], axis=0)

    bih0 = p["gru_bih0"].astype(f32)
    bhh0 = p["gru_bhh0"].astype(f32)
    bih1 = p["gru_bih1"].astype(f32)
    bhh1 = p["gru_bhh1"].astype(f32)
    zero_h = jnp.zeros((H,), f32)
    b0_fold = bih0 + jnp.concatenate([bhh0[:H2], zero_h])   # r/u bhh folded in
    b1_fold = bih1 + jnp.concatenate([bhh1[:H2], zero_h])

    wz2h_t = p["z2h_w"].T.astype(f32)              # (L, H)
    wh2o_t = p["h2o_w"].T.astype(f32)              # (H+L, C)
    wh2oh, wh2oz = wh2o_t[:H], wh2o_t[H:]          # (H,C), (L,C)

    # Single lane-padded weight slab -> one prologue DMA per program.
    width = -(-max(H6, H3, H, C) // 128) * 128

    def row(v):
        v = jnp.asarray(v, f32).reshape(1, -1)
        return jnp.pad(v, ((0, 0), (0, width - v.shape[1])))

    bias_block = jnp.concatenate(                   # (6, width)
        [row(b0_fold), row(b1_fold), row(bhh0[H2:]), row(bhh1[H2:]),
         row(p["z2h_b"]), row(p["h2o_b"])], axis=0)

    slab, offs = _build_slab(
        [slab0, slab1, wih0z, bias_block, wz2h_t, wh2oh, wh2oz], width)
    slab = slab.astype(f32)

    # Optional batch tiling (parallel grid axis; use exactly 2 tiles on v7x).
    bt = B if batch_tile is None else batch_tile
    if B % bt != 0 or (bt != B and bt % 8 != 0):
        raise ValueError("batch_tile must divide batch and be a multiple of 8")
    grid = (B // bt,)

    kernel = functools.partial(
        formula_decoder_kernel, n_hiddens=H, n_characters=C, n_latents=L,
        max_length=max_length, sos=sos, offs=offs)

    words_flat = pl.pallas_call(
        kernel,
        out_shape=jax.ShapeDtypeStruct((B, max_length * C), jnp.float32),
        grid=grid,
        in_specs=[
            pl.BlockSpec((bt, L), lambda b: (b, 0)),        # z batch tile
            pl.BlockSpec(slab.shape, lambda b: (0, 0)),     # merged weight slab
        ],
        out_specs=pl.BlockSpec((bt, max_length * C), lambda b: (b, 0)),
        compiler_params=pltpu.CompilerParams(
            dimension_semantics=("parallel",)),
    )(z, slab)

    # (B, MAX_LENGTH*C) -> (B, MAX_LENGTH, C), matching the PyTorch `words`.
    return words_flat.reshape(B, max_length, C)


def _ref_first_step(z, p):
    """Pure-JAX reference for decode step 0 (no feedback path -> exact check)."""
    H = p["z2h_b"].shape[0]
    C = p["h2o_b"].shape[0]
    B = z.shape[0]
    h = z @ p["z2h_w"].T + p["z2h_b"]
    h0 = h1 = h
    onehot = jax.nn.one_hot(jnp.full((B,), SOS), C, dtype=jnp.float32)
    emb = onehot @ p["embed"]
    emb = emb * jax.nn.sigmoid(emb)
    x = jnp.concatenate([emb, z], axis=1)

    def cell(x, h, wih, whh, bih, bhh):
        gi = x @ wih.T + bih
        gh = h @ whh.T + bhh
        r = jax.nn.sigmoid(gi[:, :H] + gh[:, :H])
        u = jax.nn.sigmoid(gi[:, H:2 * H] + gh[:, H:2 * H])
        n = jnp.tanh(gi[:, 2 * H:] + r * gh[:, 2 * H:])
        return (1.0 - u) * n + u * h

    h0 = cell(x, h0, p["gru_wih0"], p["gru_whh0"], p["gru_bih0"], p["gru_bhh0"])
    h1 = cell(h0, h1, p["gru_wih1"], p["gru_whh1"], p["gru_bih1"], p["gru_bhh1"])
    logits = jnp.concatenate([h1, z], axis=1) @ p["h2o_w"].T + p["h2o_b"]
    return jax.nn.log_softmax(logits, axis=-1)


if __name__ == "__main__":
    B = 2            # batch
    L = 8            # n_latents
    C = 16           # n_characters
    H = 32           # n_hiddens

    key = jax.random.PRNGKey(0)
    ks = jax.random.split(key, 16)

    def nrm(k, shape, scale=0.1):
        return scale * jax.random.normal(k, shape, dtype=jnp.float32)

    params = {
        "embed":    nrm(ks[0], (C, H)),
        "z2h_w":    nrm(ks[1], (H, L)),
        "z2h_b":    nrm(ks[2], (H,)),
        "gru_wih0": nrm(ks[3], (3 * H, H + L)),
        "gru_whh0": nrm(ks[4], (3 * H, H)),
        "gru_bih0": nrm(ks[5], (3 * H,)),
        "gru_bhh0": nrm(ks[6], (3 * H,)),
        "gru_wih1": nrm(ks[7], (3 * H, H)),
        "gru_whh1": nrm(ks[8], (3 * H, H)),
        "gru_bih1": nrm(ks[9], (3 * H,)),
        "gru_bhh1": nrm(ks[10], (3 * H,)),
        "h2o_w":    nrm(ks[11], (C, H + L)),
        "h2o_b":    nrm(ks[12], (C,)),
    }
    z = nrm(ks[13], (B, L), scale=1.0)

    words = formula_decoder(z, params, n_hiddens=H, n_characters=C)
    words = jax.block_until_ready(words)

    # Sanity checks: shape, finiteness, log-softmax normalization, and a match
    # of the first decode step vs a pure-JAX reference (no feedback -> exact).
    assert words.shape == (B, MAX_LENGTH, C), words.shape
    assert bool(jnp.all(jnp.isfinite(words)))
    row_sums = jnp.sum(jnp.exp(words), axis=-1)
    assert bool(jnp.allclose(row_sums, 1.0, atol=1e-4)), row_sums
    ref0 = _ref_first_step(z, params)
    assert bool(jnp.allclose(words[:, 0, :], ref0, atol=2e-2)), (
        jnp.max(jnp.abs(words[:, 0, :] - ref0)))

    # Larger batch + batch-parallel grid path (v7x: one program per TC) should
    # match the single-program path.
    zb = nrm(ks[14], (16, L), scale=1.0)
    w_single = formula_decoder(zb, params, n_hiddens=H, n_characters=C)
    w_tiled = formula_decoder(zb, params, n_hiddens=H, n_characters=C,
                              batch_tile=8)
    w_tiled = jax.block_until_ready(w_tiled)
    assert w_tiled.shape == (16, MAX_LENGTH, C)
    assert bool(jnp.all(jnp.isfinite(w_tiled)))
    assert bool(jnp.allclose(
        jnp.sum(jnp.exp(w_tiled), axis=-1), 1.0, atol=1e-4))
    assert bool(jnp.allclose(w_single, w_tiled, atol=1e-4)), (
        jnp.max(jnp.abs(w_single - w_tiled)))

    print("KERNEL_OK")
</pallas_src>

<mosaic_0001>
module attributes {stable_mosaic.version = 11 : i64} {
  func.func @formula_decoder_kernel(%arg0: i32, %arg1: memref<2x8xf32, #tpu.memory_space<vmem>>, %arg2: memref<176x256xf32, #tpu.memory_space<vmem>>, %arg3: memref<2x128xf32, #tpu.memory_space<vmem>>) attributes {dimension_semantics = [#tpu.dimension_semantics<parallel>], iteration_bounds = array<i64: 1>, scalar_prefetch = 0 : i64, scratch_operands = 0 : i64, tpu.core_type = #tpu.core_type<tc>, window_params = [{transform_indices = @transform_0, window_bounds = array<i64: 2, 8>}, {pipeline_mode = #tpu.pipeline_mode<synchronous>, transform_indices = @transform_1, window_bounds = array<i64: 176, 256>}, {transform_indices = @transform_2, window_bounds = array<i64: 2, 128>}]} {
    %c0 = arith.constant 0 : index
    %c0_0 = arith.constant 0 : index
    %0 = vector.load %arg2[%c0, %c0_0] : memref<176x256xf32, #tpu.memory_space<vmem>>, vector<48x192xf32>
    %c48 = arith.constant 48 : index
    %c0_1 = arith.constant 0 : index
    %1 = vector.load %arg2[%c48, %c0_1] : memref<176x256xf32, #tpu.memory_space<vmem>>, vector<64x192xf32>
    %c112 = arith.constant 112 : index
    %c0_2 = arith.constant 0 : index
    %2 = vector.load %arg2[%c112, %c0_2] : memref<176x256xf32, #tpu.memory_space<vmem>>, vector<8x96xf32>
    %c120 = arith.constant 120 : index
    %c0_3 = arith.constant 0 : index
    %3 = vector.load %arg2[%c120, %c0_3] : memref<176x256xf32, #tpu.memory_space<vmem>>, vector<1x96xf32>
    %c121 = arith.constant 121 : index
    %c0_4 = arith.constant 0 : index
    %4 = vector.load %arg2[%c121, %c0_4] : memref<176x256xf32, #tpu.memory_space<vmem>>, vector<1x96xf32>
    %c122 = arith.constant 122 : index
    %c0_5 = arith.constant 0 : index
    %5 = vector.load %arg2[%c122, %c0_5] : memref<176x256xf32, #tpu.memory_space<vmem>>, vector<1x32xf32>
    %c123 = arith.constant 123 : index
    %c0_6 = arith.constant 0 : index
    %6 = vector.load %arg2[%c123, %c0_6] : memref<176x256xf32, #tpu.memory_space<vmem>>, vector<1x32xf32>
    %c124 = arith.constant 124 : index
    %c0_7 = arith.constant 0 : index
    %7 = vector.load %arg2[%c124, %c0_7] : memref<176x256xf32, #tpu.memory_space<vmem>>, vector<1x32xf32>
    %c125 = arith.constant 125 : index
    %c0_8 = arith.constant 0 : index
    %8 = vector.load %arg2[%c125, %c0_8] : memref<176x256xf32, #tpu.memory_space<vmem>>, vector<1x16xf32>
    %c128 = arith.constant 128 : index
    %c0_9 = arith.constant 0 : index
    %9 = vector.load %arg2[%c128, %c0_9] : memref<176x256xf32, #tpu.memory_space<vmem>>, vector<8x32xf32>
    %c136 = arith.constant 136 : index
    %c0_10 = arith.constant 0 : index
    %10 = vector.load %arg2[%c136, %c0_10] : memref<176x256xf32, #tpu.memory_space<vmem>>, vector<32x16xf32>
    %c168 = arith.constant 168 : index
    %c0_11 = arith.constant 0 : index
    %11 = vector.load %arg2[%c168, %c0_11] : memref<176x256xf32, #tpu.memory_space<vmem>>, vector<8x16xf32>
    %c0_12 = arith.constant 0 : index
    %c0_13 = arith.constant 0 : index
    %12 = vector.load %arg1[%c0_12, %c0_13] : memref<2x8xf32, #tpu.memory_space<vmem>>, vector<2x8xf32>
    %cst = arith.constant dense<0.000000e+00> : vector<2x32xf32>
    %13 = tpu.matmul %12, %9, %cst {dimension_numbers = #tpu.dot_dimension_numbers<[1], [0], [0], [1], [0, 0, 1, 1], [], []>} : vector<2x8xf32>, vector<8x32xf32>, vector<2x32xf32> -> vector<2x32xf32>
    %14 = vector.broadcast %7 : vector<1x32xf32> to vector<2x32xf32>
    %15 = arith.addf %13, %14 : vector<2x32xf32>
    %cst_14 = arith.constant dense<0.000000e+00> : vector<2x96xf32>
    %16 = tpu.matmul %12, %2, %cst_14 {dimension_numbers = #tpu.dot_dimension_numbers<[1], [0], [0], [1], [0, 0, 1, 1], [], []>} : vector<2x8xf32>, vector<8x96xf32>, vector<2x96xf32> -> vector<2x96xf32>
    %17 = vector.broadcast %3 : vector<1x96xf32> to vector<2x96xf32>
    %18 = arith.addf %16, %17 : vector<2x96xf32>
    %cst_15 = arith.constant dense<0.000000e+00> : vector<2x16xf32>
    %19 = tpu.matmul %12, %11, %cst_15 {dimension_numbers = #tpu.dot_dimension_numbers<[1], [0], [0], [1], [0, 0, 1, 1], [], []>} : vector<2x8xf32>, vector<8x16xf32>, vector<2x16xf32> -> vector<2x16xf32>
    %20 = vector.broadcast %8 : vector<1x16xf32> to vector<2x16xf32>
    %21 = arith.addf %19, %20 : vector<2x16xf32>
    %22 = vector.shape_cast %4 : vector<1x96xf32> to vector<1x96xf32>
    %23 = vector.broadcast %22 : vector<1x96xf32> to vector<2x96xf32>
    %24 = vector.shape_cast %5 : vector<1x32xf32> to vector<1x32xf32>
    %25 = vector.broadcast %24 : vector<1x32xf32> to vector<2x32xf32>
    %26 = vector.shape_cast %6 : vector<1x32xf32> to vector<1x32xf32>
    %27 = vector.broadcast %26 : vector<1x32xf32> to vector<2x32xf32>
    %28 = tpu.iota {dimensions = array<i32: 1>} : vector<2x16xi32>
    %c1_i32 = arith.constant 1 : i32
    %29 = vector.broadcast %c1_i32 : i32 to vector<2x16xi32>
    %30 = arith.cmpi eq, %28, %29 : vector<2x16xi32>
    %31 = arith.extui %30 : vector<2x16xi1> to vector<2x16xi32>
    %32 = arith.sitofp %31 : vector<2x16xi32> to vector<2x16xf32>
    %33 = tpu.concatenate %32, %15 in 1 : vector<2x16xf32>, vector<2x32xf32> -> vector<2x48xf32>
    %cst_16 = arith.constant dense<0.000000e+00> : vector<2x192xf32>
    %34 = tpu.matmul %33, %0, %cst_16 {dimension_numbers = #tpu.dot_dimension_numbers<[1], [0], [0], [1], [0, 0, 1, 1], [], []>} : vector<2x48xf32>, vector<48x192xf32>, vector<2x192xf32> -> vector<2x192xf32>
    %35 = vector.extract_strided_slice %34 {offsets = [0, 0], sizes = [2, 64], strides = [1, 1]} : vector<2x192xf32> to vector<2x64xf32>
    %36 = vector.extract_strided_slice %34 {offsets = [0, 96], sizes = [2, 64], strides = [1, 1]} : vector<2x192xf32> to vector<2x64xf32>
    %37 = arith.addf %35, %36 : vector<2x64xf32>
    %38 = vector.extract_strided_slice %18 {offsets = [0, 0], sizes = [2, 64], strides = [1, 1]} : vector<2x96xf32> to vector<2x64xf32>
    %39 = arith.addf %37, %38 : vector<2x64xf32>
    %40 = arith.negf %39 : vector<2x64xf32>
    %41 = math.exp %40 : vector<2x64xf32>
    %cst_17 = arith.constant 1.000000e+00 : f32
    %42 = vector.broadcast %cst_17 : f32 to vector<2x64xf32>
    %43 = arith.addf %42, %41 : vector<2x64xf32>
    %44 = arith.divf %42, %43 : vector<2x64xf32>
    %45 = vector.extract_strided_slice %44 {offsets = [0, 0], sizes = [2, 32], strides = [1, 1]} : vector<2x64xf32> to vector<2x32xf32>
    %46 = vector.extract_strided_slice %44 {offsets = [0, 32], sizes = [2, 32], strides = [1, 1]} : vector<2x64xf32> to vector<2x32xf32>
    %47 = vector.extract_strided_slice %34 {offsets = [0, 64], sizes = [2, 32], strides = [1, 1]} : vector<2x192xf32> to vector<2x32xf32>
    %48 = vector.extract_strided_slice %18 {offsets = [0, 64], sizes = [2, 32], strides = [1, 1]} : vector<2x96xf32> to vector<2x32xf32>
    %49 = arith.addf %47, %48 : vector<2x32xf32>
    %50 = vector.extract_strided_slice %34 {offsets = [0, 160], sizes = [2, 32], strides = [1, 1]} : vector<2x192xf32> to vector<2x32xf32>
    %51 = arith.addf %50, %25 : vector<2x32xf32>
    %52 = arith.mulf %45, %51 : vector<2x32xf32>
    %53 = arith.addf %49, %52 : vector<2x32xf32>
    %54 = math.tanh %53 : vector<2x32xf32>
    %cst_18 = arith.constant 1.000000e+00 : f32
    %55 = vector.broadcast %cst_18 : f32 to vector<2x32xf32>
    %56 = arith.subf %55, %46 : vector<2x32xf32>
    %57 = arith.mulf %56, %54 : vector<2x32xf32>
    %58 = arith.mulf %46, %15 : vector<2x32xf32>
    %59 = arith.addf %57, %58 : vector<2x32xf32>
    %60 = tpu.concatenate %59, %15 in 1 : vector<2x32xf32>, vector<2x32xf32> -> vector<2x64xf32>
    %cst_19 = arith.constant dense<0.000000e+00> : vector<2x192xf32>
    %61 = tpu.matmul %60, %1, %cst_19 {dimension_numbers = #tpu.dot_dimension_numbers<[1], [0], [0], [1], [0, 0, 1, 1], [], []>} : vector<2x64xf32>, vector<64x192xf32>, vector<2x192xf32> -> vector<2x192xf32>
    %62 = vector.extract_strided_slice %61 {offsets = [0, 0], sizes = [2, 64], strides = [1, 1]} : vector<2x192xf32> to vector<2x64xf32>
    %63 = vector.extract_strided_slice %61 {offsets = [0, 96], sizes = [2, 64], strides = [1, 1]} : vector<2x192xf32> to vector<2x64xf32>
    %64 = arith.addf %62, %63 : vector<2x64xf32>
    %65 = vector.extract_strided_slice %23 {offsets = [0, 0], sizes = [2, 64], strides = [1, 1]} : vector<2x96xf32> to vector<2x64xf32>
    %66 = arith.addf %64, %65 : vector<2x64xf32>
    %67 = arith.negf %66 : vector<2x64xf32>
    %68 = math.exp %67 : vector<2x64xf32>
    %cst_20 = arith.constant 1.000000e+00 : f32
    %69 = vector.broadcast %cst_20 : f32 to vector<2x64xf32>
    %70 = arith.addf %69, %68 : vector<2x64xf32>
    %71 = arith.divf %69, %70 : vector<2x64xf32>
    %72 = vector.extract_strided_slice %71 {offsets = [0, 0], sizes = [2, 32], strides = [1, 1]} : vector<2x64xf32> to vector<2x32xf32>
    %73 = vector.extract_strided_slice %71 {offsets = [0, 32], sizes = [2, 32], strides = [1, 1]} : vector<2x64xf32> to vector<2x32xf32>
    %74 = vector.extract_strided_slice %61 {offsets = [0, 64], sizes = [2, 32], strides = [1, 1]} : vector<2x192xf32> to vector<2x32xf32>
    %75 = vector.extract_strided_slice %23 {offsets = [0, 64], sizes = [2, 32], strides = [1, 1]} : vector<2x96xf32> to vector<2x32xf32>
    %76 = arith.addf %74, %75 : vector<2x32xf32>
    %77 = vector.extract_strided_slice %61 {offsets = [0, 160], sizes = [2, 32], strides = [1, 1]} : vector<2x192xf32> to vector<2x32xf32>
    %78 = arith.addf %77, %27 : vector<2x32xf32>
    %79 = arith.mulf %72, %78 : vector<2x32xf32>
    %80 = arith.addf %76, %79 : vector<2x32xf32>
    %81 = math.tanh %80 : vector<2x32xf32>
    %cst_21 = arith.constant 1.000000e+00 : f32
    %82 = vector.broadcast %cst_21 : f32 to vector<2x32xf32>
    %83 = arith.subf %82, %73 : vector<2x32xf32>
    %84 = arith.mulf %83, %81 : vector<2x32xf32>
    %85 = arith.mulf %73, %15 : vector<2x32xf32>
    %86 = arith.addf %84, %85 : vector<2x32xf32>
    %cst_22 = arith.constant dense<0.000000e+00> : vector<2x16xf32>
    %87 = tpu.matmul %86, %10, %cst_22 {dimension_numbers = #tpu.dot_dimension_numbers<[1], [0], [0], [1], [0, 0, 1, 1], [], []>} : vector<2x32xf32>, vector<32x16xf32>, vector<2x16xf32> -> vector<2x16xf32>
    %88 = arith.addf %87, %21 : vector<2x16xf32>
    %cst_23 = arith.constant dense<0xFF800000> : vector<2xf32>
    %89 = vector.multi_reduction <maximumf>, %88, %cst_23 [1] : vector<2x16xf32> to vector<2xf32>
    %90 = vector.shape_cast %89 : vector<2xf32> to vector<2x1xf32>
    %91 = vector.broadcast %90 : vector<2x1xf32> to vector<2x16xf32>
    %92 = arith.cmpf oge, %88, %91 : vector<2x16xf32>
    %c16_i32 = arith.constant 16 : i32
    %93 = vector.broadcast %c16_i32 : i32 to vector<2x16xi32>
    %94 = arith.select %92, %28, %93 : vector<2x16xi1>, vector<2x16xi32>
    %cst_24 = arith.constant dense<2147483647> : vector<2xi32>
    %95 = vector.multi_reduction <minsi>, %94, %cst_24 [1] : vector<2x16xi32> to vector<2xi32>
    %96 = vector.shape_cast %95 : vector<2xi32> to vector<2x1xi32>
    %97 = vector.broadcast %96 : vector<2x1xi32> to vector<2x16xi32>
    %98 = arith.cmpi eq, %28, %97 : vector<2x16xi32>
    %99 = arith.extui %98 : vector<2x16xi1> to vector<2x16xi32>
    %100 = arith.sitofp %99 : vector<2x16xi32> to vector<2x16xf32>
    %101 = vector.broadcast %90 : vector<2x1xf32> to vector<2x16xf32>
    %102 = arith.subf %88, %101 : vector<2x16xf32>
    %103 = vector.broadcast %90 : vector<2x1xf32> to vector<2x16xf32>
    %104 = arith.subf %88, %103 : vector<2x16xf32>
    %105 = math.exp %104 : vector<2x16xf32>
    %cst_25 = arith.constant dense<0.000000e+00> : vector<2xf32>
    %106 = vector.multi_reduction <add>, %105, %cst_25 [1] : vector<2x16xf32> to vector<2xf32>
    %107 = vector.shape_cast %106 : vector<2xf32> to vector<2x1xf32>
    %108 = math.log %107 : vector<2x1xf32>
    %109 = vector.broadcast %108 : vector<2x1xf32> to vector<2x16xf32>
    %110 = arith.subf %102, %109 : vector<2x16xf32>
    %c0_26 = arith.constant 0 : index
    %c0_27 = arith.constant 0 : index
    %111 = vector.load %arg3[%c0_26, %c0_27] : memref<2x128xf32, #tpu.memory_space<vmem>>, vector<2x16xf32>
    tpu.vector_store %arg3[%c0_26, %c0_27], %110 {strides = array<i32>} : memref<2x128xf32, #tpu.memory_space<vmem>>, vector<2x16xf32>,
    %112 = tpu.concatenate %100, %59 in 1 : vector<2x16xf32>, vector<2x32xf32> -> vector<2x48xf32>
    %cst_28 = arith.constant dense<0.000000e+00> : vector<2x192xf32>
    %113 = tpu.matmul %112, %0, %cst_28 {dimension_numbers = #tpu.dot_dimension_numbers<[1], [0], [0], [1], [0, 0, 1, 1], [], []>} : vector<2x48xf32>, vector<48x192xf32>, vector<2x192xf32> -> vector<2x192xf32>
    %114 = vector.extract_strided_slice %113 {offsets = [0, 0], sizes = [2, 64], strides = [1, 1]} : vector<2x192xf32> to vector<2x64xf32>
    %115 = vector.extract_strided_slice %113 {offsets = [0, 96], sizes = [2, 64], strides = [1, 1]} : vector<2x192xf32> to vector<2x64xf32>
    %116 = arith.addf %114, %115 : vector<2x64xf32>
    %117 = vector.extract_strided_slice %18 {offsets = [0, 0], sizes = [2, 64], strides = [1, 1]} : vector<2x96xf32> to vector<2x64xf32>
    %118 = arith.addf %116, %117 : vector<2x64xf32>
    %119 = arith.negf %118 : vector<2x64xf32>
    %120 = math.exp %119 : vector<2x64xf32>
    %cst_29 = arith.constant 1.000000e+00 : f32
    %121 = vector.broadcast %cst_29 : f32 to vector<2x64xf32>
    %122 = arith.addf %121, %120 : vector<2x64xf32>
    %123 = arith.divf %121, %122 : vector<2x64xf32>
    %124 = vector.extract_strided_slice %123 {offsets = [0, 0], sizes = [2, 32], strides = [1, 1]} : vector<2x64xf32> to vector<2x32xf32>
    %125 = vector.extract_strided_slice %123 {offsets = [0, 32], sizes = [2, 32], strides = [1, 1]} : vector<2x64xf32> to vector<2x32xf32>
    %126 = vector.extract_strided_slice %113 {offsets = [0, 64], sizes = [2, 32], strides = [1, 1]} : vector<2x192xf32> to vector<2x32xf32>
    %127 = vector.extract_strided_slice %18 {offsets = [0, 64], sizes = [2, 32], strides = [1, 1]} : vector<2x96xf32> to vector<2x32xf32>
    %128 = arith.addf %126, %127 : vector<2x32xf32>
    %129 = vector.extract_strided_slice %113 {offsets = [0, 160], sizes = [2, 32], strides = [1, 1]} : vector<2x192xf32> to vector<2x32xf32>
    %130 = arith.addf %129, %25 : vector<2x32xf32>
    %131 = arith.mulf %124, %130 : vector<2x32xf32>
    %132 = arith.addf %128, %131 : vector<2x32xf32>
    %133 = math.tanh %132 : vector<2x32xf32>
    %cst_30 = arith.constant 1.000000e+00 : f32
    %134 = vector.broadcast %cst_30 : f32 to vector<2x32xf32>
    %135 = arith.subf %134, %125 : vector<2x32xf32>
    %136 = arith.mulf %135, %133 : vector<2x32xf32>
    %137 = arith.mulf %125, %59 : vector<2x32xf32>
    %138 = arith.addf %136, %137 : vector<2x32xf32>
    %139 = tpu.concatenate %138, %86 in 1 : vector<2x32xf32>, vector<2x32xf32> -> vector<2x64xf32>
    %cst_31 = arith.constant dense<0.000000e+00> : vector<2x192xf32>
    %140 = tpu.matmul %139, %1, %cst_31 {dimension_numbers = #tpu.dot_dimension_numbers<[1], [0], [0], [1], [0, 0, 1, 1], [], []>} : vector<2x64xf32>, vector<64x192xf32>, vector<2x192xf32> -> vector<2x192xf32>
    %141 = vector.extract_strided_slice %140 {offsets = [0, 0], sizes = [2, 64], strides = [1, 1]} : vector<2x192xf32> to vector<2x64xf32>
    %142 = vector.extract_strided_slice %140 {offsets = [0, 96], sizes = [2, 64], strides = [1, 1]} : vector<2x192xf32> to vector<2x64xf32>
    %143 = arith.addf %141, %142 : vector<2x64xf32>
    %144 = vector.extract_strided_slice %23 {offsets = [0, 0], sizes = [2, 64], strides = [1, 1]} : vector<2x96xf32> to vector<2x64xf32>
    %145 = arith.addf %143, %144 : vector<2x64xf32>
    %146 = arith.negf %145 : vector<2x64xf32>
    %147 = math.exp %146 : vector<2x64xf32>
    %cst_32 = arith.constant 1.000000e+00 : f32
    %148 = vector.broadcast %cst_32 : f32 to vector<2x64xf32>
    %149 = arith.addf %148, %147 : vector<2x64xf32>
    %150 = arith.divf %148, %149 : vector<2x64xf32>
    %151 = vector.extract_strided_slice %150 {offsets = [0, 0], sizes = [2, 32], strides = [1, 1]} : vector<2x64xf32> to vector<2x32xf32>
    %152 = vector.extract_strided_slice %150 {offsets = [0, 32], sizes = [2, 32], strides = [1, 1]} : vector<2x64xf32> to vector<2x32xf32>
    %153 = vector.extract_strided_slice %140 {offsets = [0, 64], sizes = [2, 32], strides = [1, 1]} : vector<2x192xf32> to vector<2x32xf32>
    %154 = vector.extract_strided_slice %23 {offsets = [0, 64], sizes = [2, 32], strides = [1, 1]} : vector<2x96xf32> to vector<2x32xf32>
    %155 = arith.addf %153, %154 : vector<2x32xf32>
    %156 = vector.extract_strided_slice %140 {offsets = [0, 160], sizes = [2, 32], strides = [1, 1]} : vector<2x192xf32> to vector<2x32xf32>
    %157 = arith.addf %156, %27 : vector<2x32xf32>
    %158 = arith.mulf %151, %157 : vector<2x32xf32>
    %159 = arith.addf %155, %158 : vector<2x32xf32>
    %160 = math.tanh %159 : vector<2x32xf32>
    %cst_33 = arith.constant 1.000000e+00 : f32
    %161 = vector.broadcast %cst_33 : f32 to vector<2x32xf32>
    %162 = arith.subf %161, %152 : vector<2x32xf32>
    %163 = arith.mulf %162, %160 : vector<2x32xf32>
    %164 = arith.mulf %152, %86 : vector<2x32xf32>
    %165 = arith.addf %163, %164 : vector<2x32xf32>
    %cst_34 = arith.constant dense<0.000000e+00> : vector<2x16xf32>
    %166 = tpu.matmul %165, %10, %cst_34 {dimension_numbers = #tpu.dot_dimension_numbers<[1], [0], [0], [1], [0, 0, 1, 1], [], []>} : vector<2x32xf32>, vector<32x16xf32>, vector<2x16xf32> -> vector<2x16xf32>
    %167 = arith.addf %166, %21 : vector<2x16xf32>
    %cst_35 = arith.constant dense<0xFF800000> : vector<2xf32>
    %168 = vector.multi_reduction <maximumf>, %167, %cst_35 [1] : vector<2x16xf32> to vector<2xf32>
    %169 = vector.shape_cast %168 : vector<2xf32> to vector<2x1xf32>
    %170 = vector.broadcast %169 : vector<2x1xf32> to vector<2x16xf32>
    %171 = arith.cmpf oge, %167, %170 : vector<2x16xf32>
    %c16_i32_36 = arith.constant 16 : i32
    %172 = vector.broadcast %c16_i32_36 : i32 to vector<2x16xi32>
    %173 = arith.select %171, %28, %172 : vector<2x16xi1>, vector<2x16xi32>
    %cst_37 = arith.constant dense<2147483647> : vector<2xi32>
    %174 = vector.multi_reduction <minsi>, %173, %cst_37 [1] : vector<2x16xi32> to vector<2xi32>
    %175 = vector.shape_cast %174 : vector<2xi32> to vector<2x1xi32>
    %176 = vector.broadcast %175 : vector<2x1xi32> to vector<2x16xi32>
    %177 = arith.cmpi eq, %28, %176 : vector<2x16xi32>
    %178 = arith.extui %177 : vector<2x16xi1> to vector<2x16xi32>
    %179 = arith.sitofp %178 : vector<2x16xi32> to vector<2x16xf32>
    %180 = vector.broadcast %169 : vector<2x1xf32> to vector<2x16xf32>
    %181 = arith.subf %167, %180 : vector<2x16xf32>
    %182 = vector.broadcast %169 : vector<2x1xf32> to vector<2x16xf32>
    %183 = arith.subf %167, %182 : vector<2x16xf32>
    %184 = math.exp %183 : vector<2x16xf32>
    %cst_38 = arith.constant dense<0.000000e+00> : vector<2xf32>
    %185 = vector.multi_reduction <add>, %184, %cst_38 [1] : vector<2x16xf32> to vector<2xf32>
    %186 = vector.shape_cast %185 : vector<2xf32> to vector<2x1xf32>
    %187 = math.log %186 : vector<2x1xf32>
    %188 = vector.broadcast %187 : vector<2x1xf32> to vector<2x16xf32>
    %189 = arith.subf %181, %188 : vector<2x16xf32>
    %c0_39 = arith.constant 0 : index
    %c16 = arith.constant 16 : index
    %190 = vector.load %arg3[%c0_39, %c16] : memref<2x128xf32, #tpu.memory_space<vmem>>, vector<2x16xf32>
    tpu.vector_store %arg3[%c0_39, %c16], %189 {strides = array<i32>} : memref<2x128xf32, #tpu.memory_space<vmem>>, vector<2x16xf32>,
    %191 = tpu.concatenate %179, %138 in 1 : vector<2x16xf32>, vector<2x32xf32> -> vector<2x48xf32>
    %cst_40 = arith.constant dense<0.000000e+00> : vector<2x192xf32>
    %192 = tpu.matmul %191, %0, %cst_40 {dimension_numbers = #tpu.dot_dimension_numbers<[1], [0], [0], [1], [0, 0, 1, 1], [], []>} : vector<2x48xf32>, vector<48x192xf32>, vector<2x192xf32> -> vector<2x192xf32>
    %193 = vector.extract_strided_slice %192 {offsets = [0, 0], sizes = [2, 64], strides = [1, 1]} : vector<2x192xf32> to vector<2x64xf32>
    %194 = vector.extract_strided_slice %192 {offsets = [0, 96], sizes = [2, 64], strides = [1, 1]} : vector<2x192xf32> to vector<2x64xf32>
    %195 = arith.addf %193, %194 : vector<2x64xf32>
    %196 = vector.extract_strided_slice %18 {offsets = [0, 0], sizes = [2, 64], strides = [1, 1]} : vector<2x96xf32> to vector<2x64xf32>
    %197 = arith.addf %195, %196 : vector<2x64xf32>
    %198 = arith.negf %197 : vector<2x64xf32>
    %199 = math.exp %198 : vector<2x64xf32>
    %cst_41 = arith.constant 1.000000e+00 : f32
    %200 = vector.broadcast %cst_41 : f32 to vector<2x64xf32>
    %201 = arith.addf %200, %199 : vector<2x64xf32>
    %202 = arith.divf %200, %201 : vector<2x64xf32>
    %203 = vector.extract_strided_slice %202 {offsets = [0, 0], sizes = [2, 32], strides = [1, 1]} : vector<2x64xf32> to vector<2x32xf32>
    %204 = vector.extract_strided_slice %202 {offsets = [0, 32], sizes = [2, 32], strides = [1, 1]} : vector<2x64xf32> to vector<2x32xf32>
    %205 = vector.extract_strided_slice %192 {offsets = [0, 64], sizes = [2, 32], strides = [1, 1]} : vector<2x192xf32> to vector<2x32xf32>
    %206 = vector.extract_strided_slice %18 {offsets = [0, 64], sizes = [2, 32], strides = [1, 1]} : vector<2x96xf32> to vector<2x32xf32>
    %207 = arith.addf %205, %206 : vector<2x32xf32>
    %208 = vector.extract_strided_slice %192 {offsets = [0, 160], sizes = [2, 32], strides = [1, 1]} : vector<2x192xf32> to vector<2x32xf32>
    %209 = arith.addf %208, %25 : vector<2x32xf32>
    %210 = arith.mulf %203, %209 : vector<2x32xf32>
    %211 = arith.addf %207, %210 : vector<2x32xf32>
    %212 = math.tanh %211 : vector<2x32xf32>
    %cst_42 = arith.constant 1.000000e+00 : f32
    %213 = vector.broadcast %cst_42 : f32 to vector<2x32xf32>
    %214 = arith.subf %213, %204 : vector<2x32xf32>
    %215 = arith.mulf %214, %212 : vector<2x32xf32>
    %216 = arith.mulf %204, %138 : vector<2x32xf32>
    %217 = arith.addf %215, %216 : vector<2x32xf32>
    %218 = tpu.concatenate %217, %165 in 1 : vector<2x32xf32>, vector<2x32xf32> -> vector<2x64xf32>
    %cst_43 = arith.constant dense<0.000000e+00> : vector<2x192xf32>
    %219 = tpu.matmul %218, %1, %cst_43 {dimension_numbers = #tpu.dot_dimension_numbers<[1], [0], [0], [1], [0, 0, 1, 1], [], []>} : vector<2x64xf32>, vector<64x192xf32>, vector<2x192xf32> -> vector<2x192xf32>
    %220 = vector.extract_strided_slice %219 {offsets = [0, 0], sizes = [2, 64], strides = [1, 1]} : vector<2x192xf32> to vector<2x64xf32>
    %221 = vector.extract_strided_slice %219 {offsets = [0, 96], sizes = [2, 64], strides = [1, 1]} : vector<2x192xf32> to vector<2x64xf32>
    %222 = arith.addf %220, %221 : vector<2x64xf32>
    %223 = vector.extract_strided_slice %23 {offsets = [0, 0], sizes = [2, 64], strides = [1, 1]} : vector<2x96xf32> to vector<2x64xf32>
    %224 = arith.addf %222, %223 : vector<2x64xf32>
    %225 = arith.negf %224 : vector<2x64xf32>
    %226 = math.exp %225 : vector<2x64xf32>
    %cst_44 = arith.constant 1.000000e+00 : f32
    %227 = vector.broadcast %cst_44 : f32 to vector<2x64xf32>
    %228 = arith.addf %227, %226 : vector<2x64xf32>
    %229 = arith.divf %227, %228 : vector<2x64xf32>
    %230 = vector.extract_strided_slice %229 {offsets = [0, 0], sizes = [2, 32], strides = [1, 1]} : vector<2x64xf32> to vector<2x32xf32>
    %231 = vector.extract_strided_slice %229 {offsets = [0, 32], sizes = [2, 32], strides = [1, 1]} : vector<2x64xf32> to vector<2x32xf32>
    %232 = vector.extract_strided_slice %219 {offsets = [0, 64], sizes = [2, 32], strides = [1, 1]} : vector<2x192xf32> to vector<2x32xf32>
    %233 = vector.extract_strided_slice %23 {offsets = [0, 64], sizes = [2, 32], strides = [1, 1]} : vector<2x96xf32> to vector<2x32xf32>
    %234 = arith.addf %232, %233 : vector<2x32xf32>
    %235 = vector.extract_strided_slice %219 {offsets = [0, 160], sizes = [2, 32], strides = [1, 1]} : vector<2x192xf32> to vector<2x32xf32>
    %236 = arith.addf %235, %27 : vector<2x32xf32>
    %237 = arith.mulf %230, %236 : vector<2x32xf32>
    %238 = arith.addf %234, %237 : vector<2x32xf32>
    %239 = math.tanh %238 : vector<2x32xf32>
    %cst_45 = arith.constant 1.000000e+00 : f32
    %240 = vector.broadcast %cst_45 : f32 to vector<2x32xf32>
    %241 = arith.subf %240, %231 : vector<2x32xf32>
    %242 = arith.mulf %241, %239 : vector<2x32xf32>
    %243 = arith.mulf %231, %165 : vector<2x32xf32>
    %244 = arith.addf %242, %243 : vector<2x32xf32>
    %cst_46 = arith.constant dense<0.000000e+00> : vector<2x16xf32>
    %245 = tpu.matmul %244, %10, %cst_46 {dimension_numbers = #tpu.dot_dimension_numbers<[1], [0], [0], [1], [0, 0, 1, 1], [], []>} : vector<2x32xf32>, vector<32x16xf32>, vector<2x16xf32> -> vector<2x16xf32>
    %246 = arith.addf %245, %21 : vector<2x16xf32>
    %cst_47 = arith.constant dense<0xFF800000> : vector<2xf32>
    %247 = vector.multi_reduction <maximumf>, %246, %cst_47 [1] : vector<2x16xf32> to vector<2xf32>
    %248 = vector.shape_cast %247 : vector<2xf32> to vector<2x1xf32>
    %249 = vector.broadcast %248 : vector<2x1xf32> to vector<2x16xf32>
    %250 = arith.cmpf oge, %246, %249 : vector<2x16xf32>
    %c16_i32_48 = arith.constant 16 : i32
    %251 = vector.broadcast %c16_i32_48 : i32 to vector<2x16xi32>
    %252 = arith.select %250, %28, %251 : vector<2x16xi1>, vector<2x16xi32>
    %cst_49 = arith.constant dense<2147483647> : vector<2xi32>
    %253 = vector.multi_reduction <minsi>, %252, %cst_49 [1] : vector<2x16xi32> to vector<2xi32>
    %254 = vector.shape_cast %253 : vector<2xi32> to vector<2x1xi32>
    %255 = vector.broadcast %254 : vector<2x1xi32> to vector<2x16xi32>
    %256 = arith.cmpi eq, %28, %255 : vector<2x16xi32>
    %257 = arith.extui %256 : vector<2x16xi1> to vector<2x16xi32>
    %258 = arith.sitofp %257 : vector<2x16xi32> to vector<2x16xf32>
    %259 = vector.broadcast %248 : vector<2x1xf32> to vector<2x16xf32>
    %260 = arith.subf %246, %259 : vector<2x16xf32>
    %261 = vector.broadcast %248 : vector<2x1xf32> to vector<2x16xf32>
    %262 = arith.subf %246, %261 : vector<2x16xf32>
    %263 = math.exp %262 : vector<2x16xf32>
    %cst_50 = arith.constant dense<0.000000e+00> : vector<2xf32>
    %264 = vector.multi_reduction <add>, %263, %cst_50 [1] : vector<2x16xf32> to vector<2xf32>
    %265 = vector.shape_cast %264 : vector<2xf32> to vector<2x1xf32>
    %266 = math.log %265 : vector<2x1xf32>
    %267 = vector.broadcast %266 : vector<2x1xf32> to vector<2x16xf32>
    %268 = arith.subf %260, %267 : vector<2x16xf32>
    %c0_51 = arith.constant 0 : index
    %c32 = arith.constant 32 : index
    %269 = vector.load %arg3[%c0_51, %c32] : memref<2x128xf32, #tpu.memory_space<vmem>>, vector<2x16xf32>
    tpu.vector_store %arg3[%c0_51, %c32], %268 {strides = array<i32>} : memref<2x128xf32, #tpu.memory_space<vmem>>, vector<2x16xf32>,
    %270 = tpu.concatenate %258, %217 in 1 : vector<2x16xf32>, vector<2x32xf32> -> vector<2x48xf32>
    %cst_52 = arith.constant dense<0.000000e+00> : vector<2x192xf32>
    %271 = tpu.matmul %270, %0, %cst_52 {dimension_numbers = #tpu.dot_dimension_numbers<[1], [0], [0], [1], [0, 0, 1, 1], [], []>} : vector<2x48xf32>, vector<48x192xf32>, vector<2x192xf32> -> vector<2x192xf32>
    %272 = vector.extract_strided_slice %271 {offsets = [0, 0], sizes = [2, 64], strides = [1, 1]} : vector<2x192xf32> to vector<2x64xf32>
    %273 = vector.extract_strided_slice %271 {offsets = [0, 96], sizes = [2, 64], strides = [1, 1]} : vector<2x192xf32> to vector<2x64xf32>
    %274 = arith.addf %272, %273 : vector<2x64xf32>
    %275 = vector.extract_strided_slice %18 {offsets = [0, 0], sizes = [2, 64], strides = [1, 1]} : vector<2x96xf32> to vector<2x64xf32>
    %276 = arith.addf %274, %275 : vector<2x64xf32>
    %277 = arith.negf %276 : vector<2x64xf32>
    %278 = math.exp %277 : vector<2x64xf32>
    %cst_53 = arith.constant 1.000000e+00 : f32
    %279 = vector.broadcast %cst_53 : f32 to vector<2x64xf32>
    %280 = arith.addf %279, %278 : vector<2x64xf32>
    %281 = arith.divf %279, %280 : vector<2x64xf32>
    %282 = vector.extract_strided_slice %281 {offsets = [0, 0], sizes = [2, 32], strides = [1, 1]} : vector<2x64xf32> to vector<2x32xf32>
    %283 = vector.extract_strided_slice %281 {offsets = [0, 32], sizes = [2, 32], strides = [1, 1]} : vector<2x64xf32> to vector<2x32xf32>
    %284 = vector.extract_strided_slice %271 {offsets = [0, 64], sizes = [2, 32], strides = [1, 1]} : vector<2x192xf32> to vector<2x32xf32>
    %285 = vector.extract_strided_slice %18 {offsets = [0, 64], sizes = [2, 32], strides = [1, 1]} : vector<2x96xf32> to vector<2x32xf32>
    %286 = arith.addf %284, %285 : vector<2x32xf32>
    %287 = vector.extract_strided_slice %271 {offsets = [0, 160], sizes = [2, 32], strides = [1, 1]} : vector<2x192xf32> to vector<2x32xf32>
    %288 = arith.addf %287, %25 : vector<2x32xf32>
    %289 = arith.mulf %282, %288 : vector<2x32xf32>
    %290 = arith.addf %286, %289 : vector<2x32xf32>
    %291 = math.tanh %290 : vector<2x32xf32>
    %cst_54 = arith.constant 1.000000e+00 : f32
    %292 = vector.broadcast %cst_54 : f32 to vector<2x32xf32>
    %293 = arith.subf %292, %283 : vector<2x32xf32>
    %294 = arith.mulf %293, %291 : vector<2x32xf32>
    %295 = arith.mulf %283, %217 : vector<2x32xf32>
    %296 = arith.addf %294, %295 : vector<2x32xf32>
    %297 = tpu.concatenate %296, %244 in 1 : vector<2x32xf32>, vector<2x32xf32> -> vector<2x64xf32>
    %cst_55 = arith.constant dense<0.000000e+00> : vector<2x192xf32>
    %298 = tpu.matmul %297, %1, %cst_55 {dimension_numbers = #tpu.dot_dimension_numbers<[1], [0], [0], [1], [0, 0, 1, 1], [], []>} : vector<2x64xf32>, vector<64x192xf32>, vector<2x192xf32> -> vector<2x192xf32>
    %299 = vector.extract_strided_slice %298 {offsets = [0, 0], sizes = [2, 64], strides = [1, 1]} : vector<2x192xf32> to vector<2x64xf32>
    %300 = vector.extract_strided_slice %298 {offsets = [0, 96], sizes = [2, 64], strides = [1, 1]} : vector<2x192xf32> to vector<2x64xf32>
    %301 = arith.addf %299, %300 : vector<2x64xf32>
    %302 = vector.extract_strided_slice %23 {offsets = [0, 0], sizes = [2, 64], strides = [1, 1]} : vector<2x96xf32> to vector<2x64xf32>
    %303 = arith.addf %301, %302 : vector<2x64xf32>
    %304 = arith.negf %303 : vector<2x64xf32>
    %305 = math.exp %304 : vector<2x64xf32>
    %cst_56 = arith.constant 1.000000e+00 : f32
    %306 = vector.broadcast %cst_56 : f32 to vector<2x64xf32>
    %307 = arith.addf %306, %305 : vector<2x64xf32>
    %308 = arith.divf %306, %307 : vector<2x64xf32>
    %309 = vector.extract_strided_slice %308 {offsets = [0, 0], sizes = [2, 32], strides = [1, 1]} : vector<2x64xf32> to vector<2x32xf32>
    %310 = vector.extract_strided_slice %308 {offsets = [0, 32], sizes = [2, 32], strides = [1, 1]} : vector<2x64xf32> to vector<2x32xf32>
    %311 = vector.extract_strided_slice %298 {offsets = [0, 64], sizes = [2, 32], strides = [1, 1]} : vector<2x192xf32> to vector<2x32xf32>
    %312 = vector.extract_strided_slice %23 {offsets = [0, 64], sizes = [2, 32], strides = [1, 1]} : vector<2x96xf32> to vector<2x32xf32>
    %313 = arith.addf %311, %312 : vector<2x32xf32>
    %314 = vector.extract_strided_slice %298 {offsets = [0, 160], sizes = [2, 32], strides = [1, 1]} : vector<2x192xf32> to vector<2x32xf32>
    %315 = arith.addf %314, %27 : vector<2x32xf32>
    %316 = arith.mulf %309, %315 : vector<2x32xf32>
    %317 = arith.addf %313, %316 : vector<2x32xf32>
    %318 = math.tanh %317 : vector<2x32xf32>
    %cst_57 = arith.constant 1.000000e+00 : f32
    %319 = vector.broadcast %cst_57 : f32 to vector<2x32xf32>
    %320 = arith.subf %319, %310 : vector<2x32xf32>
    %321 = arith.mulf %320, %318 : vector<2x32xf32>
    %322 = arith.mulf %310, %244 : vector<2x32xf32>
    %323 = arith.addf %321, %322 : vector<2x32xf32>
    %cst_58 = arith.constant dense<0.000000e+00> : vector<2x16xf32>
    %324 = tpu.matmul %323, %10, %cst_58 {dimension_numbers = #tpu.dot_dimension_numbers<[1], [0], [0], [1], [0, 0, 1, 1], [], []>} : vector<2x32xf32>, vector<32x16xf32>, vector<2x16xf32> -> vector<2x16xf32>
    %325 = arith.addf %324, %21 : vector<2x16xf32>
    %cst_59 = arith.constant dense<0xFF800000> : vector<2xf32>
    %326 = vector.multi_reduction <maximumf>, %325, %cst_59 [1] : vector<2x16xf32> to vector<2xf32>
    %327 = vector.shape_cast %326 : vector<2xf32> to vector<2x1xf32>
    %328 = vector.broadcast %327 : vector<2x1xf32> to vector<2x16xf32>
    %329 = arith.cmpf oge, %325, %328 : vector<2x16xf32>
    %c16_i32_60 = arith.constant 16 : i32
    %330 = vector.broadcast %c16_i32_60 : i32 to vector<2x16xi32>
    %331 = arith.select %329, %28, %330 : vector<2x16xi1>, vector<2x16xi32>
    %cst_61 = arith.constant dense<2147483647> : vector<2xi32>
    %332 = vector.multi_reduction <minsi>, %331, %cst_61 [1] : vector<2x16xi32> to vector<2xi32>
    %333 = vector.shape_cast %332 : vector<2xi32> to vector<2x1xi32>
    %334 = vector.broadcast %333 : vector<2x1xi32> to vector<2x16xi32>
    %335 = arith.cmpi eq, %28, %334 : vector<2x16xi32>
    %336 = arith.extui %335 : vector<2x16xi1> to vector<2x16xi32>
    %337 = arith.sitofp %336 : vector<2x16xi32> to vector<2x16xf32>
    %338 = vector.broadcast %327 : vector<2x1xf32> to vector<2x16xf32>
    %339 = arith.subf %325, %338 : vector<2x16xf32>
    %340 = vector.broadcast %327 : vector<2x1xf32> to vector<2x16xf32>
    %341 = arith.subf %325, %340 : vector<2x16xf32>
    %342 = math.exp %341 : vector<2x16xf32>
    %cst_62 = arith.constant dense<0.000000e+00> : vector<2xf32>
    %343 = vector.multi_reduction <add>, %342, %cst_62 [1] : vector<2x16xf32> to vector<2xf32>
    %344 = vector.shape_cast %343 : vector<2xf32> to vector<2x1xf32>
    %345 = math.log %344 : vector<2x1xf32>
    %346 = vector.broadcast %345 : vector<2x1xf32> to vector<2x16xf32>
    %347 = arith.subf %339, %346 : vector<2x16xf32>
    %c0_63 = arith.constant 0 : index
    %c48_64 = arith.constant 48 : index
    %348 = vector.load %arg3[%c0_63, %c48_64] : memref<2x128xf32, #tpu.memory_space<vmem>>, vector<2x16xf32>
    tpu.vector_store %arg3[%c0_63, %c48_64], %347 {strides = array<i32>} : memref<2x128xf32, #tpu.memory_space<vmem>>, vector<2x16xf32>,
    %349 = tpu.concatenate %337, %296 in 1 : vector<2x16xf32>, vector<2x32xf32> -> vector<2x48xf32>
    %cst_65 = arith.constant dense<0.000000e+00> : vector<2x192xf32>
    %350 = tpu.matmul %349, %0, %cst_65 {dimension_numbers = #tpu.dot_dimension_numbers<[1], [0], [0], [1], [0, 0, 1, 1], [], []>} : vector<2x48xf32>, vector<48x192xf32>, vector<2x192xf32> -> vector<2x192xf32>
    %351 = vector.extract_strided_slice %350 {offsets = [0, 0], sizes = [2, 64], strides = [1, 1]} : vector<2x192xf32> to vector<2x64xf32>
    %352 = vector.extract_strided_slice %350 {offsets = [0, 96], sizes = [2, 64], strides = [1, 1]} : vector<2x192xf32> to vector<2x64xf32>
    %353 = arith.addf %351, %352 : vector<2x64xf32>
    %354 = vector.extract_strided_slice %18 {offsets = [0, 0], sizes = [2, 64], strides = [1, 1]} : vector<2x96xf32> to vector<2x64xf32>
    %355 = arith.addf %353, %354 : vector<2x64xf32>
    %356 = arith.negf %355 : vector<2x64xf32>
    %357 = math.exp %356 : vector<2x64xf32>
    %cst_66 = arith.constant 1.000000e+00 : f32
    %358 = vector.broadcast %cst_66 : f32 to vector<2x64xf32>
    %359 = arith.addf %358, %357 : vector<2x64xf32>
    %360 = arith.divf %358, %359 : vector<2x64xf32>
    %361 = vector.extract_strided_slice %360 {offsets = [0, 0], sizes = [2, 32], strides = [1, 1]} : vector<2x64xf32> to vector<2x32xf32>
    %362 = vector.extract_strided_slice %360 {offsets = [0, 32], sizes = [2, 32], strides = [1, 1]} : vector<2x64xf32> to vector<2x32xf32>
    %363 = vector.extract_strided_slice %350 {offsets = [0, 64], sizes = [2, 32], strides = [1, 1]} : vector<2x192xf32> to vector<2x32xf32>
    %364 = vector.extract_strided_slice %18 {offsets = [0, 64], sizes = [2, 32], strides = [1, 1]} : vector<2x96xf32> to vector<2x32xf32>
    %365 = arith.addf %363, %364 : vector<2x32xf32>
    %366 = vector.extract_strided_slice %350 {offsets = [0, 160], sizes = [2, 32], strides = [1, 1]} : vector<2x192xf32> to vector<2x32xf32>
    %367 = arith.addf %366, %25 : vector<2x32xf32>
    %368 = arith.mulf %361, %367 : vector<2x32xf32>
    %369 = arith.addf %365, %368 : vector<2x32xf32>
    %370 = math.tanh %369 : vector<2x32xf32>
    %cst_67 = arith.constant 1.000000e+00 : f32
    %371 = vector.broadcast %cst_67 : f32 to vector<2x32xf32>
    %372 = arith.subf %371, %362 : vector<2x32xf32>
    %373 = arith.mulf %372, %370 : vector<2x32xf32>
    %374 = arith.mulf %362, %296 : vector<2x32xf32>
    %375 = arith.addf %373, %374 : vector<2x32xf32>
    %376 = tpu.concatenate %375, %323 in 1 : vector<2x32xf32>, vector<2x32xf32> -> vector<2x64xf32>
    %cst_68 = arith.constant dense<0.000000e+00> : vector<2x192xf32>
    %377 = tpu.matmul %376, %1, %cst_68 {dimension_numbers = #tpu.dot_dimension_numbers<[1], [0], [0], [1], [0, 0, 1, 1], [], []>} : vector<2x64xf32>, vector<64x192xf32>, vector<2x192xf32> -> vector<2x192xf32>
    %378 = vector.extract_strided_slice %377 {offsets = [0, 0], sizes = [2, 64], strides = [1, 1]} : vector<2x192xf32> to vector<2x64xf32>
    %379 = vector.extract_strided_slice %377 {offsets = [0, 96], sizes = [2, 64], strides = [1, 1]} : vector<2x192xf32> to vector<2x64xf32>
    %380 = arith.addf %378, %379 : vector<2x64xf32>
    %381 = vector.extract_strided_slice %23 {offsets = [0, 0], sizes = [2, 64], strides = [1, 1]} : vector<2x96xf32> to vector<2x64xf32>
    %382 = arith.addf %380, %381 : vector<2x64xf32>
    %383 = arith.negf %382 : vector<2x64xf32>
    %384 = math.exp %383 : vector<2x64xf32>
    %cst_69 = arith.constant 1.000000e+00 : f32
    %385 = vector.broadcast %cst_69 : f32 to vector<2x64xf32>
    %386 = arith.addf %385, %384 : vector<2x64xf32>
    %387 = arith.divf %385, %386 : vector<2x64xf32>
    %388 = vector.extract_strided_slice %387 {offsets = [0, 0], sizes = [2, 32], strides = [1, 1]} : vector<2x64xf32> to vector<2x32xf32>
    %389 = vector.extract_strided_slice %387 {offsets = [0, 32], sizes = [2, 32], strides = [1, 1]} : vector<2x64xf32> to vector<2x32xf32>
    %390 = vector.extract_strided_slice %377 {offsets = [0, 64], sizes = [2, 32], strides = [1, 1]} : vector<2x192xf32> to vector<2x32xf32>
    %391 = vector.extract_strided_slice %23 {offsets = [0, 64], sizes = [2, 32], strides = [1, 1]} : vector<2x96xf32> to vector<2x32xf32>
    %392 = arith.addf %390, %391 : vector<2x32xf32>
    %393 = vector.extract_strided_slice %377 {offsets = [0, 160], sizes = [2, 32], strides = [1, 1]} : vector<2x192xf32> to vector<2x32xf32>
    %394 = arith.addf %393, %27 : vector<2x32xf32>
    %395 = arith.mulf %388, %394 : vector<2x32xf32>
    %396 = arith.addf %392, %395 : vector<2x32xf32>
    %397 = math.tanh %396 : vector<2x32xf32>
    %cst_70 = arith.constant 1.000000e+00 : f32
    %398 = vector.broadcast %cst_70 : f32 to vector<2x32xf32>
    %399 = arith.subf %398, %389 : vector<2x32xf32>
    %400 = arith.mulf %399, %397 : vector<2x32xf32>
    %401 = arith.mulf %389, %323 : vector<2x32xf32>
    %402 = arith.addf %400, %401 : vector<2x32xf32>
    %cst_71 = arith.constant dense<0.000000e+00> : vector<2x16xf32>
    %403 = tpu.matmul %402, %10, %cst_71 {dimension_numbers = #tpu.dot_dimension_numbers<[1], [0], [0], [1], [0, 0, 1, 1], [], []>} : vector<2x32xf32>, vector<32x16xf32>, vector<2x16xf32> -> vector<2x16xf32>
    %404 = arith.addf %403, %21 : vector<2x16xf32>
    %cst_72 = arith.constant dense<0xFF800000> : vector<2xf32>
    %405 = vector.multi_reduction <maximumf>, %404, %cst_72 [1] : vector<2x16xf32> to vector<2xf32>
    %406 = vector.shape_cast %405 : vector<2xf32> to vector<2x1xf32>
    %407 = vector.broadcast %406 : vector<2x1xf32> to vector<2x16xf32>
    %408 = arith.cmpf oge, %404, %407 : vector<2x16xf32>
    %c16_i32_73 = arith.constant 16 : i32
    %409 = vector.broadcast %c16_i32_73 : i32 to vector<2x16xi32>
    %410 = arith.select %408, %28, %409 : vector<2x16xi1>, vector<2x16xi32>
    %cst_74 = arith.constant dense<2147483647> : vector<2xi32>
    %411 = vector.multi_reduction <minsi>, %410, %cst_74 [1] : vector<2x16xi32> to vector<2xi32>
    %412 = vector.shape_cast %411 : vector<2xi32> to vector<2x1xi32>
    %413 = vector.broadcast %412 : vector<2x1xi32> to vector<2x16xi32>
    %414 = arith.cmpi eq, %28, %413 : vector<2x16xi32>
    %415 = arith.extui %414 : vector<2x16xi1> to vector<2x16xi32>
    %416 = arith.sitofp %415 : vector<2x16xi32> to vector<2x16xf32>
    %417 = vector.broadcast %406 : vector<2x1xf32> to vector<2x16xf32>
    %418 = arith.subf %404, %417 : vector<2x16xf32>
    %419 = vector.broadcast %406 : vector<2x1xf32> to vector<2x16xf32>
    %420 = arith.subf %404, %419 : vector<2x16xf32>
    %421 = math.exp %420 : vector<2x16xf32>
    %cst_75 = arith.constant dense<0.000000e+00> : vector<2xf32>
    %422 = vector.multi_reduction <add>, %421, %cst_75 [1] : vector<2x16xf32> to vector<2xf32>
    %423 = vector.shape_cast %422 : vector<2xf32> to vector<2x1xf32>
    %424 = math.log %423 : vector<2x1xf32>
    %425 = vector.broadcast %424 : vector<2x1xf32> to vector<2x16xf32>
    %426 = arith.subf %418, %425 : vector<2x16xf32>
    %c0_76 = arith.constant 0 : index
    %c64 = arith.constant 64 : index
    %427 = vector.load %arg3[%c0_76, %c64] : memref<2x128xf32, #tpu.memory_space<vmem>>, vector<2x16xf32>
    tpu.vector_store %arg3[%c0_76, %c64], %426 {strides = array<i32>} : memref<2x128xf32, #tpu.memory_space<vmem>>, vector<2x16xf32>,
    %428 = tpu.concatenate %416, %375 in 1 : vector<2x16xf32>, vector<2x32xf32> -> vector<2x48xf32>
    %cst_77 = arith.constant dense<0.000000e+00> : vector<2x192xf32>
    %429 = tpu.matmul %428, %0, %cst_77 {dimension_numbers = #tpu.dot_dimension_numbers<[1], [0], [0], [1], [0, 0, 1, 1], [], []>} : vector<2x48xf32>, vector<48x192xf32>, vector<2x192xf32> -> vector<2x192xf32>
    %430 = vector.extract_strided_slice %429 {offsets = [0, 0], sizes = [2, 64], strides = [1, 1]} : vector<2x192xf32> to vector<2x64xf32>
    %431 = vector.extract_strided_slice %429 {offsets = [0, 96], sizes = [2, 64], strides = [1, 1]} : vector<2x192xf32> to vector<2x64xf32>
    %432 = arith.addf %430, %431 : vector<2x64xf32>
    %433 = vector.extract_strided_slice %18 {offsets = [0, 0], sizes = [2, 64], strides = [1, 1]} : vector<2x96xf32> to vector<2x64xf32>
    %434 = arith.addf %432, %433 : vector<2x64xf32>
    %435 = arith.negf %434 : vector<2x64xf32>
    %436 = math.exp %435 : vector<2x64xf32>
    %cst_78 = arith.constant 1.000000e+00 : f32
    %437 = vector.broadcast %cst_78 : f32 to vector<2x64xf32>
    %438 = arith.addf %437, %436 : vector<2x64xf32>
    %439 = arith.divf %437, %438 : vector<2x64xf32>
    %440 = vector.extract_strided_slice %439 {offsets = [0, 0], sizes = [2, 32], strides = [1, 1]} : vector<2x64xf32> to vector<2x32xf32>
    %441 = vector.extract_strided_slice %439 {offsets = [0, 32], sizes = [2, 32], strides = [1, 1]} : vector<2x64xf32> to vector<2x32xf32>
    %442 = vector.extract_strided_slice %429 {offsets = [0, 64], sizes = [2, 32], strides = [1, 1]} : vector<2x192xf32> to vector<2x32xf32>
    %443 = vector.extract_strided_slice %18 {offsets = [0, 64], sizes = [2, 32], strides = [1, 1]} : vector<2x96xf32> to vector<2x32xf32>
    %444 = arith.addf %442, %443 : vector<2x32xf32>
    %445 = vector.extract_strided_slice %429 {offsets = [0, 160], sizes = [2, 32], strides = [1, 1]} : vector<2x192xf32> to vector<2x32xf32>
    %446 = arith.addf %445, %25 : vector<2x32xf32>
    %447 = arith.mulf %440, %446 : vector<2x32xf32>
    %448 = arith.addf %444, %447 : vector<2x32xf32>
    %449 = math.tanh %448 : vector<2x32xf32>
    %cst_79 = arith.constant 1.000000e+00 : f32
    %450 = vector.broadcast %cst_79 : f32 to vector<2x32xf32>
    %451 = arith.subf %450, %441 : vector<2x32xf32>
    %452 = arith.mulf %451, %449 : vector<2x32xf32>
    %453 = arith.mulf %441, %375 : vector<2x32xf32>
    %454 = arith.addf %452, %453 : vector<2x32xf32>
    %455 = tpu.concatenate %454, %402 in 1 : vector<2x32xf32>, vector<2x32xf32> -> vector<2x64xf32>
    %cst_80 = arith.constant dense<0.000000e+00> : vector<2x192xf32>
    %456 = tpu.matmul %455, %1, %cst_80 {dimension_numbers = #tpu.dot_dimension_numbers<[1], [0], [0], [1], [0, 0, 1, 1], [], []>} : vector<2x64xf32>, vector<64x192xf32>, vector<2x192xf32> -> vector<2x192xf32>
    %457 = vector.extract_strided_slice %456 {offsets = [0, 0], sizes = [2, 64], strides = [1, 1]} : vector<2x192xf32> to vector<2x64xf32>
    %458 = vector.extract_strided_slice %456 {offsets = [0, 96], sizes = [2, 64], strides = [1, 1]} : vector<2x192xf32> to vector<2x64xf32>
    %459 = arith.addf %457, %458 : vector<2x64xf32>
    %460 = vector.extract_strided_slice %23 {offsets = [0, 0], sizes = [2, 64], strides = [1, 1]} : vector<2x96xf32> to vector<2x64xf32>
    %461 = arith.addf %459, %460 : vector<2x64xf32>
    %462 = arith.negf %461 : vector<2x64xf32>
    %463 = math.exp %462 : vector<2x64xf32>
    %cst_81 = arith.constant 1.000000e+00 : f32
    %464 = vector.broadcast %cst_81 : f32 to vector<2x64xf32>
    %465 = arith.addf %464, %463 : vector<2x64xf32>
    %466 = arith.divf %464, %465 : vector<2x64xf32>
    %467 = vector.extract_strided_slice %466 {offsets = [0, 0], sizes = [2, 32], strides = [1, 1]} : vector<2x64xf32> to vector<2x32xf32>
    %468 = vector.extract_strided_slice %466 {offsets = [0, 32], sizes = [2, 32], strides = [1, 1]} : vector<2x64xf32> to vector<2x32xf32>
    %469 = vector.extract_strided_slice %456 {offsets = [0, 64], sizes = [2, 32], strides = [1, 1]} : vector<2x192xf32> to vector<2x32xf32>
    %470 = vector.extract_strided_slice %23 {offsets = [0, 64], sizes = [2, 32], strides = [1, 1]} : vector<2x96xf32> to vector<2x32xf32>
    %471 = arith.addf %469, %470 : vector<2x32xf32>
    %472 = vector.extract_strided_slice %456 {offsets = [0, 160], sizes = [2, 32], strides = [1, 1]} : vector<2x192xf32> to vector<2x32xf32>
    %473 = arith.addf %472, %27 : vector<2x32xf32>
    %474 = arith.mulf %467, %473 : vector<2x32xf32>
    %475 = arith.addf %471, %474 : vector<2x32xf32>
    %476 = math.tanh %475 : vector<2x32xf32>
    %cst_82 = arith.constant 1.000000e+00 : f32
    %477 = vector.broadcast %cst_82 : f32 to vector<2x32xf32>
    %478 = arith.subf %477, %468 : vector<2x32xf32>
    %479 = arith.mulf %478, %476 : vector<2x32xf32>
    %480 = arith.mulf %468, %402 : vector<2x32xf32>
    %481 = arith.addf %479, %480 : vector<2x32xf32>
    %cst_83 = arith.constant dense<0.000000e+00> : vector<2x16xf32>
    %482 = tpu.matmul %481, %10, %cst_83 {dimension_numbers = #tpu.dot_dimension_numbers<[1], [0], [0], [1], [0, 0, 1, 1], [], []>} : vector<2x32xf32>, vector<32x16xf32>, vector<2x16xf32> -> vector<2x16xf32>
    %483 = arith.addf %482, %21 : vector<2x16xf32>
    %cst_84 = arith.constant dense<0xFF800000> : vector<2xf32>
    %484 = vector.multi_reduction <maximumf>, %483, %cst_84 [1] : vector<2x16xf32> to vector<2xf32>
    %485 = vector.shape_cast %484 : vector<2xf32> to vector<2x1xf32>
    %486 = vector.broadcast %485 : vector<2x1xf32> to vector<2x16xf32>
    %487 = arith.cmpf oge, %483, %486 : vector<2x16xf32>
    %c16_i32_85 = arith.constant 16 : i32
    %488 = vector.broadcast %c16_i32_85 : i32 to vector<2x16xi32>
    %489 = arith.select %487, %28, %488 : vector<2x16xi1>, vector<2x16xi32>
    %cst_86 = arith.constant dense<2147483647> : vector<2xi32>
    %490 = vector.multi_reduction <minsi>, %489, %cst_86 [1] : vector<2x16xi32> to vector<2xi32>
    %491 = vector.shape_cast %490 : vector<2xi32> to vector<2x1xi32>
    %492 = vector.broadcast %491 : vector<2x1xi32> to vector<2x16xi32>
    %493 = arith.cmpi eq, %28, %492 : vector<2x16xi32>
    %494 = arith.extui %493 : vector<2x16xi1> to vector<2x16xi32>
    %495 = arith.sitofp %494 : vector<2x16xi32> to vector<2x16xf32>
    %496 = vector.broadcast %485 : vector<2x1xf32> to vector<2x16xf32>
    %497 = arith.subf %483, %496 : vector<2x16xf32>
    %498 = vector.broadcast %485 : vector<2x1xf32> to vector<2x16xf32>
    %499 = arith.subf %483, %498 : vector<2x16xf32>
    %500 = math.exp %499 : vector<2x16xf32>
    %cst_87 = arith.constant dense<0.000000e+00> : vector<2xf32>
    %501 = vector.multi_reduction <add>, %500, %cst_87 [1] : vector<2x16xf32> to vector<2xf32>
    %502 = vector.shape_cast %501 : vector<2xf32> to vector<2x1xf32>
    %503 = math.log %502 : vector<2x1xf32>
    %504 = vector.broadcast %503 : vector<2x1xf32> to vector<2x16xf32>
    %505 = arith.subf %497, %504 : vector<2x16xf32>
    %c0_88 = arith.constant 0 : index
    %c80 = arith.constant 80 : index
    %506 = vector.load %arg3[%c0_88, %c80] : memref<2x128xf32, #tpu.memory_space<vmem>>, vector<2x16xf32>
    tpu.vector_store %arg3[%c0_88, %c80], %505 {strides = array<i32>} : memref<2x128xf32, #tpu.memory_space<vmem>>, vector<2x16xf32>,
    %507 = tpu.concatenate %495, %454 in 1 : vector<2x16xf32>, vector<2x32xf32> -> vector<2x48xf32>
    %cst_89 = arith.constant dense<0.000000e+00> : vector<2x192xf32>
    %508 = tpu.matmul %507, %0, %cst_89 {dimension_numbers = #tpu.dot_dimension_numbers<[1], [0], [0], [1], [0, 0, 1, 1], [], []>} : vector<2x48xf32>, vector<48x192xf32>, vector<2x192xf32> -> vector<2x192xf32>
    %509 = vector.extract_strided_slice %508 {offsets = [0, 0], sizes = [2, 64], strides = [1, 1]} : vector<2x192xf32> to vector<2x64xf32>
    %510 = vector.extract_strided_slice %508 {offsets = [0, 96], sizes = [2, 64], strides = [1, 1]} : vector<2x192xf32> to vector<2x64xf32>
    %511 = arith.addf %509, %510 : vector<2x64xf32>
    %512 = vector.extract_strided_slice %18 {offsets = [0, 0], sizes = [2, 64], strides = [1, 1]} : vector<2x96xf32> to vector<2x64xf32>
    %513 = arith.addf %511, %512 : vector<2x64xf32>
    %514 = arith.negf %513 : vector<2x64xf32>
    %515 = math.exp %514 : vector<2x64xf32>
    %cst_90 = arith.constant 1.000000e+00 : f32
    %516 = vector.broadcast %cst_90 : f32 to vector<2x64xf32>
    %517 = arith.addf %516, %515 : vector<2x64xf32>
    %518 = arith.divf %516, %517 : vector<2x64xf32>
    %519 = vector.extract_strided_slice %518 {offsets = [0, 0], sizes = [2, 32], strides = [1, 1]} : vector<2x64xf32> to vector<2x32xf32>
    %520 = vector.extract_strided_slice %518 {offsets = [0, 32], sizes = [2, 32], strides = [1, 1]} : vector<2x64xf32> to vector<2x32xf32>
    %521 = vector.extract_strided_slice %508 {offsets = [0, 64], sizes = [2, 32], strides = [1, 1]} : vector<2x192xf32> to vector<2x32xf32>
    %522 = vector.extract_strided_slice %18 {offsets = [0, 64], sizes = [2, 32], strides = [1, 1]} : vector<2x96xf32> to vector<2x32xf32>
    %523 = arith.addf %521, %522 : vector<2x32xf32>
    %524 = vector.extract_strided_slice %508 {offsets = [0, 160], sizes = [2, 32], strides = [1, 1]} : vector<2x192xf32> to vector<2x32xf32>
    %525 = arith.addf %524, %25 : vector<2x32xf32>
    %526 = arith.mulf %519, %525 : vector<2x32xf32>
    %527 = arith.addf %523, %526 : vector<2x32xf32>
    %528 = math.tanh %527 : vector<2x32xf32>
    %cst_91 = arith.constant 1.000000e+00 : f32
    %529 = vector.broadcast %cst_91 : f32 to vector<2x32xf32>
    %530 = arith.subf %529, %520 : vector<2x32xf32>
    %531 = arith.mulf %530, %528 : vector<2x32xf32>
    %532 = arith.mulf %520, %454 : vector<2x32xf32>
    %533 = arith.addf %531, %532 : vector<2x32xf32>
    %534 = tpu.concatenate %533, %481 in 1 : vector<2x32xf32>, vector<2x32xf32> -> vector<2x64xf32>
    %cst_92 = arith.constant dense<0.000000e+00> : vector<2x192xf32>
    %535 = tpu.matmul %534, %1, %cst_92 {dimension_numbers = #tpu.dot_dimension_numbers<[1], [0], [0], [1], [0, 0, 1, 1], [], []>} : vector<2x64xf32>, vector<64x192xf32>, vector<2x192xf32> -> vector<2x192xf32>
    %536 = vector.extract_strided_slice %535 {offsets = [0, 0], sizes = [2, 64], strides = [1, 1]} : vector<2x192xf32> to vector<2x64xf32>
    %537 = vector.extract_strided_slice %535 {offsets = [0, 96], sizes = [2, 64], strides = [1, 1]} : vector<2x192xf32> to vector<2x64xf32>
    %538 = arith.addf %536, %537 : vector<2x64xf32>
    %539 = vector.extract_strided_slice %23 {offsets = [0, 0], sizes = [2, 64], strides = [1, 1]} : vector<2x96xf32> to vector<2x64xf32>
    %540 = arith.addf %538, %539 : vector<2x64xf32>
    %541 = arith.negf %540 : vector<2x64xf32>
    %542 = math.exp %541 : vector<2x64xf32>
    %cst_93 = arith.constant 1.000000e+00 : f32
    %543 = vector.broadcast %cst_93 : f32 to vector<2x64xf32>
    %544 = arith.addf %543, %542 : vector<2x64xf32>
    %545 = arith.divf %543, %544 : vector<2x64xf32>
    %546 = vector.extract_strided_slice %545 {offsets = [0, 0], sizes = [2, 32], strides = [1, 1]} : vector<2x64xf32> to vector<2x32xf32>
    %547 = vector.extract_strided_slice %545 {offsets = [0, 32], sizes = [2, 32], strides = [1, 1]} : vector<2x64xf32> to vector<2x32xf32>
    %548 = vector.extract_strided_slice %535 {offsets = [0, 64], sizes = [2, 32], strides = [1, 1]} : vector<2x192xf32> to vector<2x32xf32>
    %549 = vector.extract_strided_slice %23 {offsets = [0, 64], sizes = [2, 32], strides = [1, 1]} : vector<2x96xf32> to vector<2x32xf32>
    %550 = arith.addf %548, %549 : vector<2x32xf32>
    %551 = vector.extract_strided_slice %535 {offsets = [0, 160], sizes = [2, 32], strides = [1, 1]} : vector<2x192xf32> to vector<2x32xf32>
    %552 = arith.addf %551, %27 : vector<2x32xf32>
    %553 = arith.mulf %546, %552 : vector<2x32xf32>
    %554 = arith.addf %550, %553 : vector<2x32xf32>
    %555 = math.tanh %554 : vector<2x32xf32>
    %cst_94 = arith.constant 1.000000e+00 : f32
    %556 = vector.broadcast %cst_94 : f32 to vector<2x32xf32>
    %557 = arith.subf %556, %547 : vector<2x32xf32>
    %558 = arith.mulf %557, %555 : vector<2x32xf32>
    %559 = arith.mulf %547, %481 : vector<2x32xf32>
    %560 = arith.addf %558, %559 : vector<2x32xf32>
    %cst_95 = arith.constant dense<0.000000e+00> : vector<2x16xf32>
    %561 = tpu.matmul %560, %10, %cst_95 {dimension_numbers = #tpu.dot_dimension_numbers<[1], [0], [0], [1], [0, 0, 1, 1], [], []>} : vector<2x32xf32>, vector<32x16xf32>, vector<2x16xf32> -> vector<2x16xf32>
    %562 = arith.addf %561, %21 : vector<2x16xf32>
    %cst_96 = arith.constant dense<0xFF800000> : vector<2xf32>
    %563 = vector.multi_reduction <maximumf>, %562, %cst_96 [1] : vector<2x16xf32> to vector<2xf32>
    %564 = vector.shape_cast %563 : vector<2xf32> to vector<2x1xf32>
    %565 = vector.broadcast %564 : vector<2x1xf32> to vector<2x16xf32>
    %566 = arith.cmpf oge, %562, %565 : vector<2x16xf32>
    %c16_i32_97 = arith.constant 16 : i32
    %567 = vector.broadcast %c16_i32_97 : i32 to vector<2x16xi32>
    %568 = arith.select %566, %28, %567 : vector<2x16xi1>, vector<2x16xi32>
    %cst_98 = arith.constant dense<2147483647> : vector<2xi32>
    %569 = vector.multi_reduction <minsi>, %568, %cst_98 [1] : vector<2x16xi32> to vector<2xi32>
    %570 = vector.shape_cast %569 : vector<2xi32> to vector<2x1xi32>
    %571 = vector.broadcast %570 : vector<2x1xi32> to vector<2x16xi32>
    %572 = arith.cmpi eq, %28, %571 : vector<2x16xi32>
    %573 = arith.extui %572 : vector<2x16xi1> to vector<2x16xi32>
    %574 = arith.sitofp %573 : vector<2x16xi32> to vector<2x16xf32>
    %575 = vector.broadcast %564 : vector<2x1xf32> to vector<2x16xf32>
    %576 = arith.subf %562, %575 : vector<2x16xf32>
    %577 = vector.broadcast %564 : vector<2x1xf32> to vector<2x16xf32>
    %578 = arith.subf %562, %577 : vector<2x16xf32>
    %579 = math.exp %578 : vector<2x16xf32>
    %cst_99 = arith.constant dense<0.000000e+00> : vector<2xf32>
    %580 = vector.multi_reduction <add>, %579, %cst_99 [1] : vector<2x16xf32> to vector<2xf32>
    %581 = vector.shape_cast %580 : vector<2xf32> to vector<2x1xf32>
    %582 = math.log %581 : vector<2x1xf32>
    %583 = vector.broadcast %582 : vector<2x1xf32> to vector<2x16xf32>
    %584 = arith.subf %576, %583 : vector<2x16xf32>
    %c0_100 = arith.constant 0 : index
    %c96 = arith.constant 96 : index
    %585 = vector.load %arg3[%c0_100, %c96] : memref<2x128xf32, #tpu.memory_space<vmem>>, vector<2x16xf32>
    tpu.vector_store %arg3[%c0_100, %c96], %584 {strides = array<i32>} : memref<2x128xf32, #tpu.memory_space<vmem>>, vector<2x16xf32>,
    %586 = tpu.concatenate %574, %533 in 1 : vector<2x16xf32>, vector<2x32xf32> -> vector<2x48xf32>
    %cst_101 = arith.constant dense<0.000000e+00> : vector<2x192xf32>
    %587 = tpu.matmul %586, %0, %cst_101 {dimension_numbers = #tpu.dot_dimension_numbers<[1], [0], [0], [1], [0, 0, 1, 1], [], []>} : vector<2x48xf32>, vector<48x192xf32>, vector<2x192xf32> -> vector<2x192xf32>
    %588 = vector.extract_strided_slice %587 {offsets = [0, 0], sizes = [2, 64], strides = [1, 1]} : vector<2x192xf32> to vector<2x64xf32>
    %589 = vector.extract_strided_slice %587 {offsets = [0, 96], sizes = [2, 64], strides = [1, 1]} : vector<2x192xf32> to vector<2x64xf32>
    %590 = arith.addf %588, %589 : vector<2x64xf32>
    %591 = vector.extract_strided_slice %18 {offsets = [0, 0], sizes = [2, 64], strides = [1, 1]} : vector<2x96xf32> to vector<2x64xf32>
    %592 = arith.addf %590, %591 : vector<2x64xf32>
    %593 = arith.negf %592 : vector<2x64xf32>
    %594 = math.exp %593 : vector<2x64xf32>
    %cst_102 = arith.constant 1.000000e+00 : f32
    %595 = vector.broadcast %cst_102 : f32 to vector<2x64xf32>
    %596 = arith.addf %595, %594 : vector<2x64xf32>
    %597 = arith.divf %595, %596 : vector<2x64xf32>
    %598 = vector.extract_strided_slice %597 {offsets = [0, 0], sizes = [2, 32], strides = [1, 1]} : vector<2x64xf32> to vector<2x32xf32>
    %599 = vector.extract_strided_slice %597 {offsets = [0, 32], sizes = [2, 32], strides = [1, 1]} : vector<2x64xf32> to vector<2x32xf32>
    %600 = vector.extract_strided_slice %587 {offsets = [0, 64], sizes = [2, 32], strides = [1, 1]} : vector<2x192xf32> to vector<2x32xf32>
    %601 = vector.extract_strided_slice %18 {offsets = [0, 64], sizes = [2, 32], strides = [1, 1]} : vector<2x96xf32> to vector<2x32xf32>
    %602 = arith.addf %600, %601 : vector<2x32xf32>
    %603 = vector.extract_strided_slice %587 {offsets = [0, 160], sizes = [2, 32], strides = [1, 1]} : vector<2x192xf32> to vector<2x32xf32>
    %604 = arith.addf %603, %25 : vector<2x32xf32>
    %605 = arith.mulf %598, %604 : vector<2x32xf32>
    %606 = arith.addf %602, %605 : vector<2x32xf32>
    %607 = math.tanh %606 : vector<2x32xf32>
    %cst_103 = arith.constant 1.000000e+00 : f32
    %608 = vector.broadcast %cst_103 : f32 to vector<2x32xf32>
    %609 = arith.subf %608, %599 : vector<2x32xf32>
    %610 = arith.mulf %609, %607 : vector<2x32xf32>
    %611 = arith.mulf %599, %533 : vector<2x32xf32>
    %612 = arith.addf %610, %611 : vector<2x32xf32>
    %613 = tpu.concatenate %612, %560 in 1 : vector<2x32xf32>, vector<2x32xf32> -> vector<2x64xf32>
    %cst_104 = arith.constant dense<0.000000e+00> : vector<2x192xf32>
    %614 = tpu.matmul %613, %1, %cst_104 {dimension_numbers = #tpu.dot_dimension_numbers<[1], [0], [0], [1], [0, 0, 1, 1], [], []>} : vector<2x64xf32>, vector<64x192xf32>, vector<2x192xf32> -> vector<2x192xf32>
    %615 = vector.extract_strided_slice %614 {offsets = [0, 0], sizes = [2, 64], strides = [1, 1]} : vector<2x192xf32> to vector<2x64xf32>
    %616 = vector.extract_strided_slice %614 {offsets = [0, 96], sizes = [2, 64], strides = [1, 1]} : vector<2x192xf32> to vector<2x64xf32>
    %617 = arith.addf %615, %616 : vector<2x64xf32>
    %618 = vector.extract_strided_slice %23 {offsets = [0, 0], sizes = [2, 64], strides = [1, 1]} : vector<2x96xf32> to vector<2x64xf32>
    %619 = arith.addf %617, %618 : vector<2x64xf32>
    %620 = arith.negf %619 : vector<2x64xf32>
    %621 = math.exp %620 : vector<2x64xf32>
    %cst_105 = arith.constant 1.000000e+00 : f32
    %622 = vector.broadcast %cst_105 : f32 to vector<2x64xf32>
    %623 = arith.addf %622, %621 : vector<2x64xf32>
    %624 = arith.divf %622, %623 : vector<2x64xf32>
    %625 = vector.extract_strided_slice %624 {offsets = [0, 0], sizes = [2, 32], strides = [1, 1]} : vector<2x64xf32> to vector<2x32xf32>
    %626 = vector.extract_strided_slice %624 {offsets = [0, 32], sizes = [2, 32], strides = [1, 1]} : vector<2x64xf32> to vector<2x32xf32>
    %627 = vector.extract_strided_slice %614 {offsets = [0, 64], sizes = [2, 32], strides = [1, 1]} : vector<2x192xf32> to vector<2x32xf32>
    %628 = vector.extract_strided_slice %23 {offsets = [0, 64], sizes = [2, 32], strides = [1, 1]} : vector<2x96xf32> to vector<2x32xf32>
    %629 = arith.addf %627, %628 : vector<2x32xf32>
    %630 = vector.extract_strided_slice %614 {offsets = [0, 160], sizes = [2, 32], strides = [1, 1]} : vector<2x192xf32> to vector<2x32xf32>
    %631 = arith.addf %630, %27 : vector<2x32xf32>
    %632 = arith.mulf %625, %631 : vector<2x32xf32>
    %633 = arith.addf %629, %632 : vector<2x32xf32>
    %634 = math.tanh %633 : vector<2x32xf32>
    %cst_106 = arith.constant 1.000000e+00 : f32
    %635 = vector.broadcast %cst_106 : f32 to vector<2x32xf32>
    %636 = arith.subf %635, %626 : vector<2x32xf32>
    %637 = arith.mulf %636, %634 : vector<2x32xf32>
    %638 = arith.mulf %626, %560 : vector<2x32xf32>
    %639 = arith.addf %637, %638 : vector<2x32xf32>
    %cst_107 = arith.constant dense<0.000000e+00> : vector<2x16xf32>
    %640 = tpu.matmul %639, %10, %cst_107 {dimension_numbers = #tpu.dot_dimension_numbers<[1], [0], [0], [1], [0, 0, 1, 1], [], []>} : vector<2x32xf32>, vector<32x16xf32>, vector<2x16xf32> -> vector<2x16xf32>
    %641 = arith.addf %640, %21 : vector<2x16xf32>
    %cst_108 = arith.constant dense<0xFF800000> : vector<2xf32>
    %642 = vector.multi_reduction <maximumf>, %641, %cst_108 [1] : vector<2x16xf32> to vector<2xf32>
    %643 = vector.shape_cast %642 : vector<2xf32> to vector<2x1xf32>
    %644 = vector.broadcast %643 : vector<2x1xf32> to vector<2x16xf32>
    %645 = arith.subf %641, %644 : vector<2x16xf32>
    %646 = vector.broadcast %643 : vector<2x1xf32> to vector<2x16xf32>
    %647 = arith.subf %641, %646 : vector<2x16xf32>
    %648 = math.exp %647 : vector<2x16xf32>
    %cst_109 = arith.constant dense<0.000000e+00> : vector<2xf32>
    %649 = vector.multi_reduction <add>, %648, %cst_109 [1] : vector<2x16xf32> to vector<2xf32>
    %650 = vector.shape_cast %649 : vector<2xf32> to vector<2x1xf32>
    %651 = math.log %650 : vector<2x1xf32>
    %652 = vector.broadcast %651 : vector<2x1xf32> to vector<2x16xf32>
    %653 = arith.subf %645, %652 : vector<2x16xf32>
    %c0_110 = arith.constant 0 : index
    %c112_111 = arith.constant 112 : index
    %654 = vector.load %arg3[%c0_110, %c112_111] : memref<2x128xf32, #tpu.memory_space<vmem>>, vector<2x16xf32>
    tpu.vector_store %arg3[%c0_110, %c112_111], %653 {strides = array<i32>} : memref<2x128xf32, #tpu.memory_space<vmem>>, vector<2x16xf32>,
    return
  }
  func.func @transform_0(%arg0: i32) -> (i32, i32) {
    %c0_i32 = arith.constant 0 : i32
    %c0_i32_0 = arith.constant 0 : i32
    return %arg0, %c0_i32 : i32, i32
  }
  func.func @transform_1(%arg0: i32) -> (i32, i32) {
    %c0_i32 = arith.constant 0 : i32
    %c0_i32_0 = arith.constant 0 : i32
    %c0_i32_1 = arith.constant 0 : i32
    return %c0_i32, %c0_i32_0 : i32, i32
  }
  func.func @transform_2(%arg0: i32) -> (i32, i32) {
    %c0_i32 = arith.constant 0 : i32
    %c0_i32_0 = arith.constant 0 : i32
    return %arg0, %c0_i32 : i32, i32
  }
}

</mosaic_0001>

<llo_original>
// kernel: tpu_custom_call.1
$region0: #{tpu_custom_call.1}
  #allocation0 [shape = 'u32[]', space=smem, size = 0x4, offset = 0x4, fixed_abs, tag = 'smem constant byte address 0x4 - core index']
  #allocation1 [shape = 'u32[72,128]{1,0:T(1,128)}', space=vmem, size = 0x9000, scoped, tag = 'internal scratch']
  %s0 = inlined_call_operand.hbm [shape: f32[2,8], index: 0, kind: input, shape index: {}]
  %s1 = inlined_call_operand.hbm [shape: f32[176,256], index: 1, kind: input, shape index: {}]
  %s2 = inlined_call_operand.hbm [shape: f32[2,128], index: 2, kind: output, shape index: {}]
  %s3 = sld [smem:[#allocation0]]
  $region26: #{tpu_custom_call.1} parent=0
    _
  %s5 = ssub.s32 1, %s3
  %s6 = scalar_select 0, %s5, %s3
  $region1: #{tpu_custom_call.1} parent=0
    #allocation2 [shape = 'u8[1024]{0}', space=vmem, size = 0x400, scoped, tag = 'input window, operand 0, single buffered']
    #allocation3 [shape = 's32[1]{0}', space=sflag, size = 0x4, scoped, tag = 'scoped memory for tpu_custom_call.1']
    #allocation4 [shape = 's32[1]{0}', space=sflag, size = 0x4, scoped, tag = 'scoped memory for tpu_custom_call.1']
    #allocation5 [shape = 'u8[180224]{0}', space=vmem, size = 0x2c000, scoped, tag = 'input window, operand 1, single buffered']
    #allocation6 [shape = 's32[1]{0}', space=sflag, size = 0x4, scoped, tag = 'scoped memory for tpu_custom_call.1']
    #allocation7 [shape = 'u8[1024]{0}', space=vmem, size = 0x400, scoped, tag = 'output window, operand 0, single buffered']
    %7 = vsyncpa [#allocation3], 0
    %8 = vsyncpa [#allocation6], 0
    %9 = vsyncpa [#allocation4], 0
    // Predicated region
    $region2: #{tpu_custom_call.1} parent=1 // pred_check
      _
    $region3: #{tpu_custom_call.1} parent=1 // pred_check_branch
      %11 = sbr.rel (0) target = $region5
    $region4: #{tpu_custom_call.1} parent=1 // pred_region
      %13 = vsyncadd [#allocation3], 0
      %s15 = sshll.u32 %s0, 4
      %s16 = int_to_ptr.hbm [resolvable:$true] %s15
      %s17 = sshll.u32 [#allocation2], 4
      %s18 = int_to_ptr.vmem [resolvable:$true] %s17
      %20 = dma.hbm_to_vmem [thread:$0]  %s16, 32, %s18, [#allocation3]
    $region5: #{tpu_custom_call.1} parent=1 // pred_fallthru
      _
    // Predicated region
    $region6: #{tpu_custom_call.1} parent=1 // pred_check
      _
    $region7: #{tpu_custom_call.1} parent=1 // pred_check_branch
      %22 = sbr.rel (0) target = $region9
    $region8: #{tpu_custom_call.1} parent=1 // pred_region
      %24 = vsyncadd [#allocation6], 0
      %s25 = sshll.u32 %s1, 4
      %s26 = int_to_ptr.hbm [resolvable:$true] %s25
      %s27 = sshll.u32 [#allocation5], 4
      %s28 = int_to_ptr.vmem [resolvable:$true] %s27
      %33 = dma.hbm_to_vmem [thread:$0]  %s26, 5632, %s28, [#allocation6], 256, 256, 16
    $region9: #{tpu_custom_call.1} parent=1 // pred_fallthru
      _
    // Predicated region
    $region10: #{tpu_custom_call.1} parent=1 // pred_check
      _
    $region11: #{tpu_custom_call.1} parent=1 // pred_check_branch
      %35 = sbr.rel (0) target = $region13
    $region12: #{tpu_custom_call.1} parent=1 // pred_region
      %37 = dma.done [#allocation3], 32
    $region13: #{tpu_custom_call.1} parent=1 // pred_fallthru
      _
    // Predicated region
    $region14: #{tpu_custom_call.1} parent=1 // pred_check
      _
    $region15: #{tpu_custom_call.1} parent=1 // pred_check_branch
      %39 = sbr.rel (0) target = $region17
    $region16: #{tpu_custom_call.1} parent=1 // pred_region
      %41 = dma.done [#allocation6], 5632
    $region17: #{tpu_custom_call.1} parent=1 // pred_fallthru
      _
    %v42 = vld [vmem:[#allocation5] sm:$0xff]
    %v43 = vld [vmem:[#allocation5 + $0x8] sm:$0xff]
    %v44 = vld [vmem:[#allocation5 + $0x10] sm:$0xff]
    %v45 = vld [vmem:[#allocation5 + $0x18] sm:$0xff]
    %v46 = vld [vmem:[#allocation5 + $0x20] sm:$0xff]
    %v47 = vld [vmem:[#allocation5 + $0x28] sm:$0xff]
    %v48 = vld [vmem:[#allocation5 + $0x30] sm:$0xff]
    %v49 = vld [vmem:[#allocation5 + $0x38] sm:$0xff]
    %v50 = vld [vmem:[#allocation5 + $0x40] sm:$0xff]
    %v51 = vld [vmem:[#allocation5 + $0x48] sm:$0xff]
    %v52 = vld [vmem:[#allocation5 + $0x50] sm:$0xff]
    %v53 = vld [vmem:[#allocation5 + $0x58] sm:$0xff]
    %v54 = vld [vmem:[#allocation5 + $0x60] sm:$0xff]
    %v55 = vld [vmem:[#allocation5 + $0x68] sm:$0xff]
    %v56 = vld [vmem:[#allocation5 + $0x70] sm:$0xff]
    %v57 = vld [vmem:[#allocation5 + $0x78] sm:$0xff]
    %v58 = vld [vmem:[#allocation5 + $0x80] sm:$0xff]
    %v59 = vld [vmem:[#allocation5 + $0x88] sm:$0xff]
    %v60 = vld [vmem:[#allocation5 + $0x90] sm:$0xff]
    %v61 = vld [vmem:[#allocation5 + $0x98] sm:$0xff]
    %v62 = vld [vmem:[#allocation5 + $0xa0] sm:$0xff]
    %v63 = vld [vmem:[#allocation5 + $0xa8] sm:$0xff]
    %v64 = vld [vmem:[#allocation5 + $0xb0] sm:$0xff]
    %v65 = vld [vmem:[#allocation5 + $0xb8] sm:$0xff]
    %v66 = vld [vmem:[#allocation5 + $0xc0] sm:$0xff]
    %v67 = vld [vmem:[#allocation5 + $0xc8] sm:$0xff]
    %v68 = vld [vmem:[#allocation5 + $0xd0] sm:$0xff]
    %v69 = vld [vmem:[#allocation5 + $0xd8] sm:$0xff]
    %v70 = vld [vmem:[#allocation5 + $0xe0] sm:$0xff]
    %v71 = vld [vmem:[#allocation5 + $0xf0] ss:$0 sm:$0xff]
    %v72 = vld [vmem:[#allocation5 + $0xf1] ss:$0 sm:$0xff]
    %v73 = vld [vmem:[#allocation5 + $0xf2] ss:$0 sm:$0xff]
    %v74 = vld [vmem:[#allocation5 + $0xf3] ss:$0 sm:$0xff]
    %v75 = vld [vmem:[#allocation5 + $0xf4] ss:$0 sm:$0xff]
    %v76 = vld [vmem:[#allocation5 + $0xf5] ss:$0 sm:$0xff]
    %v77 = vld [vmem:[#allocation5 + $0x100] sm:$0xff]
    %v78 = vld [vmem:[#allocation5 + $0x110] sm:$0xff]
    %v79 = vld [vmem:[#allocation5 + $0x120] sm:$0xff]
    %v80 = vld [vmem:[#allocation5 + $0x130] sm:$0xff]
    %v81 = vld [vmem:[#allocation5 + $0x140] sm:$0xff]
    %v82 = vld [vmem:[#allocation5 + $0x150] sm:$0xff]
    %v83 = vld [vmem:[#allocation2] sm:$0x3]
    %vm84 = vcmask 64512
    %v86 = vsel %vm84, %v83, 0
    %88 = vmatpush.msra.mxu0 0.0
    %89 = vmatpush.msra.mxu0 0.0
    %90 = vmatpush.msra.mxu0 0.0
    %91 = vmatpush.msra.mxu0 0.0
    %92 = vmatpush.msra.mxu0 0.0
    %93 = vmatpush.msra.mxu0 0.0
    %94 = vmatpush.msra.mxu0 0.0
    %95 = vmatpush.msra.mxu0 0.0
    %96 = vmatpush.msra.mxu0 0.0
    %97 = vmatpush.msra.mxu0 0.0
    %98 = vmatpush.msra.mxu0 0.0
    %99 = vmatpush.msra.mxu0 0.0
    %100 = vmatpush.msra.mxu0 0.0
    %101 = vmatpush.msra.mxu0 0.0
    %102 = vmatpush.msra.mxu0 0.0
    %103 = vmatpush.msra.mxu0 %v77
    %104 = vmatmul.f32.gmra.mxu0 %v86
    %v105 = vpop.f32.mrf.mxu0
    %v106 = vadd.f32 %v75, %v105
    %107 = vdwg.mxu0
    %108 = vmatpush.msra.mxu0 0.0
    %109 = vmatpush.msra.mxu0 0.0
    %110 = vmatpush.msra.mxu0 0.0
    %111 = vmatpush.msra.mxu0 0.0
    %112 = vmatpush.msra.mxu0 0.0
    %113 = vmatpush.msra.mxu0 0.0
    %114 = vmatpush.msra.mxu0 0.0
    %115 = vmatpush.msra.mxu0 0.0
    %116 = vmatpush.msra.mxu0 0.0
    %117 = vmatpush.msra.mxu0 0.0
    %118 = vmatpush.msra.mxu0 0.0
    %119 = vmatpush.msra.mxu0 0.0
    %120 = vmatpush.msra.mxu0 0.0
    %121 = vmatpush.msra.mxu0 0.0
    %122 = vmatpush.msra.mxu0 0.0
    %123 = vmatpush.msra.mxu0 %v70
    %124 = vmatmul.f32.gmra.mxu0 %v86
    %v125 = vpop.f32.mrf.mxu0
    %v126 = vadd.f32 %v71, %v125
    %127 = vdwg.mxu0
    %128 = vmatpush.msra.mxu0 0.0
    %129 = vmatpush.msra.mxu0 0.0
    %130 = vmatpush.msra.mxu0 0.0
    %131 = vmatpush.msra.mxu0 0.0
    %132 = vmatpush.msra.mxu0 0.0
    %133 = vmatpush.msra.mxu0 0.0
    %134 = vmatpush.msra.mxu0 0.0
    %135 = vmatpush.msra.mxu0 0.0
    %136 = vmatpush.msra.mxu0 0.0
    %137 = vmatpush.msra.mxu0 0.0
    %138 = vmatpush.msra.mxu0 0.0
    %139 = vmatpush.msra.mxu0 0.0
    %140 = vmatpush.msra.mxu0 0.0
    %141 = vmatpush.msra.mxu0 0.0
    %142 = vmatpush.msra.mxu0 0.0
    %143 = vmatpush.msra.mxu0 %v82
    %144 = vmatmul.f32.gmra.mxu0 %v86
    %v145 = vpop.f32.mrf.mxu0
    %v146 = vadd.f32 %v76, %v145
    %147 = vdwg.mxu0
    %v148 = vlaneseq
    %v149 = vand.u32 %v148, 127
    %vm150 = vcmp.eq.s32.totalorder %v149, 1
    %v151 = vsel %vm150, 1, 0
    %v152 = vcvt.s32.f32 %v151
    %154 = vrot.lane.b32.xlu0 %v106, 16
    %v155 = vpop.permute.xlu0 %154
    %vm157 = vcmask 130048
    %v158 = vsel %vm157, %v152, %v155
    %vm159 = vcmask 392192
    %v161 = vsel %vm159, %v158, 0
    %163 = vmatpush.msra.mxu0 0.0
    %164 = vmatpush.msra.mxu0 0.0
    %165 = vmatpush.msra.mxu0 0.0
    %166 = vmatpush.msra.mxu0 0.0
    %167 = vmatpush.msra.mxu0 0.0
    %168 = vmatpush.msra.mxu0 0.0
    %169 = vmatpush.msra.mxu0 0.0
    %170 = vmatpush.msra.mxu0 0.0
    %171 = vmatpush.msra.mxu0 0.0
    %172 = vmatpush.msra.mxu0 0.0
    %173 = vmatpush.msra.mxu0 %v52
    %174 = vmatpush.msra.mxu0 %v50
    %175 = vmatpush.msra.mxu0 %v48
    %176 = vmatpush.msra.mxu0 %v46
    %177 = vmatpush.msra.mxu0 %v44
    %178 = vmatpush.msra.mxu0 %v42
    %179 = vmatmul.f32.gmra.mxu0 %v161
    %v180 = vpop.f32.mrf.mxu0
    %v181 = vadd.f32 0.0, %v180
    %182 = vdwg.mxu0
    %183 = vmatpush.msra.mxu0 0.0
    %184 = vmatpush.msra.mxu0 0.0
    %185 = vmatpush.msra.mxu0 0.0
    %186 = vmatpush.msra.mxu0 0.0
    %187 = vmatpush.msra.mxu0 0.0
    %188 = vmatpush.msra.mxu0 0.0
    %189 = vmatpush.msra.mxu0 0.0
    %190 = vmatpush.msra.mxu0 0.0
    %191 = vmatpush.msra.mxu0 0.0
    %192 = vmatpush.msra.mxu0 0.0
    %193 = vmatpush.msra.mxu0 %v53
    %194 = vmatpush.msra.mxu0 %v51
    %195 = vmatpush.msra.mxu0 %v49
    %196 = vmatpush.msra.mxu0 %v47
    %197 = vmatpush.msra.mxu0 %v45
    %198 = vmatpush.msra.mxu0 %v43
    %199 = vmatmul.f32.gmra.mxu0 %v161
    %v200 = vpop.f32.mrf.mxu0
    %v201 = vadd.f32 0.0, %v200
    %202 = vdwg.mxu0
    %205 = vrot.lane.b32.xlu0 %v181, 32
    %v206 = vpop.permute.xlu0 %205
    %207 = vrot.lane.b32.xlu0 %v201, 32
    %v208 = vpop.permute.xlu0 %207
    %vm209 = vcmask 261120
    %v210 = vsel %vm209, %v206, %v208
    %v212 = vadd.f32 %v181, %v210
    %v213 = vadd.f32 %v212, %v126
    %v214 = vxor.u32 %v213, 2147483648
    %v215 = vmul.f32 %v214, 1.442695
    %v216 = vpow.pop %v215
    %v217 = vadd.f32 %v216, 1.0
    %v218 = vrcp.pop %v217
    %v219 = vmul.f32 %v217, %v218
    %v220 = vsub.f32 1.0, %v219
    %v221 = vmul.f32 %v218, %v220
    %v222 = vadd.f32 %v218, %v221
    %vm223 = vweird.f32 %v217
    %vm224 = vweird.f32 %v218
    %vm225 = vmor %vm223, %vm224
    %v226 = vsel %vm225, %v218, %v222
    %v227 = vand.u32 2147483647, %v217
    %vm228 = vcmp.eq.f32.partialorder %v227, 8.507059e+37
    %v229 = vand.u32 %v217, 2147483648
    %v230 = vor.u32 1.1754944e-38, %v229
    %v231 = vsel %vm228, %v230, %v226
    %v232 = vmul.f32 1.0, %v231
    %v233 = vadd.f32 %v181, %v126
    %235 = vrot.lane.b32.xlu0 %v73, 32
    %v236 = vpop.permute.xlu0 %235
    %v238 = vadd.f32 %v201, %v236
    %240 = vrot.lane.b32.xlu0 %v238, 96
    %v241 = vpop.permute.xlu0 %240
    %v243 = vmul.f32 %v232, %v241
    %245 = vrot.lane.b32.xlu0 %v243, 64
    %v246 = vpop.permute.xlu0 %245
    %v248 = vadd.f32 %v233, %v246
    %v249 = vtanh.pop %v248
    %v250 = vsub.f32 1.0, %v232
    %252 = vrot.lane.b32.xlu0 %v249, 96
    %v253 = vpop.permute.xlu0 %252
    %v255 = vmul.f32 %v250, %v253
    %256 = vrot.lane.b32.xlu0 %v106, 32
    %v257 = vpop.permute.xlu0 %256
    %v259 = vmul.f32 %v232, %v257
    %v260 = vadd.f32 %v255, %v259
    %262 = vrot.lane.b32.xlu0 %v260, 96
    %v263 = vpop.permute.xlu0 %262
    %v265 = vsel %vm209, %v263, %v257
    %vm266 = vcmask 523264
    %v268 = vsel %vm266, %v265, 0
    %270 = vmatpush.msra.mxu0 0.0
    %271 = vmatpush.msra.mxu0 0.0
    %272 = vmatpush.msra.mxu0 0.0
    %273 = vmatpush.msra.mxu0 0.0
    %274 = vmatpush.msra.mxu0 0.0
    %275 = vmatpush.msra.mxu0 0.0
    %276 = vmatpush.msra.mxu0 0.0
    %277 = vmatpush.msra.mxu0 0.0
    %278 = vmatpush.msra.mxu0 %v68
    %279 = vmatpush.msra.mxu0 %v66
    %280 = vmatpush.msra.mxu0 %v64
    %281 = vmatpush.msra.mxu0 %v62
    %282 = vmatpush.msra.mxu0 %v60
    %283 = vmatpush.msra.mxu0 %v58
    %284 = vmatpush.msra.mxu0 %v56
    %285 = vmatpush.msra.mxu0 %v54
    %286 = vmatmul.f32.gmra.mxu0 %v268
    %v287 = vpop.f32.mrf.mxu0
    %v288 = vadd.f32 0.0, %v287
    %289 = vdwg.mxu0
    %290 = vmatpush.msra.mxu0 0.0
    %291 = vmatpush.msra.mxu0 0.0
    %292 = vmatpush.msra.mxu0 0.0
    %293 = vmatpush.msra.mxu0 0.0
    %294 = vmatpush.msra.mxu0 0.0
    %295 = vmatpush.msra.mxu0 0.0
    %296 = vmatpush.msra.mxu0 0.0
    %297 = vmatpush.msra.mxu0 0.0
    %298 = vmatpush.msra.mxu0 %v69
    %299 = vmatpush.msra.mxu0 %v67
    %300 = vmatpush.msra.mxu0 %v65
    %301 = vmatpush.msra.mxu0 %v63
    %302 = vmatpush.msra.mxu0 %v61
    %303 = vmatpush.msra.mxu0 %v59
    %304 = vmatpush.msra.mxu0 %v57
    %305 = vmatpush.msra.mxu0 %v55
    %306 = vmatmul.f32.gmra.mxu0 %v268
    %v307 = vpop.f32.mrf.mxu0
    %v308 = vadd.f32 0.0, %v307
    %309 = vdwg.mxu0
    %312 = vrot.lane.b32.xlu0 %v288, 32
    %v313 = vpop.permute.xlu0 %312
    %314 = vrot.lane.b32.xlu0 %v308, 32
    %v315 = vpop.permute.xlu0 %314
    %v316 = vsel %vm209, %v313, %v315
    %v318 = vadd.f32 %v288, %v316
    %v319 = vadd.f32 %v318, %v72
    %v320 = vxor.u32 %v319, 2147483648
    %v321 = vmul.f32 %v320, 1.442695
    %v322 = vpow.pop %v321
    %v323 = vadd.f32 %v322, 1.0
    %v324 = vrcp.pop %v323
    %v325 = vmul.f32 %v323, %v324
    %v326 = vsub.f32 1.0, %v325
    %v327 = vmul.f32 %v324, %v326
    %v328 = vadd.f32 %v324, %v327
    %vm329 = vweird.f32 %v323
    %vm330 = vweird.f32 %v324
    %vm331 = vmor %vm329, %vm330
    %v332 = vsel %vm331, %v324, %v328
    %v333 = vand.u32 2147483647, %v323
    %vm334 = vcmp.eq.f32.partialorder %v333, 8.507059e+37
    %v335 = vand.u32 %v323, 2147483648
    %v336 = vor.u32 1.1754944e-38, %v335
    %v337 = vsel %vm334, %v336, %v332
    %v338 = vmul.f32 1.0, %v337
    %v339 = vadd.f32 %v288, %v72
    %341 = vrot.lane.b32.xlu0 %v74, 32
    %v342 = vpop.permute.xlu0 %341
    %v344 = vadd.f32 %v308, %v342
    %346 = vrot.lane.b32.xlu0 %v344, 96
    %v347 = vpop.permute.xlu0 %346
    %v349 = vmul.f32 %v338, %v347
    %351 = vrot.lane.b32.xlu0 %v349, 64
    %v352 = vpop.permute.xlu0 %351
    %v354 = vadd.f32 %v339, %v352
    %v355 = vtanh.pop %v354
    %v356 = vsub.f32 1.0, %v338
    %358 = vrot.lane.b32.xlu0 %v355, 96
    %v359 = vpop.permute.xlu0 %358
    %v361 = vmul.f32 %v356, %v359
    %v362 = vmul.f32 %v338, %v257
    %v363 = vadd.f32 %v361, %v362
    %365 = vrot.lane.b32.xlu0 %v363, 96
    %v366 = vpop.permute.xlu0 %365
    %v367 = vsel %vm209, %v366, 0
    %369 = vmatpush.msra.mxu0 0.0
    %370 = vmatpush.msra.mxu0 0.0
    %371 = vmatpush.msra.mxu0 0.0
    %372 = vmatpush.msra.mxu0 0.0
    %373 = vmatpush.msra.mxu0 0.0
    %374 = vmatpush.msra.mxu0 0.0
    %375 = vmatpush.msra.mxu0 0.0
    %376 = vmatpush.msra.mxu0 0.0
    %377 = vmatpush.msra.mxu0 0.0
    %378 = vmatpush.msra.mxu0 0.0
    %379 = vmatpush.msra.mxu0 0.0
    %380 = vmatpush.msra.mxu0 0.0
    %381 = vmatpush.msra.mxu0 %v81
    %382 = vmatpush.msra.mxu0 %v80
    %383 = vmatpush.msra.mxu0 %v79
    %384 = vmatpush.msra.mxu0 %v78
    %385 = vmatmul.f32.gmra.mxu0 %v367
    %v386 = vpop.f32.mrf.mxu0
    %v387 = vadd.f32 %v146, %v386
    %388 = vdwg.mxu0
    %vm389 = vcmask 123904
    %v390 = vsel %vm389, %v387, -inf
    %391 = vmax.xlane.f32.xlu0 %v390
    %v392 = vpop.xlane.xlu0 %391
    %vm393 = vcmp.ge.f32.partialorder %v387, %v392
    %v394 = vsel %vm393, %v149, 16
    %v395 = vsel %vm389, %v394, 2147483647
    %v396 = vand.u32 %v395, 65535
    %v397 = vshra.s32 %v395, 16
    %v398 = vcvt.s32.f32 %v396
    %v399 = vcvt.s32.f32 %v397
    %400 = vmin.xlane.f32.xlu0 %v399
    %v401 = vpop.xlane.xlu0 %400
    %vm402 = vcmp.eq.f32.partialorder %v399, %v401
    %v403 = vsel %vm402, %v398, inf
    %404 = vmin.xlane.f32.xlu0 %v403
    %v405 = vpop.xlane.xlu0 %404
    %v406 = vcvt.f32.s32 %v405
    %v407 = vcvt.f32.s32 %v401
    %v408 = vshll.u32 %v407, 16
    %v409 = vadd.s32 %v408, %v406
    %vm410 = vcmp.eq.s32.totalorder %v149, %v409
    %v411 = vsel %vm410, 1, 0
    %v412 = vcvt.s32.f32 %v411
    %v413 = vsub.f32 %v387, %v392
    %v414 = vmul.f32 %v413, 1.442695
    %v415 = vpow.pop %v414
    %v416 = vsel %vm389, %v415, 0.0
    %417 = vadd.xlane.f32.xlu0 %v416
    %v418 = vpop.xlane.xlu0 %417
    %v419 = vlog2.pop %v418
    %v420 = vmul.f32 %v419, 0.6931472
    %v421 = vsub.f32 %v413, %v420
    %422 = vst.msk [vmem:[#allocation7] sm:$0x3] %vm389, %v421
    %423 = vrot.lane.b32.xlu0 %v260, 112
    %v424 = vpop.permute.xlu0 %423
    %v426 = vsel %vm157, %v412, %v424
    %v428 = vsel %vm159, %v426, 0
    %430 = vmatpush.msra.mxu0 0.0
    %431 = vmatpush.msra.mxu0 0.0
    %432 = vmatpush.msra.mxu0 0.0
    %433 = vmatpush.msra.mxu0 0.0
    %434 = vmatpush.msra.mxu0 0.0
    %435 = vmatpush.msra.mxu0 0.0
    %436 = vmatpush.msra.mxu0 0.0
    %437 = vmatpush.msra.mxu0 0.0
    %438 = vmatpush.msra.mxu0 0.0
    %439 = vmatpush.msra.mxu0 0.0
    %440 = vmatpush.msra.mxu0 %v52
    %441 = vmatpush.msra.mxu0 %v50
    %442 = vmatpush.msra.mxu0 %v48
    %443 = vmatpush.msra.mxu0 %v46
    %444 = vmatpush.msra.mxu0 %v44
    %445 = vmatpush.msra.mxu0 %v42
    %446 = vmatmul.f32.gmra.mxu0 %v428
    %v447 = vpop.f32.mrf.mxu0
    %v448 = vadd.f32 0.0, %v447
    %449 = vdwg.mxu0
    %450 = vmatpush.msra.mxu0 0.0
    %451 = vmatpush.msra.mxu0 0.0
    %452 = vmatpush.msra.mxu0 0.0
    %453 = vmatpush.msra.mxu0 0.0
    %454 = vmatpush.msra.mxu0 0.0
    %455 = vmatpush.msra.mxu0 0.0
    %456 = vmatpush.msra.mxu0 0.0
    %457 = vmatpush.msra.mxu0 0.0
    %458 = vmatpush.msra.mxu0 0.0
    %459 = vmatpush.msra.mxu0 0.0
    %460 = vmatpush.msra.mxu0 %v53
    %461 = vmatpush.msra.mxu0 %v51
    %462 = vmatpush.msra.mxu0 %v49
    %463 = vmatpush.msra.mxu0 %v47
    %464 = vmatpush.msra.mxu0 %v45
    %465 = vmatpush.msra.mxu0 %v43
    %466 = vmatmul.f32.gmra.mxu0 %v428
    %v467 = vpop.f32.mrf.mxu0
    %v468 = vadd.f32 0.0, %v467
    %469 = vdwg.mxu0
    %472 = vrot.lane.b32.xlu0 %v448, 32
    %v473 = vpop.permute.xlu0 %472
    %474 = vrot.lane.b32.xlu0 %v468, 32
    %v475 = vpop.permute.xlu0 %474
    %v476 = vsel %vm209, %v473, %v475
    %v478 = vadd.f32 %v448, %v476
    %v479 = vadd.f32 %v478, %v126
    %v480 = vxor.u32 %v479, 2147483648
    %v481 = vmul.f32 %v480, 1.442695
    %v482 = vpow.pop %v481
    %v483 = vadd.f32 %v482, 1.0
    %v484 = vrcp.pop %v483
    %v485 = vmul.f32 %v483, %v484
    %v486 = vsub.f32 1.0, %v485
    %v487 = vmul.f32 %v484, %v486
    %v488 = vadd.f32 %v484, %v487
    %vm489 = vweird.f32 %v483
    %vm490 = vweird.f32 %v484
    %vm491 = vmor %vm489, %vm490
    %v492 = vsel %vm491, %v484, %v488
    %v493 = vand.u32 2147483647, %v483
    %vm494 = vcmp.eq.f32.partialorder %v493, 8.507059e+37
    %v495 = vand.u32 %v483, 2147483648
    %v496 = vor.u32 1.1754944e-38, %v495
    %v497 = vsel %vm494, %v496, %v492
    %v498 = vmul.f32 1.0, %v497
    %v499 = vadd.f32 %v448, %v126
    %v500 = vadd.f32 %v468, %v236
    %502 = vrot.lane.b32.xlu0 %v500, 96
    %v503 = vpop.permute.xlu0 %502
    %v505 = vmul.f32 %v498, %v503
    %507 = vrot.lane.b32.xlu0 %v505, 64
    %v508 = vpop.permute.xlu0 %507
    %v510 = vadd.f32 %v499, %v508
    %v511 = vtanh.pop %v510
    %v512 = vsub.f32 1.0, %v498
    %514 = vrot.lane.b32.xlu0 %v511, 96
    %v515 = vpop.permute.xlu0 %514
    %v517 = vmul.f32 %v512, %v515
    %v518 = vmul.f32 %v498, %v260
    %v519 = vadd.f32 %v517, %v518
    %521 = vrot.lane.b32.xlu0 %v519, 96
    %v522 = vpop.permute.xlu0 %521
    %v524 = vsel %vm209, %v522, %v363
    %v526 = vsel %vm266, %v524, 0
    %528 = vmatpush.msra.mxu0 0.0
    %529 = vmatpush.msra.mxu0 0.0
    %530 = vmatpush.msra.mxu0 0.0
    %531 = vmatpush.msra.mxu0 0.0
    %532 = vmatpush.msra.mxu0 0.0
    %533 = vmatpush.msra.mxu0 0.0
    %534 = vmatpush.msra.mxu0 0.0
    %535 = vmatpush.msra.mxu0 0.0
    %536 = vmatpush.msra.mxu0 %v68
    %537 = vmatpush.msra.mxu0 %v66
    %538 = vmatpush.msra.mxu0 %v64
    %539 = vmatpush.msra.mxu0 %v62
    %540 = vmatpush.msra.mxu0 %v60
    %541 = vmatpush.msra.mxu0 %v58
    %542 = vmatpush.msra.mxu0 %v56
    %543 = vmatpush.msra.mxu0 %v54
    %544 = vmatmul.f32.gmra.mxu0 %v526
    %v545 = vpop.f32.mrf.mxu0
    %v546 = vadd.f32 0.0, %v545
    %547 = vdwg.mxu0
    %548 = vmatpush.msra.mxu0 0.0
    %549 = vmatpush.msra.mxu0 0.0
    %550 = vmatpush.msra.mxu0 0.0
    %551 = vmatpush.msra.mxu0 0.0
    %552 = vmatpush.msra.mxu0 0.0
    %553 = vmatpush.msra.mxu0 0.0
    %554 = vmatpush.msra.mxu0 0.0
    %555 = vmatpush.msra.mxu0 0.0
    %556 = vmatpush.msra.mxu0 %v69
    %557 = vmatpush.msra.mxu0 %v67
    %558 = vmatpush.msra.mxu0 %v65
    %559 = vmatpush.msra.mxu0 %v63
    %560 = vmatpush.msra.mxu0 %v61
    %561 = vmatpush.msra.mxu0 %v59
    %562 = vmatpush.msra.mxu0 %v57
    %563 = vmatpush.msra.mxu0 %v55
    %564 = vmatmul.f32.gmra.mxu0 %v526
    %v565 = vpop.f32.mrf.mxu0
    %v566 = vadd.f32 0.0, %v565
    %567 = vdwg.mxu0
    %570 = vrot.lane.b32.xlu0 %v546, 32
    %v571 = vpop.permute.xlu0 %570
    %572 = vrot.lane.b32.xlu0 %v566, 32
    %v573 = vpop.permute.xlu0 %572
    %v574 = vsel %vm209, %v571, %v573
    %v576 = vadd.f32 %v546, %v574
    %v577 = vadd.f32 %v576, %v72
    %v578 = vxor.u32 %v577, 2147483648
    %v579 = vmul.f32 %v578, 1.442695
    %v580 = vpow.pop %v579
    %v581 = vadd.f32 %v580, 1.0
    %v582 = vrcp.pop %v581
    %v583 = vmul.f32 %v581, %v582
    %v584 = vsub.f32 1.0, %v583
    %v585 = vmul.f32 %v582, %v584
    %v586 = vadd.f32 %v582, %v585
    %vm587 = vweird.f32 %v581
    %vm588 = vweird.f32 %v582
    %vm589 = vmor %vm587, %vm588
    %v590 = vsel %vm589, %v582, %v586
    %v591 = vand.u32 2147483647, %v581
    %vm592 = vcmp.eq.f32.partialorder %v591, 8.507059e+37
    %v593 = vand.u32 %v581, 2147483648
    %v594 = vor.u32 1.1754944e-38, %v593
    %v595 = vsel %vm592, %v594, %v590
    %v596 = vmul.f32 1.0, %v595
    %v597 = vadd.f32 %v546, %v72
    %v598 = vadd.f32 %v566, %v342
    %600 = vrot.lane.b32.xlu0 %v598, 96
    %v601 = vpop.permute.xlu0 %600
    %v603 = vmul.f32 %v596, %v601
    %605 = vrot.lane.b32.xlu0 %v603, 64
    %v606 = vpop.permute.xlu0 %605
    %v608 = vadd.f32 %v597, %v606
    %v609 = vtanh.pop %v608
    %v610 = vsub.f32 1.0, %v596
    %612 = vrot.lane.b32.xlu0 %v609, 96
    %v613 = vpop.permute.xlu0 %612
    %v615 = vmul.f32 %v610, %v613
    %v616 = vmul.f32 %v596, %v363
    %v617 = vadd.f32 %v615, %v616
    %619 = vrot.lane.b32.xlu0 %v617, 96
    %v620 = vpop.permute.xlu0 %619
    %v621 = vsel %vm209, %v620, 0
    %623 = vmatpush.msra.mxu0 0.0
    %624 = vmatpush.msra.mxu0 0.0
    %625 = vmatpush.msra.mxu0 0.0
    %626 = vmatpush.msra.mxu0 0.0
    %627 = vmatpush.msra.mxu0 0.0
    %628 = vmatpush.msra.mxu0 0.0
    %629 = vmatpush.msra.mxu0 0.0
    %630 = vmatpush.msra.mxu0 0.0
    %631 = vmatpush.msra.mxu0 0.0
    %632 = vmatpush.msra.mxu0 0.0
    %633 = vmatpush.msra.mxu0 0.0
    %634 = vmatpush.msra.mxu0 0.0
    %635 = vmatpush.msra.mxu0 %v81
    %636 = vmatpush.msra.mxu0 %v80
    %637 = vmatpush.msra.mxu0 %v79
    %638 = vmatpush.msra.mxu0 %v78
    %639 = vmatmul.f32.gmra.mxu0 %v621
    %v640 = vpop.f32.mrf.mxu0
    %v641 = vadd.f32 %v146, %v640
    %642 = vdwg.mxu0
    %v643 = vsel %vm389, %v641, -inf
    %644 = vmax.xlane.f32.xlu0 %v643
    %v645 = vpop.xlane.xlu0 %644
    %vm646 = vcmp.ge.f32.partialorder %v641, %v645
    %v647 = vsel %vm646, %v149, 16
    %v648 = vsel %vm389, %v647, 2147483647
    %v649 = vand.u32 %v648, 65535
    %v650 = vshra.s32 %v648, 16
    %v651 = vcvt.s32.f32 %v649
    %v652 = vcvt.s32.f32 %v650
    %653 = vmin.xlane.f32.xlu0 %v652
    %v654 = vpop.xlane.xlu0 %653
    %vm655 = vcmp.eq.f32.partialorder %v652, %v654
    %v656 = vsel %vm655, %v651, inf
    %657 = vmin.xlane.f32.xlu0 %v656
    %v658 = vpop.xlane.xlu0 %657
    %v659 = vcvt.f32.s32 %v658
    %v660 = vcvt.f32.s32 %v654
    %v661 = vshll.u32 %v660, 16
    %v662 = vadd.s32 %v661, %v659
    %vm663 = vcmp.eq.s32.totalorder %v149, %v662
    %v664 = vsel %vm663, 1, 0
    %v665 = vcvt.s32.f32 %v664
    %v666 = vsub.f32 %v641, %v645
    %v667 = vmul.f32 %v666, 1.442695
    %v668 = vpow.pop %v667
    %v669 = vsel %vm389, %v668, 0.0
    %670 = vadd.xlane.f32.xlu0 %v669
    %v671 = vpop.xlane.xlu0 %670
    %v672 = vlog2.pop %v671
    %v673 = vmul.f32 %v672, 0.6931472
    %v674 = vsub.f32 %v666, %v673
    %676 = vrot.lane.b32.xlu0 %v674, 16
    %v677 = vpop.permute.xlu0 %676
    %vm679 = vcmask 255104
    %680 = vst.msk [vmem:[#allocation7] sm:$0x3] %vm679, %v677
    %681 = vrot.lane.b32.xlu0 %v519, 112
    %v682 = vpop.permute.xlu0 %681
    %v684 = vsel %vm157, %v665, %v682
    %v686 = vsel %vm159, %v684, 0
    %688 = vmatpush.msra.mxu0 0.0
    %689 = vmatpush.msra.mxu0 0.0
    %690 = vmatpush.msra.mxu0 0.0
    %691 = vmatpush.msra.mxu0 0.0
    %692 = vmatpush.msra.mxu0 0.0
    %693 = vmatpush.msra.mxu0 0.0
    %694 = vmatpush.msra.mxu0 0.0
    %695 = vmatpush.msra.mxu0 0.0
    %696 = vmatpush.msra.mxu0 0.0
    %697 = vmatpush.msra.mxu0 0.0
    %698 = vmatpush.msra.mxu0 %v52
    %699 = vmatpush.msra.mxu0 %v50
    %700 = vmatpush.msra.mxu0 %v48
    %701 = vmatpush.msra.mxu0 %v46
    %702 = vmatpush.msra.mxu0 %v44
    %703 = vmatpush.msra.mxu0 %v42
    %704 = vmatmul.f32.gmra.mxu0 %v686
    %v705 = vpop.f32.mrf.mxu0
    %v706 = vadd.f32 0.0, %v705
    %707 = vdwg.mxu0
    %708 = vmatpush.msra.mxu0 0.0
    %709 = vmatpush.msra.mxu0 0.0
    %710 = vmatpush.msra.mxu0 0.0
    %711 = vmatpush.msra.mxu0 0.0
    %712 = vmatpush.msra.mxu0 0.0
    %713 = vmatpush.msra.mxu0 0.0
    %714 = vmatpush.msra.mxu0 0.0
    %715 = vmatpush.msra.mxu0 0.0
    %716 = vmatpush.msra.mxu0 0.0
    %717 = vmatpush.msra.mxu0 0.0
    %718 = vmatpush.msra.mxu0 %v53
    %719 = vmatpush.msra.mxu0 %v51
    %720 = vmatpush.msra.mxu0 %v49
    %721 = vmatpush.msra.mxu0 %v47
    %722 = vmatpush.msra.mxu0 %v45
    %723 = vmatpush.msra.mxu0 %v43
    %724 = vmatmul.f32.gmra.mxu0 %v686
    %v725 = vpop.f32.mrf.mxu0
    %v726 = vadd.f32 0.0, %v725
    %727 = vdwg.mxu0
    %730 = vrot.lane.b32.xlu0 %v706, 32
    %v731 = vpop.permute.xlu0 %730
    %732 = vrot.lane.b32.xlu0 %v726, 32
    %v733 = vpop.permute.xlu0 %732
    %v734 = vsel %vm209, %v731, %v733
    %v736 = vadd.f32 %v706, %v734
    %v737 = vadd.f32 %v736, %v126
    %v738 = vxor.u32 %v737, 2147483648
    %v739 = vmul.f32 %v738, 1.442695
    %v740 = vpow.pop %v739
    %v741 = vadd.f32 %v740, 1.0
    %v742 = vrcp.pop %v741
    %v743 = vmul.f32 %v741, %v742
    %v744 = vsub.f32 1.0, %v743
    %v745 = vmul.f32 %v742, %v744
    %v746 = vadd.f32 %v742, %v745
    %vm747 = vweird.f32 %v741
    %vm748 = vweird.f32 %v742
    %vm749 = vmor %vm747, %vm748
    %v750 = vsel %vm749, %v742, %v746
    %v751 = vand.u32 2147483647, %v741
    %vm752 = vcmp.eq.f32.partialorder %v751, 8.507059e+37
    %v753 = vand.u32 %v741, 2147483648
    %v754 = vor.u32 1.1754944e-38, %v753
    %v755 = vsel %vm752, %v754, %v750
    %v756 = vmul.f32 1.0, %v755
    %v757 = vadd.f32 %v706, %v126
    %v758 = vadd.f32 %v726, %v236
    %760 = vrot.lane.b32.xlu0 %v758, 96
    %v761 = vpop.permute.xlu0 %760
    %v763 = vmul.f32 %v756, %v761
    %765 = vrot.lane.b32.xlu0 %v763, 64
    %v766 = vpop.permute.xlu0 %765
    %v768 = vadd.f32 %v757, %v766
    %v769 = vtanh.pop %v768
    %v770 = vsub.f32 1.0, %v756
    %772 = vrot.lane.b32.xlu0 %v769, 96
    %v773 = vpop.permute.xlu0 %772
    %v775 = vmul.f32 %v770, %v773
    %v776 = vmul.f32 %v756, %v519
    %v777 = vadd.f32 %v775, %v776
    %779 = vrot.lane.b32.xlu0 %v777, 96
    %v780 = vpop.permute.xlu0 %779
    %v782 = vsel %vm209, %v780, %v617
    %v784 = vsel %vm266, %v782, 0
    %786 = vmatpush.msra.mxu0 0.0
    %787 = vmatpush.msra.mxu0 0.0
    %788 = vmatpush.msra.mxu0 0.0
    %789 = vmatpush.msra.mxu0 0.0
    %790 = vmatpush.msra.mxu0 0.0
    %791 = vmatpush.msra.mxu0 0.0
    %792 = vmatpush.msra.mxu0 0.0
    %793 = vmatpush.msra.mxu0 0.0
    %794 = vmatpush.msra.mxu0 %v68
    %795 = vmatpush.msra.mxu0 %v66
    %796 = vmatpush.msra.mxu0 %v64
    %797 = vmatpush.msra.mxu0 %v62
    %798 = vmatpush.msra.mxu0 %v60
    %799 = vmatpush.msra.mxu0 %v58
    %800 = vmatpush.msra.mxu0 %v56
    %801 = vmatpush.msra.mxu0 %v54
    %802 = vmatmul.f32.gmra.mxu0 %v784
    %v803 = vpop.f32.mrf.mxu0
    %v804 = vadd.f32 0.0, %v803
    %805 = vdwg.mxu0
    %806 = vmatpush.msra.mxu0 0.0
    %807 = vmatpush.msra.mxu0 0.0
    %808 = vmatpush.msra.mxu0 0.0
    %809 = vmatpush.msra.mxu0 0.0
    %810 = vmatpush.msra.mxu0 0.0
    %811 = vmatpush.msra.mxu0 0.0
    %812 = vmatpush.msra.mxu0 0.0
    %813 = vmatpush.msra.mxu0 0.0
    %814 = vmatpush.msra.mxu0 %v69
    %815 = vmatpush.msra.mxu0 %v67
    %816 = vmatpush.msra.mxu0 %v65
    %817 = vmatpush.msra.mxu0 %v63
    %818 = vmatpush.msra.mxu0 %v61
    %819 = vmatpush.msra.mxu0 %v59
    %820 = vmatpush.msra.mxu0 %v57
    %821 = vmatpush.msra.mxu0 %v55
    %822 = vmatmul.f32.gmra.mxu0 %v784
    %v823 = vpop.f32.mrf.mxu0
    %v824 = vadd.f32 0.0, %v823
    %825 = vdwg.mxu0
    %828 = vrot.lane.b32.xlu0 %v804, 32
    %v829 = vpop.permute.xlu0 %828
    %830 = vrot.lane.b32.xlu0 %v824, 32
    %v831 = vpop.permute.xlu0 %830
    %v832 = vsel %vm209, %v829, %v831
    %v834 = vadd.f32 %v804, %v832
    %v835 = vadd.f32 %v834, %v72
    %v836 = vxor.u32 %v835, 2147483648
    %v837 = vmul.f32 %v836, 1.442695
    %v838 = vpow.pop %v837
    %v839 = vadd.f32 %v838, 1.0
    %v840 = vrcp.pop %v839
    %v841 = vmul.f32 %v839, %v840
    %v842 = vsub.f32 1.0, %v841
    %v843 = vmul.f32 %v840, %v842
    %v844 = vadd.f32 %v840, %v843
    %vm845 = vweird.f32 %v839
    %vm846 = vweird.f32 %v840
    %vm847 = vmor %vm845, %vm846
    %v848 = vsel %vm847, %v840, %v844
    %v849 = vand.u32 2147483647, %v839
    %vm850 = vcmp.eq.f32.partialorder %v849, 8.507059e+37
    %v851 = vand.u32 %v839, 2147483648
    %v852 = vor.u32 1.1754944e-38, %v851
    %v853 = vsel %vm850, %v852, %v848
    %v854 = vmul.f32 1.0, %v853
    %v855 = vadd.f32 %v804, %v72
    %v856 = vadd.f32 %v824, %v342
    %858 = vrot.lane.b32.xlu0 %v856, 96
    %v859 = vpop.permute.xlu0 %858
    %v861 = vmul.f32 %v854, %v859
    %863 = vrot.lane.b32.xlu0 %v861, 64
    %v864 = vpop.permute.xlu0 %863
    %v866 = vadd.f32 %v855, %v864
    %v867 = vtanh.pop %v866
    %v868 = vsub.f32 1.0, %v854
    %870 = vrot.lane.b32.xlu0 %v867, 96
    %v871 = vpop.permute.xlu0 %870
    %v873 = vmul.f32 %v868, %v871
    %v874 = vmul.f32 %v854, %v617
    %v875 = vadd.f32 %v873, %v874
    %877 = vrot.lane.b32.xlu0 %v875, 96
    %v878 = vpop.permute.xlu0 %877
    %v879 = vsel %vm209, %v878, 0
    %881 = vmatpush.msra.mxu0 0.0
    %882 = vmatpush.msra.mxu0 0.0
    %883 = vmatpush.msra.mxu0 0.0
    %884 = vmatpush.msra.mxu0 0.0
    %885 = vmatpush.msra.mxu0 0.0
    %886 = vmatpush.msra.mxu0 0.0
    %887 = vmatpush.msra.mxu0 0.0
    %888 = vmatpush.msra.mxu0 0.0
    %889 = vmatpush.msra.mxu0 0.0
    %890 = vmatpush.msra.mxu0 0.0
    %891 = vmatpush.msra.mxu0 0.0
    %892 = vmatpush.msra.mxu0 0.0
    %893 = vmatpush.msra.mxu0 %v81
    %894 = vmatpush.msra.mxu0 %v80
    %895 = vmatpush.msra.mxu0 %v79
    %896 = vmatpush.msra.mxu0 %v78
    %897 = vmatmul.f32.gmra.mxu0 %v879
    %v898 = vpop.f32.mrf.mxu0
    %v899 = vadd.f32 %v146, %v898
    %900 = vdwg.mxu0
    %v901 = vsel %vm389, %v899, -inf
    %902 = vmax.xlane.f32.xlu0 %v901
    %v903 = vpop.xlane.xlu0 %902
    %vm904 = vcmp.ge.f32.partialorder %v899, %v903
    %v905 = vsel %vm904, %v149, 16
    %v906 = vsel %vm389, %v905, 2147483647
    %v907 = vand.u32 %v906, 65535
    %v908 = vshra.s32 %v906, 16
    %v909 = vcvt.s32.f32 %v907
    %v910 = vcvt.s32.f32 %v908
    %911 = vmin.xlane.f32.xlu0 %v910
    %v912 = vpop.xlane.xlu0 %911
    %vm913 = vcmp.eq.f32.partialorder %v910, %v912
    %v914 = vsel %vm913, %v909, inf
    %915 = vmin.xlane.f32.xlu0 %v914
    %v916 = vpop.xlane.xlu0 %915
    %v917 = vcvt.f32.s32 %v916
    %v918 = vcvt.f32.s32 %v912
    %v919 = vshll.u32 %v918, 16
    %v920 = vadd.s32 %v919, %v917
    %vm921 = vcmp.eq.s32.totalorder %v149, %v920
    %v922 = vsel %vm921, 1, 0
    %v923 = vcvt.s32.f32 %v922
    %v924 = vsub.f32 %v899, %v903
    %v925 = vmul.f32 %v924, 1.442695
    %v926 = vpow.pop %v925
    %v927 = vsel %vm389, %v926, 0.0
    %928 = vadd.xlane.f32.xlu0 %v927
    %v929 = vpop.xlane.xlu0 %928
    %v930 = vlog2.pop %v929
    %v931 = vmul.f32 %v930, 0.6931472
    %v932 = vsub.f32 %v924, %v931
    %934 = vrot.lane.b32.xlu0 %v932, 32
    %v935 = vpop.permute.xlu0 %934
    %vm937 = vcmask 386304
    %938 = vst.msk [vmem:[#allocation7] sm:$0x3] %vm937, %v935
    %939 = vrot.lane.b32.xlu0 %v777, 112
    %v940 = vpop.permute.xlu0 %939
    %v942 = vsel %vm157, %v923, %v940
    %v944 = vsel %vm159, %v942, 0
    %946 = vmatpush.msra.mxu0 0.0
    %947 = vmatpush.msra.mxu0 0.0
    %948 = vmatpush.msra.mxu0 0.0
    %949 = vmatpush.msra.mxu0 0.0
    %950 = vmatpush.msra.mxu0 0.0
    %951 = vmatpush.msra.mxu0 0.0
    %952 = vmatpush.msra.mxu0 0.0
    %953 = vmatpush.msra.mxu0 0.0
    %954 = vmatpush.msra.mxu0 0.0
    %955 = vmatpush.msra.mxu0 0.0
    %956 = vmatpush.msra.mxu0 %v52
    %957 = vmatpush.msra.mxu0 %v50
    %958 = vmatpush.msra.mxu0 %v48
    %959 = vmatpush.msra.mxu0 %v46
    %960 = vmatpush.msra.mxu0 %v44
    %961 = vmatpush.msra.mxu0 %v42
    %962 = vmatmul.f32.gmra.mxu0 %v944
    %v963 = vpop.f32.mrf.mxu0
    %v964 = vadd.f32 0.0, %v963
    %965 = vdwg.mxu0
    %966 = vmatpush.msra.mxu0 0.0
    %967 = vmatpush.msra.mxu0 0.0
    %968 = vmatpush.msra.mxu0 0.0
    %969 = vmatpush.msra.mxu0 0.0
    %970 = vmatpush.msra.mxu0 0.0
    %971 = vmatpush.msra.mxu0 0.0
    %972 = vmatpush.msra.mxu0 0.0
    %973 = vmatpush.msra.mxu0 0.0
    %974 = vmatpush.msra.mxu0 0.0
    %975 = vmatpush.msra.mxu0 0.0
    %976 = vmatpush.msra.mxu0 %v53
    %977 = vmatpush.msra.mxu0 %v51
    %978 = vmatpush.msra.mxu0 %v49
    %979 = vmatpush.msra.mxu0 %v47
    %980 = vmatpush.msra.mxu0 %v45
    %981 = vmatpush.msra.mxu0 %v43
    %982 = vmatmul.f32.gmra.mxu0 %v944
    %v983 = vpop.f32.mrf.mxu0
    %v984 = vadd.f32 0.0, %v983
    %985 = vdwg.mxu0
    %988 = vrot.lane.b32.xlu0 %v964, 32
    %v989 = vpop.permute.xlu0 %988
    %990 = vrot.lane.b32.xlu0 %v984, 32
    %v991 = vpop.permute.xlu0 %990
    %v992 = vsel %vm209, %v989, %v991
    %v994 = vadd.f32 %v964, %v992
    %v995 = vadd.f32 %v994, %v126
    %v996 = vxor.u32 %v995, 2147483648
    %v997 = vmul.f32 %v996, 1.442695
    %v998 = vpow.pop %v997
    %v999 = vadd.f32 %v998, 1.0
    %v1000 = vrcp.pop %v999
    %v1001 = vmul.f32 %v999, %v1000
    %v1002 = vsub.f32 1.0, %v1001
    %v1003 = vmul.f32 %v1000, %v1002
    %v1004 = vadd.f32 %v1000, %v1003
    %vm1005 = vweird.f32 %v999
    %vm1006 = vweird.f32 %v1000
    %vm1007 = vmor %vm1005, %vm1006
    %v1008 = vsel %vm1007, %v1000, %v1004
    %v1009 = vand.u32 2147483647, %v999
    %vm1010 = vcmp.eq.f32.partialorder %v1009, 8.507059e+37
    %v1011 = vand.u32 %v999, 2147483648
    %v1012 = vor.u32 1.1754944e-38, %v1011
    %v1013 = vsel %vm1010, %v1012, %v1008
    %v1014 = vmul.f32 1.0, %v1013
    %v1015 = vadd.f32 %v964, %v126
    %v1016 = vadd.f32 %v984, %v236
    %1018 = vrot.lane.b32.xlu0 %v1016, 96
    %v1019 = vpop.permute.xlu0 %1018
    %v1021 = vmul.f32 %v1014, %v1019
    %1023 = vrot.lane.b32.xlu0 %v1021, 64
    %v1024 = vpop.permute.xlu0 %1023
    %v1026 = vadd.f32 %v1015, %v1024
    %v1027 = vtanh.pop %v1026
    %v1028 = vsub.f32 1.0, %v1014
    %1030 = vrot.lane.b32.xlu0 %v1027, 96
    %v1031 = vpop.permute.xlu0 %1030
    %v1033 = vmul.f32 %v1028, %v1031
    %v1034 = vmul.f32 %v1014, %v777
    %v1035 = vadd.f32 %v1033, %v1034
    %1037 = vrot.lane.b32.xlu0 %v1035, 96
    %v1038 = vpop.permute.xlu0 %1037
    %v1040 = vsel %vm209, %v1038, %v875
    %v1042 = vsel %vm266, %v1040, 0
    %1044 = vmatpush.msra.mxu0 0.0
    %1045 = vmatpush.msra.mxu0 0.0
    %1046 = vmatpush.msra.mxu0 0.0
    %1047 = vmatpush.msra.mxu0 0.0
    %1048 = vmatpush.msra.mxu0 0.0
    %1049 = vmatpush.msra.mxu0 0.0
    %1050 = vmatpush.msra.mxu0 0.0
    %1051 = vmatpush.msra.mxu0 0.0
    %1052 = vmatpush.msra.mxu0 %v68
    %1053 = vmatpush.msra.mxu0 %v66
    %1054 = vmatpush.msra.mxu0 %v64
    %1055 = vmatpush.msra.mxu0 %v62
    %1056 = vmatpush.msra.mxu0 %v60
    %1057 = vmatpush.msra.mxu0 %v58
    %1058 = vmatpush.msra.mxu0 %v56
    %1059 = vmatpush.msra.mxu0 %v54
    %1060 = vmatmul.f32.gmra.mxu0 %v1042
    %v1061 = vpop.f32.mrf.mxu0
    %v1062 = vadd.f32 0.0, %v1061
    %1063 = vdwg.mxu0
    %1064 = vmatpush.msra.mxu0 0.0
    %1065 = vmatpush.msra.mxu0 0.0
    %1066 = vmatpush.msra.mxu0 0.0
    %1067 = vmatpush.msra.mxu0 0.0
    %1068 = vmatpush.msra.mxu0 0.0
    %1069 = vmatpush.msra.mxu0 0.0
    %1070 = vmatpush.msra.mxu0 0.0
    %1071 = vmatpush.msra.mxu0 0.0
    %1072 = vmatpush.msra.mxu0 %v69
    %1073 = vmatpush.msra.mxu0 %v67
    %1074 = vmatpush.msra.mxu0 %v65
    %1075 = vmatpush.msra.mxu0 %v63
    %1076 = vmatpush.msra.mxu0 %v61
    %1077 = vmatpush.msra.mxu0 %v59
    %1078 = vmatpush.msra.mxu0 %v57
    %1079 = vmatpush.msra.mxu0 %v55
    %1080 = vmatmul.f32.gmra.mxu0 %v1042
    %v1081 = vpop.f32.mrf.mxu0
    %v1082 = vadd.f32 0.0, %v1081
    %1083 = vdwg.mxu0
    %1086 = vrot.lane.b32.xlu0 %v1062, 32
    %v1087 = vpop.permute.xlu0 %1086
    %1088 = vrot.lane.b32.xlu0 %v1082, 32
    %v1089 = vpop.permute.xlu0 %1088
    %v1090 = vsel %vm209, %v1087, %v1089
    %v1092 = vadd.f32 %v1062, %v1090
    %v1093 = vadd.f32 %v1092, %v72
    %v1094 = vxor.u32 %v1093, 2147483648
    %v1095 = vmul.f32 %v1094, 1.442695
    %v1096 = vpow.pop %v1095
    %v1097 = vadd.f32 %v1096, 1.0
    %v1098 = vrcp.pop %v1097
    %v1099 = vmul.f32 %v1097, %v1098
    %v1100 = vsub.f32 1.0, %v1099
    %v1101 = vmul.f32 %v1098, %v1100
    %v1102 = vadd.f32 %v1098, %v1101
    %vm1103 = vweird.f32 %v1097
    %vm1104 = vweird.f32 %v1098
    %vm1105 = vmor %vm1103, %vm1104
    %v1106 = vsel %vm1105, %v1098, %v1102
    %v1107 = vand.u32 2147483647, %v1097
    %vm1108 = vcmp.eq.f32.partialorder %v1107, 8.507059e+37
    %v1109 = vand.u32 %v1097, 2147483648
    %v1110 = vor.u32 1.1754944e-38, %v1109
    %v1111 = vsel %vm1108, %v1110, %v1106
    %v1112 = vmul.f32 1.0, %v1111
    %v1113 = vadd.f32 %v1062, %v72
    %v1114 = vadd.f32 %v1082, %v342
    %1116 = vrot.lane.b32.xlu0 %v1114, 96
    %v1117 = vpop.permute.xlu0 %1116
    %v1119 = vmul.f32 %v1112, %v1117
    %1121 = vrot.lane.b32.xlu0 %v1119, 64
    %v1122 = vpop.permute.xlu0 %1121
    %v1124 = vadd.f32 %v1113, %v1122
    %v1125 = vtanh.pop %v1124
    %v1126 = vsub.f32 1.0, %v1112
    %1128 = vrot.lane.b32.xlu0 %v1125, 96
    %v1129 = vpop.permute.xlu0 %1128
    %v1131 = vmul.f32 %v1126, %v1129
    %v1132 = vmul.f32 %v1112, %v875
    %v1133 = vadd.f32 %v1131, %v1132
    %1135 = vrot.lane.b32.xlu0 %v1133, 96
    %v1136 = vpop.permute.xlu0 %1135
    %v1137 = vsel %vm209, %v1136, 0
    %1139 = vmatpush.msra.mxu0 0.0
    %1140 = vmatpush.msra.mxu0 0.0
    %1141 = vmatpush.msra.mxu0 0.0
    %1142 = vmatpush.msra.mxu0 0.0
    %1143 = vmatpush.msra.mxu0 0.0
    %1144 = vmatpush.msra.mxu0 0.0
    %1145 = vmatpush.msra.mxu0 0.0
    %1146 = vmatpush.msra.mxu0 0.0
    %1147 = vmatpush.msra.mxu0 0.0
    %1148 = vmatpush.msra.mxu0 0.0
    %1149 = vmatpush.msra.mxu0 0.0
    %1150 = vmatpush.msra.mxu0 0.0
    %1151 = vmatpush.msra.mxu0 %v81
    %1152 = vmatpush.msra.mxu0 %v80
    %1153 = vmatpush.msra.mxu0 %v79
    %1154 = vmatpush.msra.mxu0 %v78
    %1155 = vmatmul.f32.gmra.mxu0 %v1137
    %v1156 = vpop.f32.mrf.mxu0
    %v1157 = vadd.f32 %v146, %v1156
    %1158 = vdwg.mxu0
    %v1159 = vsel %vm389, %v1157, -inf
    %1160 = vmax.xlane.f32.xlu0 %v1159
    %v1161 = vpop.xlane.xlu0 %1160
    %vm1162 = vcmp.ge.f32.partialorder %v1157, %v1161
    %v1163 = vsel %vm1162, %v149, 16
    %v1164 = vsel %vm389, %v1163, 2147483647
    %v1165 = vand.u32 %v1164, 65535
    %v1166 = vshra.s32 %v1164, 16
    %v1167 = vcvt.s32.f32 %v1165
    %v1168 = vcvt.s32.f32 %v1166
    %1169 = vmin.xlane.f32.xlu0 %v1168
    %v1170 = vpop.xlane.xlu0 %1169
    %vm1171 = vcmp.eq.f32.partialorder %v1168, %v1170
    %v1172 = vsel %vm1171, %v1167, inf
    %1173 = vmin.xlane.f32.xlu0 %v1172
    %v1174 = vpop.xlane.xlu0 %1173
    %v1175 = vcvt.f32.s32 %v1174
    %v1176 = vcvt.f32.s32 %v1170
    %v1177 = vshll.u32 %v1176, 16
    %v1178 = vadd.s32 %v1177, %v1175
    %vm1179 = vcmp.eq.s32.totalorder %v149, %v1178
    %v1180 = vsel %vm1179, 1, 0
    %v1181 = vcvt.s32.f32 %v1180
    %v1182 = vsub.f32 %v1157, %v1161
    %v1183 = vmul.f32 %v1182, 1.442695
    %v1184 = vpow.pop %v1183
    %v1185 = vsel %vm389, %v1184, 0.0
    %1186 = vadd.xlane.f32.xlu0 %v1185
    %v1187 = vpop.xlane.xlu0 %1186
    %v1188 = vlog2.pop %v1187
    %v1189 = vmul.f32 %v1188, 0.6931472
    %v1190 = vsub.f32 %v1182, %v1189
    %1192 = vrot.lane.b32.xlu0 %v1190, 48
    %v1193 = vpop.permute.xlu0 %1192
    %vm1195 = vcmask 517504
    %1196 = vst.msk [vmem:[#allocation7] sm:$0x3] %vm1195, %v1193
    %1197 = vrot.lane.b32.xlu0 %v1035, 112
    %v1198 = vpop.permute.xlu0 %1197
    %v1200 = vsel %vm157, %v1181, %v1198
    %v1202 = vsel %vm159, %v1200, 0
    %1204 = vmatpush.msra.mxu0 0.0
    %1205 = vmatpush.msra.mxu0 0.0
    %1206 = vmatpush.msra.mxu0 0.0
    %1207 = vmatpush.msra.mxu0 0.0
    %1208 = vmatpush.msra.mxu0 0.0
    %1209 = vmatpush.msra.mxu0 0.0
    %1210 = vmatpush.msra.mxu0 0.0
    %1211 = vmatpush.msra.mxu0 0.0
    %1212 = vmatpush.msra.mxu0 0.0
    %1213 = vmatpush.msra.mxu0 0.0
    %1214 = vmatpush.msra.mxu0 %v52
    %1215 = vmatpush.msra.mxu0 %v50
    %1216 = vmatpush.msra.mxu0 %v48
    %1217 = vmatpush.msra.mxu0 %v46
    %1218 = vmatpush.msra.mxu0 %v44
    %1219 = vmatpush.msra.mxu0 %v42
    %1220 = vmatmul.f32.gmra.mxu0 %v1202
    %v1221 = vpop.f32.mrf.mxu0
    %v1222 = vadd.f32 0.0, %v1221
    %1223 = vdwg.mxu0
    %1224 = vmatpush.msra.mxu0 0.0
    %1225 = vmatpush.msra.mxu0 0.0
    %1226 = vmatpush.msra.mxu0 0.0
    %1227 = vmatpush.msra.mxu0 0.0
    %1228 = vmatpush.msra.mxu0 0.0
    %1229 = vmatpush.msra.mxu0 0.0
    %1230 = vmatpush.msra.mxu0 0.0
    %1231 = vmatpush.msra.mxu0 0.0
    %1232 = vmatpush.msra.mxu0 0.0
    %1233 = vmatpush.msra.mxu0 0.0
    %1234 = vmatpush.msra.mxu0 %v53
    %1235 = vmatpush.msra.mxu0 %v51
    %1236 = vmatpush.msra.mxu0 %v49
    %1237 = vmatpush.msra.mxu0 %v47
    %1238 = vmatpush.msra.mxu0 %v45
    %1239 = vmatpush.msra.mxu0 %v43
    %1240 = vmatmul.f32.gmra.mxu0 %v1202
    %v1241 = vpop.f32.mrf.mxu0
    %v1242 = vadd.f32 0.0, %v1241
    %1243 = vdwg.mxu0
    %1246 = vrot.lane.b32.xlu0 %v1222, 32
    %v1247 = vpop.permute.xlu0 %1246
    %1248 = vrot.lane.b32.xlu0 %v1242, 32
    %v1249 = vpop.permute.xlu0 %1248
    %v1250 = vsel %vm209, %v1247, %v1249
    %v1252 = vadd.f32 %v1222, %v1250
    %v1253 = vadd.f32 %v1252, %v126
    %v1254 = vxor.u32 %v1253, 2147483648
    %v1255 = vmul.f32 %v1254, 1.442695
    %v1256 = vpow.pop %v1255
    %v1257 = vadd.f32 %v1256, 1.0
    %v1258 = vrcp.pop %v1257
    %v1259 = vmul.f32 %v1257, %v1258
    %v1260 = vsub.f32 1.0, %v1259
    %v1261 = vmul.f32 %v1258, %v1260
    %v1262 = vadd.f32 %v1258, %v1261
    %vm1263 = vweird.f32 %v1257
    %vm1264 = vweird.f32 %v1258
    %vm1265 = vmor %vm1263, %vm1264
    %v1266 = vsel %vm1265, %v1258, %v1262
    %v1267 = vand.u32 2147483647, %v1257
    %vm1268 = vcmp.eq.f32.partialorder %v1267, 8.507059e+37
    %v1269 = vand.u32 %v1257, 2147483648
    %v1270 = vor.u32 1.1754944e-38, %v1269
    %v1271 = vsel %vm1268, %v1270, %v1266
    %v1272 = vmul.f32 1.0, %v1271
    %v1273 = vadd.f32 %v1222, %v126
    %v1274 = vadd.f32 %v1242, %v236
    %1276 = vrot.lane.b32.xlu0 %v1274, 96
    %v1277 = vpop.permute.xlu0 %1276
    %v1279 = vmul.f32 %v1272, %v1277
    %1281 = vrot.lane.b32.xlu0 %v1279, 64
    %v1282 = vpop.permute.xlu0 %1281
    %v1284 = vadd.f32 %v1273, %v1282
    %v1285 = vtanh.pop %v1284
    %v1286 = vsub.f32 1.0, %v1272
    %1288 = vrot.lane.b32.xlu0 %v1285, 96
    %v1289 = vpop.permute.xlu0 %1288
    %v1291 = vmul.f32 %v1286, %v1289
    %v1292 = vmul.f32 %v1272, %v1035
    %v1293 = vadd.f32 %v1291, %v1292
    %1295 = vrot.lane.b32.xlu0 %v1293, 96
    %v1296 = vpop.permute.xlu0 %1295
    %v1298 = vsel %vm209, %v1296, %v1133
    %v1300 = vsel %vm266, %v1298, 0
    %1302 = vmatpush.msra.mxu0 0.0
    %1303 = vmatpush.msra.mxu0 0.0
    %1304 = vmatpush.msra.mxu0 0.0
    %1305 = vmatpush.msra.mxu0 0.0
    %1306 = vmatpush.msra.mxu0 0.0
    %1307 = vmatpush.msra.mxu0 0.0
    %1308 = vmatpush.msra.mxu0 0.0
    %1309 = vmatpush.msra.mxu0 0.0
    %1310 = vmatpush.msra.mxu0 %v68
    %1311 = vmatpush.msra.mxu0 %v66
    %1312 = vmatpush.msra.mxu0 %v64
    %1313 = vmatpush.msra.mxu0 %v62
    %1314 = vmatpush.msra.mxu0 %v60
    %1315 = vmatpush.msra.mxu0 %v58
    %1316 = vmatpush.msra.mxu0 %v56
    %1317 = vmatpush.msra.mxu0 %v54
    %1318 = vmatmul.f32.gmra.mxu0 %v1300
    %v1319 = vpop.f32.mrf.mxu0
    %v1320 = vadd.f32 0.0, %v1319
    %1321 = vdwg.mxu0
    %1322 = vmatpush.msra.mxu0 0.0
    %1323 = vmatpush.msra.mxu0 0.0
    %1324 = vmatpush.msra.mxu0 0.0
    %1325 = vmatpush.msra.mxu0 0.0
    %1326 = vmatpush.msra.mxu0 0.0
    %1327 = vmatpush.msra.mxu0 0.0
    %1328 = vmatpush.msra.mxu0 0.0
    %1329 = vmatpush.msra.mxu0 0.0
    %1330 = vmatpush.msra.mxu0 %v69
    %1331 = vmatpush.msra.mxu0 %v67
    %1332 = vmatpush.msra.mxu0 %v65
    %1333 = vmatpush.msra.mxu0 %v63
    %1334 = vmatpush.msra.mxu0 %v61
    %1335 = vmatpush.msra.mxu0 %v59
    %1336 = vmatpush.msra.mxu0 %v57
    %1337 = vmatpush.msra.mxu0 %v55
    %1338 = vmatmul.f32.gmra.mxu0 %v1300
    %v1339 = vpop.f32.mrf.mxu0
    %v1340 = vadd.f32 0.0, %v1339
    %1341 = vdwg.mxu0
    %1344 = vrot.lane.b32.xlu0 %v1320, 32
    %v1345 = vpop.permute.xlu0 %1344
    %1346 = vrot.lane.b32.xlu0 %v1340, 32
    %v1347 = vpop.permute.xlu0 %1346
    %v1348 = vsel %vm209, %v1345, %v1347
    %v1350 = vadd.f32 %v1320, %v1348
    %v1351 = vadd.f32 %v1350, %v72
    %v1352 = vxor.u32 %v1351, 2147483648
    %v1353 = vmul.f32 %v1352, 1.442695
    %v1354 = vpow.pop %v1353
    %v1355 = vadd.f32 %v1354, 1.0
    %v1356 = vrcp.pop %v1355
    %v1357 = vmul.f32 %v1355, %v1356
    %v1358 = vsub.f32 1.0, %v1357
    %v1359 = vmul.f32 %v1356, %v1358
    %v1360 = vadd.f32 %v1356, %v1359
    %vm1361 = vweird.f32 %v1355
    %vm1362 = vweird.f32 %v1356
    %vm1363 = vmor %vm1361, %vm1362
    %v1364 = vsel %vm1363, %v1356, %v1360
    %v1365 = vand.u32 2147483647, %v1355
    %vm1366 = vcmp.eq.f32.partialorder %v1365, 8.507059e+37
    %v1367 = vand.u32 %v1355, 2147483648
    %v1368 = vor.u32 1.1754944e-38, %v1367
    %v1369 = vsel %vm1366, %v1368, %v1364
    %v1370 = vmul.f32 1.0, %v1369
    %v1371 = vadd.f32 %v1320, %v72
    %v1372 = vadd.f32 %v1340, %v342
    %1374 = vrot.lane.b32.xlu0 %v1372, 96
    %v1375 = vpop.permute.xlu0 %1374
    %v1377 = vmul.f32 %v1370, %v1375
    %1379 = vrot.lane.b32.xlu0 %v1377, 64
    %v1380 = vpop.permute.xlu0 %1379
    %v1382 = vadd.f32 %v1371, %v1380
    %v1383 = vtanh.pop %v1382
    %v1384 = vsub.f32 1.0, %v1370
    %1386 = vrot.lane.b32.xlu0 %v1383, 96
    %v1387 = vpop.permute.xlu0 %1386
    %v1389 = vmul.f32 %v1384, %v1387
    %v1390 = vmul.f32 %v1370, %v1133
    %v1391 = vadd.f32 %v1389, %v1390
    %1393 = vrot.lane.b32.xlu0 %v1391, 96
    %v1394 = vpop.permute.xlu0 %1393
    %v1395 = vsel %vm209, %v1394, 0
    %1397 = vmatpush.msra.mxu0 0.0
    %1398 = vmatpush.msra.mxu0 0.0
    %1399 = vmatpush.msra.mxu0 0.0
    %1400 = vmatpush.msra.mxu0 0.0
    %1401 = vmatpush.msra.mxu0 0.0
    %1402 = vmatpush.msra.mxu0 0.0
    %1403 = vmatpush.msra.mxu0 0.0
    %1404 = vmatpush.msra.mxu0 0.0
    %1405 = vmatpush.msra.mxu0 0.0
    %1406 = vmatpush.msra.mxu0 0.0
    %1407 = vmatpush.msra.mxu0 0.0
    %1408 = vmatpush.msra.mxu0 0.0
    %1409 = vmatpush.msra.mxu0 %v81
    %1410 = vmatpush.msra.mxu0 %v80
    %1411 = vmatpush.msra.mxu0 %v79
    %1412 = vmatpush.msra.mxu0 %v78
    %1413 = vmatmul.f32.gmra.mxu0 %v1395
    %v1414 = vpop.f32.mrf.mxu0
    %v1415 = vadd.f32 %v146, %v1414
    %1416 = vdwg.mxu0
    %v1417 = vsel %vm389, %v1415, -inf
    %1418 = vmax.xlane.f32.xlu0 %v1417
    %v1419 = vpop.xlane.xlu0 %1418
    %vm1420 = vcmp.ge.f32.partialorder %v1415, %v1419
    %v1421 = vsel %vm1420, %v149, 16
    %v1422 = vsel %vm389, %v1421, 2147483647
    %v1423 = vand.u32 %v1422, 65535
    %v1424 = vshra.s32 %v1422, 16
    %v1425 = vcvt.s32.f32 %v1423
    %v1426 = vcvt.s32.f32 %v1424
    %1427 = vmin.xlane.f32.xlu0 %v1426
    %v1428 = vpop.xlane.xlu0 %1427
    %vm1429 = vcmp.eq.f32.partialorder %v1426, %v1428
    %v1430 = vsel %vm1429, %v1425, inf
    %1431 = vmin.xlane.f32.xlu0 %v1430
    %v1432 = vpop.xlane.xlu0 %1431
    %v1433 = vcvt.f32.s32 %v1432
    %v1434 = vcvt.f32.s32 %v1428
    %v1435 = vshll.u32 %v1434, 16
    %v1436 = vadd.s32 %v1435, %v1433
    %vm1437 = vcmp.eq.s32.totalorder %v149, %v1436
    %v1438 = vsel %vm1437, 1, 0
    %v1439 = vcvt.s32.f32 %v1438
    %v1440 = vsub.f32 %v1415, %v1419
    %v1441 = vmul.f32 %v1440, 1.442695
    %v1442 = vpow.pop %v1441
    %v1443 = vsel %vm389, %v1442, 0.0
    %1444 = vadd.xlane.f32.xlu0 %v1443
    %v1445 = vpop.xlane.xlu0 %1444
    %v1446 = vlog2.pop %v1445
    %v1447 = vmul.f32 %v1446, 0.6931472
    %v1448 = vsub.f32 %v1440, %v1447
    %1450 = vrot.lane.b32.xlu0 %v1448, 64
    %v1451 = vpop.permute.xlu0 %1450
    %vm1453 = vcmask 648704
    %1454 = vst.msk [vmem:[#allocation7] sm:$0x3] %vm1453, %v1451
    %1455 = vrot.lane.b32.xlu0 %v1293, 112
    %v1456 = vpop.permute.xlu0 %1455
    %v1458 = vsel %vm157, %v1439, %v1456
    %v1460 = vsel %vm159, %v1458, 0
    %1462 = vmatpush.msra.mxu0 0.0
    %1463 = vmatpush.msra.mxu0 0.0
    %1464 = vmatpush.msra.mxu0 0.0
    %1465 = vmatpush.msra.mxu0 0.0
    %1466 = vmatpush.msra.mxu0 0.0
    %1467 = vmatpush.msra.mxu0 0.0
    %1468 = vmatpush.msra.mxu0 0.0
    %1469 = vmatpush.msra.mxu0 0.0
    %1470 = vmatpush.msra.mxu0 0.0
    %1471 = vmatpush.msra.mxu0 0.0
    %1472 = vmatpush.msra.mxu0 %v52
    %1473 = vmatpush.msra.mxu0 %v50
    %1474 = vmatpush.msra.mxu0 %v48
    %1475 = vmatpush.msra.mxu0 %v46
    %1476 = vmatpush.msra.mxu0 %v44
    %1477 = vmatpush.msra.mxu0 %v42
    %1478 = vmatmul.f32.gmra.mxu0 %v1460
    %v1479 = vpop.f32.mrf.mxu0
    %v1480 = vadd.f32 0.0, %v1479
    %1481 = vdwg.mxu0
    %1482 = vmatpush.msra.mxu0 0.0
    %1483 = vmatpush.msra.mxu0 0.0
    %1484 = vmatpush.msra.mxu0 0.0
    %1485 = vmatpush.msra.mxu0 0.0
    %1486 = vmatpush.msra.mxu0 0.0
    %1487 = vmatpush.msra.mxu0 0.0
    %1488 = vmatpush.msra.mxu0 0.0
    %1489 = vmatpush.msra.mxu0 0.0
    %1490 = vmatpush.msra.mxu0 0.0
    %1491 = vmatpush.msra.mxu0 0.0
    %1492 = vmatpush.msra.mxu0 %v53
    %1493 = vmatpush.msra.mxu0 %v51
    %1494 = vmatpush.msra.mxu0 %v49
    %1495 = vmatpush.msra.mxu0 %v47
    %1496 = vmatpush.msra.mxu0 %v45
    %1497 = vmatpush.msra.mxu0 %v43
    %1498 = vmatmul.f32.gmra.mxu0 %v1460
    %v1499 = vpop.f32.mrf.mxu0
    %v1500 = vadd.f32 0.0, %v1499
    %1501 = vdwg.mxu0
    %1504 = vrot.lane.b32.xlu0 %v1480, 32
    %v1505 = vpop.permute.xlu0 %1504
    %1506 = vrot.lane.b32.xlu0 %v1500, 32
    %v1507 = vpop.permute.xlu0 %1506
    %v1508 = vsel %vm209, %v1505, %v1507
    %v1510 = vadd.f32 %v1480, %v1508
    %v1511 = vadd.f32 %v1510, %v126
    %v1512 = vxor.u32 %v1511, 2147483648
    %v1513 = vmul.f32 %v1512, 1.442695
    %v1514 = vpow.pop %v1513
    %v1515 = vadd.f32 %v1514, 1.0
    %v1516 = vrcp.pop %v1515
    %v1517 = vmul.f32 %v1515, %v1516
    %v1518 = vsub.f32 1.0, %v1517
    %v1519 = vmul.f32 %v1516, %v1518
    %v1520 = vadd.f32 %v1516, %v1519
    %vm1521 = vweird.f32 %v1515
    %vm1522 = vweird.f32 %v1516
    %vm1523 = vmor %vm1521, %vm1522
    %v1524 = vsel %vm1523, %v1516, %v1520
    %v1525 = vand.u32 2147483647, %v1515
    %vm1526 = vcmp.eq.f32.partialorder %v1525, 8.507059e+37
    %v1527 = vand.u32 %v1515, 2147483648
    %v1528 = vor.u32 1.1754944e-38, %v1527
    %v1529 = vsel %vm1526, %v1528, %v1524
    %v1530 = vmul.f32 1.0, %v1529
    %v1531 = vadd.f32 %v1480, %v126
    %v1532 = vadd.f32 %v1500, %v236
    %1534 = vrot.lane.b32.xlu0 %v1532, 96
    %v1535 = vpop.permute.xlu0 %1534
    %v1537 = vmul.f32 %v1530, %v1535
    %1539 = vrot.lane.b32.xlu0 %v1537, 64
    %v1540 = vpop.permute.xlu0 %1539
    %v1542 = vadd.f32 %v1531, %v1540
    %v1543 = vtanh.pop %v1542
    %v1544 = vsub.f32 1.0, %v1530
    %1546 = vrot.lane.b32.xlu0 %v1543, 96
    %v1547 = vpop.permute.xlu0 %1546
    %v1549 = vmul.f32 %v1544, %v1547
    %v1550 = vmul.f32 %v1530, %v1293
    %v1551 = vadd.f32 %v1549, %v1550
    %1553 = vrot.lane.b32.xlu0 %v1551, 96
    %v1554 = vpop.permute.xlu0 %1553
    %v1556 = vsel %vm209, %v1554, %v1391
    %v1558 = vsel %vm266, %v1556, 0
    %1560 = vmatpush.msra.mxu0 0.0
    %1561 = vmatpush.msra.mxu0 0.0
    %1562 = vmatpush.msra.mxu0 0.0
    %1563 = vmatpush.msra.mxu0 0.0
    %1564 = vmatpush.msra.mxu0 0.0
    %1565 = vmatpush.msra.mxu0 0.0
    %1566 = vmatpush.msra.mxu0 0.0
    %1567 = vmatpush.msra.mxu0 0.0
    %1568 = vmatpush.msra.mxu0 %v68
    %1569 = vmatpush.msra.mxu0 %v66
    %1570 = vmatpush.msra.mxu0 %v64
    %1571 = vmatpush.msra.mxu0 %v62
    %1572 = vmatpush.msra.mxu0 %v60
    %1573 = vmatpush.msra.mxu0 %v58
    %1574 = vmatpush.msra.mxu0 %v56
    %1575 = vmatpush.msra.mxu0 %v54
    %1576 = vmatmul.f32.gmra.mxu0 %v1558
    %v1577 = vpop.f32.mrf.mxu0
    %v1578 = vadd.f32 0.0, %v1577
    %1579 = vdwg.mxu0
    %1580 = vmatpush.msra.mxu0 0.0
    %1581 = vmatpush.msra.mxu0 0.0
    %1582 = vmatpush.msra.mxu0 0.0
    %1583 = vmatpush.msra.mxu0 0.0
    %1584 = vmatpush.msra.mxu0 0.0
    %1585 = vmatpush.msra.mxu0 0.0
    %1586 = vmatpush.msra.mxu0 0.0
    %1587 = vmatpush.msra.mxu0 0.0
    %1588 = vmatpush.msra.mxu0 %v69
    %1589 = vmatpush.msra.mxu0 %v67
    %1590 = vmatpush.msra.mxu0 %v65
    %1591 = vmatpush.msra.mxu0 %v63
    %1592 = vmatpush.msra.mxu0 %v61
    %1593 = vmatpush.msra.mxu0 %v59
    %1594 = vmatpush.msra.mxu0 %v57
    %1595 = vmatpush.msra.mxu0 %v55
    %1596 = vmatmul.f32.gmra.mxu0 %v1558
    %v1597 = vpop.f32.mrf.mxu0
    %v1598 = vadd.f32 0.0, %v1597
    %1599 = vdwg.mxu0
    %1602 = vrot.lane.b32.xlu0 %v1578, 32
    %v1603 = vpop.permute.xlu0 %1602
    %1604 = vrot.lane.b32.xlu0 %v1598, 32
    %v1605 = vpop.permute.xlu0 %1604
    %v1606 = vsel %vm209, %v1603, %v1605
    %v1608 = vadd.f32 %v1578, %v1606
    %v1609 = vadd.f32 %v1608, %v72
    %v1610 = vxor.u32 %v1609, 2147483648
    %v1611 = vmul.f32 %v1610, 1.442695
    %v1612 = vpow.pop %v1611
    %v1613 = vadd.f32 %v1612, 1.0
    %v1614 = vrcp.pop %v1613
    %v1615 = vmul.f32 %v1613, %v1614
    %v1616 = vsub.f32 1.0, %v1615
    %v1617 = vmul.f32 %v1614, %v1616
    %v1618 = vadd.f32 %v1614, %v1617
    %vm1619 = vweird.f32 %v1613
    %vm1620 = vweird.f32 %v1614
    %vm1621 = vmor %vm1619, %vm1620
    %v1622 = vsel %vm1621, %v1614, %v1618
    %v1623 = vand.u32 2147483647, %v1613
    %vm1624 = vcmp.eq.f32.partialorder %v1623, 8.507059e+37
    %v1625 = vand.u32 %v1613, 2147483648
    %v1626 = vor.u32 1.1754944e-38, %v1625
    %v1627 = vsel %vm1624, %v1626, %v1622
    %v1628 = vmul.f32 1.0, %v1627
    %v1629 = vadd.f32 %v1578, %v72
    %v1630 = vadd.f32 %v1598, %v342
    %1632 = vrot.lane.b32.xlu0 %v1630, 96
    %v1633 = vpop.permute.xlu0 %1632
    %v1635 = vmul.f32 %v1628, %v1633
    %1637 = vrot.lane.b32.xlu0 %v1635, 64
    %v1638 = vpop.permute.xlu0 %1637
    %v1640 = vadd.f32 %v1629, %v1638
    %v1641 = vtanh.pop %v1640
    %v1642 = vsub.f32 1.0, %v1628
    %1644 = vrot.lane.b32.xlu0 %v1641, 96
    %v1645 = vpop.permute.xlu0 %1644
    %v1647 = vmul.f32 %v1642, %v1645
    %v1648 = vmul.f32 %v1628, %v1391
    %v1649 = vadd.f32 %v1647, %v1648
    %1651 = vrot.lane.b32.xlu0 %v1649, 96
    %v1652 = vpop.permute.xlu0 %1651
    %v1653 = vsel %vm209, %v1652, 0
    %1655 = vmatpush.msra.mxu0 0.0
    %1656 = vmatpush.msra.mxu0 0.0
    %1657 = vmatpush.msra.mxu0 0.0
    %1658 = vmatpush.msra.mxu0 0.0
    %1659 = vmatpush.msra.mxu0 0.0
    %1660 = vmatpush.msra.mxu0 0.0
    %1661 = vmatpush.msra.mxu0 0.0
    %1662 = vmatpush.msra.mxu0 0.0
    %1663 = vmatpush.msra.mxu0 0.0
    %1664 = vmatpush.msra.mxu0 0.0
    %1665 = vmatpush.msra.mxu0 0.0
    %1666 = vmatpush.msra.mxu0 0.0
    %1667 = vmatpush.msra.mxu0 %v81
    %1668 = vmatpush.msra.mxu0 %v80
    %1669 = vmatpush.msra.mxu0 %v79
    %1670 = vmatpush.msra.mxu0 %v78
    %1671 = vmatmul.f32.gmra.mxu0 %v1653
    %v1672 = vpop.f32.mrf.mxu0
    %v1673 = vadd.f32 %v146, %v1672
    %1674 = vdwg.mxu0
    %v1675 = vsel %vm389, %v1673, -inf
    %1676 = vmax.xlane.f32.xlu0 %v1675
    %v1677 = vpop.xlane.xlu0 %1676
    %vm1678 = vcmp.ge.f32.partialorder %v1673, %v1677
    %v1679 = vsel %vm1678, %v149, 16
    %v1680 = vsel %vm389, %v1679, 2147483647
    %v1681 = vand.u32 %v1680, 65535
    %v1682 = vshra.s32 %v1680, 16
    %v1683 = vcvt.s32.f32 %v1681
    %v1684 = vcvt.s32.f32 %v1682
    %1685 = vmin.xlane.f32.xlu0 %v1684
    %v1686 = vpop.xlane.xlu0 %1685
    %vm1687 = vcmp.eq.f32.partialorder %v1684, %v1686
    %v1688 = vsel %vm1687, %v1683, inf
    %1689 = vmin.xlane.f32.xlu0 %v1688
    %v1690 = vpop.xlane.xlu0 %1689
    %v1691 = vcvt.f32.s32 %v1690
    %v1692 = vcvt.f32.s32 %v1686
    %v1693 = vshll.u32 %v1692, 16
    %v1694 = vadd.s32 %v1693, %v1691
    %vm1695 = vcmp.eq.s32.totalorder %v149, %v1694
    %v1696 = vsel %vm1695, 1, 0
    %v1697 = vcvt.s32.f32 %v1696
    %v1698 = vsub.f32 %v1673, %v1677
    %v1699 = vmul.f32 %v1698, 1.442695
    %v1700 = vpow.pop %v1699
    %v1701 = vsel %vm389, %v1700, 0.0
    %1702 = vadd.xlane.f32.xlu0 %v1701
    %v1703 = vpop.xlane.xlu0 %1702
    %v1704 = vlog2.pop %v1703
    %v1705 = vmul.f32 %v1704, 0.6931472
    %v1706 = vsub.f32 %v1698, %v1705
    %1708 = vrot.lane.b32.xlu0 %v1706, 80
    %v1709 = vpop.permute.xlu0 %1708
    %vm1711 = vcmask 779904
    %1712 = vst.msk [vmem:[#allocation7] sm:$0x3] %vm1711, %v1709
    %1713 = vrot.lane.b32.xlu0 %v1551, 112
    %v1714 = vpop.permute.xlu0 %1713
    %v1716 = vsel %vm157, %v1697, %v1714
    %v1718 = vsel %vm159, %v1716, 0
    %1720 = vmatpush.msra.mxu0 0.0
    %1721 = vmatpush.msra.mxu0 0.0
    %1722 = vmatpush.msra.mxu0 0.0
    %1723 = vmatpush.msra.mxu0 0.0
    %1724 = vmatpush.msra.mxu0 0.0
    %1725 = vmatpush.msra.mxu0 0.0
    %1726 = vmatpush.msra.mxu0 0.0
    %1727 = vmatpush.msra.mxu0 0.0
    %1728 = vmatpush.msra.mxu0 0.0
    %1729 = vmatpush.msra.mxu0 0.0
    %1730 = vmatpush.msra.mxu0 %v52
    %1731 = vmatpush.msra.mxu0 %v50
    %1732 = vmatpush.msra.mxu0 %v48
    %1733 = vmatpush.msra.mxu0 %v46
    %1734 = vmatpush.msra.mxu0 %v44
    %1735 = vmatpush.msra.mxu0 %v42
    %1736 = vmatmul.f32.gmra.mxu0 %v1718
    %v1737 = vpop.f32.mrf.mxu0
    %v1738 = vadd.f32 0.0, %v1737
    %1739 = vdwg.mxu0
    %1740 = vmatpush.msra.mxu0 0.0
    %1741 = vmatpush.msra.mxu0 0.0
    %1742 = vmatpush.msra.mxu0 0.0
    %1743 = vmatpush.msra.mxu0 0.0
    %1744 = vmatpush.msra.mxu0 0.0
    %1745 = vmatpush.msra.mxu0 0.0
    %1746 = vmatpush.msra.mxu0 0.0
    %1747 = vmatpush.msra.mxu0 0.0
    %1748 = vmatpush.msra.mxu0 0.0
    %1749 = vmatpush.msra.mxu0 0.0
    %1750 = vmatpush.msra.mxu0 %v53
    %1751 = vmatpush.msra.mxu0 %v51
    %1752 = vmatpush.msra.mxu0 %v49
    %1753 = vmatpush.msra.mxu0 %v47
    %1754 = vmatpush.msra.mxu0 %v45
    %1755 = vmatpush.msra.mxu0 %v43
    %1756 = vmatmul.f32.gmra.mxu0 %v1718
    %v1757 = vpop.f32.mrf.mxu0
    %v1758 = vadd.f32 0.0, %v1757
    %1759 = vdwg.mxu0
    %1762 = vrot.lane.b32.xlu0 %v1738, 32
    %v1763 = vpop.permute.xlu0 %1762
    %1764 = vrot.lane.b32.xlu0 %v1758, 32
    %v1765 = vpop.permute.xlu0 %1764
    %v1766 = vsel %vm209, %v1763, %v1765
    %v1768 = vadd.f32 %v1738, %v1766
    %v1769 = vadd.f32 %v1768, %v126
    %v1770 = vxor.u32 %v1769, 2147483648
    %v1771 = vmul.f32 %v1770, 1.442695
    %v1772 = vpow.pop %v1771
    %v1773 = vadd.f32 %v1772, 1.0
    %v1774 = vrcp.pop %v1773
    %v1775 = vmul.f32 %v1773, %v1774
    %v1776 = vsub.f32 1.0, %v1775
    %v1777 = vmul.f32 %v1774, %v1776
    %v1778 = vadd.f32 %v1774, %v1777
    %vm1779 = vweird.f32 %v1773
    %vm1780 = vweird.f32 %v1774
    %vm1781 = vmor %vm1779, %vm1780
    %v1782 = vsel %vm1781, %v1774, %v1778
    %v1783 = vand.u32 2147483647, %v1773
    %vm1784 = vcmp.eq.f32.partialorder %v1783, 8.507059e+37
    %v1785 = vand.u32 %v1773, 2147483648
    %v1786 = vor.u32 1.1754944e-38, %v1785
    %v1787 = vsel %vm1784, %v1786, %v1782
    %v1788 = vmul.f32 1.0, %v1787
    %v1789 = vadd.f32 %v1738, %v126
    %v1790 = vadd.f32 %v1758, %v236
    %1792 = vrot.lane.b32.xlu0 %v1790, 96
    %v1793 = vpop.permute.xlu0 %1792
    %v1795 = vmul.f32 %v1788, %v1793
    %1797 = vrot.lane.b32.xlu0 %v1795, 64
    %v1798 = vpop.permute.xlu0 %1797
    %v1800 = vadd.f32 %v1789, %v1798
    %v1801 = vtanh.pop %v1800
    %v1802 = vsub.f32 1.0, %v1788
    %1804 = vrot.lane.b32.xlu0 %v1801, 96
    %v1805 = vpop.permute.xlu0 %1804
    %v1807 = vmul.f32 %v1802, %v1805
    %v1808 = vmul.f32 %v1788, %v1551
    %v1809 = vadd.f32 %v1807, %v1808
    %1811 = vrot.lane.b32.xlu0 %v1809, 96
    %v1812 = vpop.permute.xlu0 %1811
    %v1814 = vsel %vm209, %v1812, %v1649
    %v1816 = vsel %vm266, %v1814, 0
    %1818 = vmatpush.msra.mxu0 0.0
    %1819 = vmatpush.msra.mxu0 0.0
    %1820 = vmatpush.msra.mxu0 0.0
    %1821 = vmatpush.msra.mxu0 0.0
    %1822 = vmatpush.msra.mxu0 0.0
    %1823 = vmatpush.msra.mxu0 0.0
    %1824 = vmatpush.msra.mxu0 0.0
    %1825 = vmatpush.msra.mxu0 0.0
    %1826 = vmatpush.msra.mxu0 %v68
    %1827 = vmatpush.msra.mxu0 %v66
    %1828 = vmatpush.msra.mxu0 %v64
    %1829 = vmatpush.msra.mxu0 %v62
    %1830 = vmatpush.msra.mxu0 %v60
    %1831 = vmatpush.msra.mxu0 %v58
    %1832 = vmatpush.msra.mxu0 %v56
    %1833 = vmatpush.msra.mxu0 %v54
    %1834 = vmatmul.f32.gmra.mxu0 %v1816
    %v1835 = vpop.f32.mrf.mxu0
    %v1836 = vadd.f32 0.0, %v1835
    %1837 = vdwg.mxu0
    %1838 = vmatpush.msra.mxu0 0.0
    %1839 = vmatpush.msra.mxu0 0.0
    %1840 = vmatpush.msra.mxu0 0.0
    %1841 = vmatpush.msra.mxu0 0.0
    %1842 = vmatpush.msra.mxu0 0.0
    %1843 = vmatpush.msra.mxu0 0.0
    %1844 = vmatpush.msra.mxu0 0.0
    %1845 = vmatpush.msra.mxu0 0.0
    %1846 = vmatpush.msra.mxu0 %v69
    %1847 = vmatpush.msra.mxu0 %v67
    %1848 = vmatpush.msra.mxu0 %v65
    %1849 = vmatpush.msra.mxu0 %v63
    %1850 = vmatpush.msra.mxu0 %v61
    %1851 = vmatpush.msra.mxu0 %v59
    %1852 = vmatpush.msra.mxu0 %v57
    %1853 = vmatpush.msra.mxu0 %v55
    %1854 = vmatmul.f32.gmra.mxu0 %v1816
    %v1855 = vpop.f32.mrf.mxu0
    %v1856 = vadd.f32 0.0, %v1855
    %1857 = vdwg.mxu0
    %1860 = vrot.lane.b32.xlu0 %v1836, 32
    %v1861 = vpop.permute.xlu0 %1860
    %1862 = vrot.lane.b32.xlu0 %v1856, 32
    %v1863 = vpop.permute.xlu0 %1862
    %v1864 = vsel %vm209, %v1861, %v1863
    %v1866 = vadd.f32 %v1836, %v1864
    %v1867 = vadd.f32 %v1866, %v72
    %v1868 = vxor.u32 %v1867, 2147483648
    %v1869 = vmul.f32 %v1868, 1.442695
    %v1870 = vpow.pop %v1869
    %v1871 = vadd.f32 %v1870, 1.0
    %v1872 = vrcp.pop %v1871
    %v1873 = vmul.f32 %v1871, %v1872
    %v1874 = vsub.f32 1.0, %v1873
    %v1875 = vmul.f32 %v1872, %v1874
    %v1876 = vadd.f32 %v1872, %v1875
    %vm1877 = vweird.f32 %v1871
    %vm1878 = vweird.f32 %v1872
    %vm1879 = vmor %vm1877, %vm1878
    %v1880 = vsel %vm1879, %v1872, %v1876
    %v1881 = vand.u32 2147483647, %v1871
    %vm1882 = vcmp.eq.f32.partialorder %v1881, 8.507059e+37
    %v1883 = vand.u32 %v1871, 2147483648
    %v1884 = vor.u32 1.1754944e-38, %v1883
    %v1885 = vsel %vm1882, %v1884, %v1880
    %v1886 = vmul.f32 1.0, %v1885
    %v1887 = vadd.f32 %v1836, %v72
    %v1888 = vadd.f32 %v1856, %v342
    %1890 = vrot.lane.b32.xlu0 %v1888, 96
    %v1891 = vpop.permute.xlu0 %1890
    %v1893 = vmul.f32 %v1886, %v1891
    %1895 = vrot.lane.b32.xlu0 %v1893, 64
    %v1896 = vpop.permute.xlu0 %1895
    %v1898 = vadd.f32 %v1887, %v1896
    %v1899 = vtanh.pop %v1898
    %v1900 = vsub.f32 1.0, %v1886
    %1902 = vrot.lane.b32.xlu0 %v1899, 96
    %v1903 = vpop.permute.xlu0 %1902
    %v1905 = vmul.f32 %v1900, %v1903
    %v1906 = vmul.f32 %v1886, %v1649
    %v1907 = vadd.f32 %v1905, %v1906
    %1909 = vrot.lane.b32.xlu0 %v1907, 96
    %v1910 = vpop.permute.xlu0 %1909
    %v1911 = vsel %vm209, %v1910, 0
    %1913 = vmatpush.msra.mxu0 0.0
    %1914 = vmatpush.msra.mxu0 0.0
    %1915 = vmatpush.msra.mxu0 0.0
    %1916 = vmatpush.msra.mxu0 0.0
    %1917 = vmatpush.msra.mxu0 0.0
    %1918 = vmatpush.msra.mxu0 0.0
    %1919 = vmatpush.msra.mxu0 0.0
    %1920 = vmatpush.msra.mxu0 0.0
    %1921 = vmatpush.msra.mxu0 0.0
    %1922 = vmatpush.msra.mxu0 0.0
    %1923 = vmatpush.msra.mxu0 0.0
    %1924 = vmatpush.msra.mxu0 0.0
    %1925 = vmatpush.msra.mxu0 %v81
    %1926 = vmatpush.msra.mxu0 %v80
    %1927 = vmatpush.msra.mxu0 %v79
    %1928 = vmatpush.msra.mxu0 %v78
    %1929 = vmatmul.f32.gmra.mxu0 %v1911
    %v1930 = vpop.f32.mrf.mxu0
    %v1931 = vadd.f32 %v146, %v1930
    %1932 = vdwg.mxu0
    %v1933 = vsel %vm389, %v1931, -inf
    %1934 = vmax.xlane.f32.xlu0 %v1933
    %v1935 = vpop.xlane.xlu0 %1934
    %vm1936 = vcmp.ge.f32.partialorder %v1931, %v1935
    %v1937 = vsel %vm1936, %v149, 16
    %v1938 = vsel %vm389, %v1937, 2147483647
    %v1939 = vand.u32 %v1938, 65535
    %v1940 = vshra.s32 %v1938, 16
    %v1941 = vcvt.s32.f32 %v1939
    %v1942 = vcvt.s32.f32 %v1940
    %1943 = vmin.xlane.f32.xlu0 %v1942
    %v1944 = vpop.xlane.xlu0 %1943
    %vm1945 = vcmp.eq.f32.partialorder %v1942, %v1944
    %v1946 = vsel %vm1945, %v1941, inf
    %1947 = vmin.xlane.f32.xlu0 %v1946
    %v1948 = vpop.xlane.xlu0 %1947
    %v1949 = vcvt.f32.s32 %v1948
    %v1950 = vcvt.f32.s32 %v1944
    %v1951 = vshll.u32 %v1950, 16
    %v1952 = vadd.s32 %v1951, %v1949
    %vm1953 = vcmp.eq.s32.totalorder %v149, %v1952
    %v1954 = vsel %vm1953, 1, 0
    %v1955 = vcvt.s32.f32 %v1954
    %v1956 = vsub.f32 %v1931, %v1935
    %v1957 = vmul.f32 %v1956, 1.442695
    %v1958 = vpow.pop %v1957
    %v1959 = vsel %vm389, %v1958, 0.0
    %1960 = vadd.xlane.f32.xlu0 %v1959
    %v1961 = vpop.xlane.xlu0 %1960
    %v1962 = vlog2.pop %v1961
    %v1963 = vmul.f32 %v1962, 0.6931472
    %v1964 = vsub.f32 %v1956, %v1963
    %1966 = vrot.lane.b32.xlu0 %v1964, 96
    %v1967 = vpop.permute.xlu0 %1966
    %vm1969 = vcmask 911104
    %1970 = vst.msk [vmem:[#allocation7] sm:$0x3] %vm1969, %v1967
    %1971 = vrot.lane.b32.xlu0 %v1809, 112
    %v1972 = vpop.permute.xlu0 %1971
    %v1974 = vsel %vm157, %v1955, %v1972
    %v1976 = vsel %vm159, %v1974, 0
    %1978 = vmatpush.msra.mxu0 0.0
    %1979 = vmatpush.msra.mxu0 0.0
    %1980 = vmatpush.msra.mxu0 0.0
    %1981 = vmatpush.msra.mxu0 0.0
    %1982 = vmatpush.msra.mxu0 0.0
    %1983 = vmatpush.msra.mxu0 0.0
    %1984 = vmatpush.msra.mxu0 0.0
    %1985 = vmatpush.msra.mxu0 0.0
    %1986 = vmatpush.msra.mxu0 0.0
    %1987 = vmatpush.msra.mxu0 0.0
    %1988 = vmatpush.msra.mxu0 %v52
    %1989 = vmatpush.msra.mxu0 %v50
    %1990 = vmatpush.msra.mxu0 %v48
    %1991 = vmatpush.msra.mxu0 %v46
    %1992 = vmatpush.msra.mxu0 %v44
    %1993 = vmatpush.msra.mxu0 %v42
    %1994 = vmatmul.f32.gmra.mxu0 %v1976
    %v1995 = vpop.f32.mrf.mxu0
    %v1996 = vadd.f32 0.0, %v1995
    %1997 = vdwg.mxu0
    %1998 = vmatpush.msra.mxu0 0.0
    %1999 = vmatpush.msra.mxu0 0.0
    %2000 = vmatpush.msra.mxu0 0.0
    %2001 = vmatpush.msra.mxu0 0.0
    %2002 = vmatpush.msra.mxu0 0.0
    %2003 = vmatpush.msra.mxu0 0.0
    %2004 = vmatpush.msra.mxu0 0.0
    %2005 = vmatpush.msra.mxu0 0.0
    %2006 = vmatpush.msra.mxu0 0.0
    %2007 = vmatpush.msra.mxu0 0.0
    %2008 = vmatpush.msra.mxu0 %v53
    %2009 = vmatpush.msra.mxu0 %v51
    %2010 = vmatpush.msra.mxu0 %v49
    %2011 = vmatpush.msra.mxu0 %v47
    %2012 = vmatpush.msra.mxu0 %v45
    %2013 = vmatpush.msra.mxu0 %v43
    %2014 = vmatmul.f32.gmra.mxu0 %v1976
    %v2015 = vpop.f32.mrf.mxu0
    %v2016 = vadd.f32 0.0, %v2015
    %2017 = vdwg.mxu0
    %2020 = vrot.lane.b32.xlu0 %v1996, 32
    %v2021 = vpop.permute.xlu0 %2020
    %2022 = vrot.lane.b32.xlu0 %v2016, 32
    %v2023 = vpop.permute.xlu0 %2022
    %v2024 = vsel %vm209, %v2021, %v2023
    %v2026 = vadd.f32 %v1996, %v2024
    %v2027 = vadd.f32 %v2026, %v126
    %v2028 = vxor.u32 %v2027, 2147483648
    %v2029 = vmul.f32 %v2028, 1.442695
    %v2030 = vpow.pop %v2029
    %v2031 = vadd.f32 %v2030, 1.0
    %v2032 = vrcp.pop %v2031
    %v2033 = vmul.f32 %v2031, %v2032
    %v2034 = vsub.f32 1.0, %v2033
    %v2035 = vmul.f32 %v2032, %v2034
    %v2036 = vadd.f32 %v2032, %v2035
    %vm2037 = vweird.f32 %v2031
    %vm2038 = vweird.f32 %v2032
    %vm2039 = vmor %vm2037, %vm2038
    %v2040 = vsel %vm2039, %v2032, %v2036
    %v2041 = vand.u32 2147483647, %v2031
    %vm2042 = vcmp.eq.f32.partialorder %v2041, 8.507059e+37
    %v2043 = vand.u32 %v2031, 2147483648
    %v2044 = vor.u32 1.1754944e-38, %v2043
    %v2045 = vsel %vm2042, %v2044, %v2040
    %v2046 = vmul.f32 1.0, %v2045
    %v2047 = vadd.f32 %v1996, %v126
    %v2048 = vadd.f32 %v2016, %v236
    %2050 = vrot.lane.b32.xlu0 %v2048, 96
    %v2051 = vpop.permute.xlu0 %2050
    %v2053 = vmul.f32 %v2046, %v2051
    %2055 = vrot.lane.b32.xlu0 %v2053, 64
    %v2056 = vpop.permute.xlu0 %2055
    %v2058 = vadd.f32 %v2047, %v2056
    %v2059 = vtanh.pop %v2058
    %v2060 = vsub.f32 1.0, %v2046
    %2062 = vrot.lane.b32.xlu0 %v2059, 96
    %v2063 = vpop.permute.xlu0 %2062
    %v2065 = vmul.f32 %v2060, %v2063
    %v2066 = vmul.f32 %v2046, %v1809
    %v2067 = vadd.f32 %v2065, %v2066
    %2069 = vrot.lane.b32.xlu0 %v2067, 96
    %v2070 = vpop.permute.xlu0 %2069
    %v2072 = vsel %vm209, %v2070, %v1907
    %v2074 = vsel %vm266, %v2072, 0
    %2076 = vmatpush.msra.mxu0 0.0
    %2077 = vmatpush.msra.mxu0 0.0
    %2078 = vmatpush.msra.mxu0 0.0
    %2079 = vmatpush.msra.mxu0 0.0
    %2080 = vmatpush.msra.mxu0 0.0
    %2081 = vmatpush.msra.mxu0 0.0
    %2082 = vmatpush.msra.mxu0 0.0
    %2083 = vmatpush.msra.mxu0 0.0
    %2084 = vmatpush.msra.mxu0 %v68
    %2085 = vmatpush.msra.mxu0 %v66
    %2086 = vmatpush.msra.mxu0 %v64
    %2087 = vmatpush.msra.mxu0 %v62
    %2088 = vmatpush.msra.mxu0 %v60
    %2089 = vmatpush.msra.mxu0 %v58
    %2090 = vmatpush.msra.mxu0 %v56
    %2091 = vmatpush.msra.mxu0 %v54
    %2092 = vmatmul.f32.gmra.mxu0 %v2074
    %v2093 = vpop.f32.mrf.mxu0
    %v2094 = vadd.f32 0.0, %v2093
    %2095 = vdwg.mxu0
    %2096 = vmatpush.msra.mxu0 0.0
    %2097 = vmatpush.msra.mxu0 0.0
    %2098 = vmatpush.msra.mxu0 0.0
    %2099 = vmatpush.msra.mxu0 0.0
    %2100 = vmatpush.msra.mxu0 0.0
    %2101 = vmatpush.msra.mxu0 0.0
    %2102 = vmatpush.msra.mxu0 0.0
    %2103 = vmatpush.msra.mxu0 0.0
    %2104 = vmatpush.msra.mxu0 %v69
    %2105 = vmatpush.msra.mxu0 %v67
    %2106 = vmatpush.msra.mxu0 %v65
    %2107 = vmatpush.msra.mxu0 %v63
    %2108 = vmatpush.msra.mxu0 %v61
    %2109 = vmatpush.msra.mxu0 %v59
    %2110 = vmatpush.msra.mxu0 %v57
    %2111 = vmatpush.msra.mxu0 %v55
    %2112 = vmatmul.f32.gmra.mxu0 %v2074
    %v2113 = vpop.f32.mrf.mxu0
    %v2114 = vadd.f32 0.0, %v2113
    %2115 = vdwg.mxu0
    %2118 = vrot.lane.b32.xlu0 %v2094, 32
    %v2119 = vpop.permute.xlu0 %2118
    %2120 = vrot.lane.b32.xlu0 %v2114, 32
    %v2121 = vpop.permute.xlu0 %2120
    %v2122 = vsel %vm209, %v2119, %v2121
    %v2124 = vadd.f32 %v2094, %v2122
    %v2125 = vadd.f32 %v2124, %v72
    %v2126 = vxor.u32 %v2125, 2147483648
    %v2127 = vmul.f32 %v2126, 1.442695
    %v2128 = vpow.pop %v2127
    %v2129 = vadd.f32 %v2128, 1.0
    %v2130 = vrcp.pop %v2129
    %v2131 = vmul.f32 %v2129, %v2130
    %v2132 = vsub.f32 1.0, %v2131
    %v2133 = vmul.f32 %v2130, %v2132
    %v2134 = vadd.f32 %v2130, %v2133
    %vm2135 = vweird.f32 %v2129
    %vm2136 = vweird.f32 %v2130
    %vm2137 = vmor %vm2135, %vm2136
    %v2138 = vsel %vm2137, %v2130, %v2134
    %v2139 = vand.u32 2147483647, %v2129
    %vm2140 = vcmp.eq.f32.partialorder %v2139, 8.507059e+37
    %v2141 = vand.u32 %v2129, 2147483648
    %v2142 = vor.u32 1.1754944e-38, %v2141
    %v2143 = vsel %vm2140, %v2142, %v2138
    %v2144 = vmul.f32 1.0, %v2143
    %v2145 = vadd.f32 %v2094, %v72
    %v2146 = vadd.f32 %v2114, %v342
    %2148 = vrot.lane.b32.xlu0 %v2146, 96
    %v2149 = vpop.permute.xlu0 %2148
    %v2151 = vmul.f32 %v2144, %v2149
    %2153 = vrot.lane.b32.xlu0 %v2151, 64
    %v2154 = vpop.permute.xlu0 %2153
    %v2156 = vadd.f32 %v2145, %v2154
    %v2157 = vtanh.pop %v2156
    %v2158 = vsub.f32 1.0, %v2144
    %2160 = vrot.lane.b32.xlu0 %v2157, 96
    %v2161 = vpop.permute.xlu0 %2160
    %v2163 = vmul.f32 %v2158, %v2161
    %v2164 = vmul.f32 %v2144, %v1907
    %v2165 = vadd.f32 %v2163, %v2164
    %2167 = vrot.lane.b32.xlu0 %v2165, 96
    %v2168 = vpop.permute.xlu0 %2167
    %v2169 = vsel %vm209, %v2168, 0
    %2171 = vmatpush.msra.mxu0 0.0
    %2172 = vmatpush.msra.mxu0 0.0
    %2173 = vmatpush.msra.mxu0 0.0
    %2174 = vmatpush.msra.mxu0 0.0
    %2175 = vmatpush.msra.mxu0 0.0
    %2176 = vmatpush.msra.mxu0 0.0
    %2177 = vmatpush.msra.mxu0 0.0
    %2178 = vmatpush.msra.mxu0 0.0
    %2179 = vmatpush.msra.mxu0 0.0
    %2180 = vmatpush.msra.mxu0 0.0
    %2181 = vmatpush.msra.mxu0 0.0
    %2182 = vmatpush.msra.mxu0 0.0
    %2183 = vmatpush.msra.mxu0 %v81
    %2184 = vmatpush.msra.mxu0 %v80
    %2185 = vmatpush.msra.mxu0 %v79
    %2186 = vmatpush.msra.mxu0 %v78
    %2187 = vmatmul.f32.gmra.mxu0 %v2169
    %v2188 = vpop.f32.mrf.mxu0
    %v2189 = vadd.f32 %v146, %v2188
    %2190 = vdwg.mxu0
    %v2191 = vsel %vm389, %v2189, -inf
    %2192 = vmax.xlane.f32.xlu0 %v2191
    %v2193 = vpop.xlane.xlu0 %2192
    %v2194 = vsub.f32 %v2189, %v2193
    %v2195 = vmul.f32 %v2194, 1.442695
    %v2196 = vpow.pop %v2195
    %v2197 = vsel %vm389, %v2196, 0.0
    %2198 = vadd.xlane.f32.xlu0 %v2197
    %v2199 = vpop.xlane.xlu0 %2198
    %v2200 = vlog2.pop %v2199
    %v2201 = vmul.f32 %v2200, 0.6931472
    %v2202 = vsub.f32 %v2194, %v2201
    %2204 = vrot.lane.b32.xlu0 %v2202, 112
    %v2205 = vpop.permute.xlu0 %2204
    %vm2207 = vcmask 1042304
    %2208 = vst.msk [vmem:[#allocation7] sm:$0x3] %vm2207, %v2205
    // Predicated region
    $region18: #{tpu_custom_call.1} parent=1 // pred_check
      _
    $region19: #{tpu_custom_call.1} parent=1 // pred_check_branch
      %2210 = sbr.rel (0) target = $region21
    $region20: #{tpu_custom_call.1} parent=1 // pred_region
      %2212 = vsyncadd [#allocation4], 0
      %s2214 = sshll.u32 [#allocation7], 4
      %s2215 = int_to_ptr.vmem [resolvable:$true] %s2214
      %s2216 = sshll.u32 %s2, 4
      %s2217 = int_to_ptr.hbm [resolvable:$true] %s2216
      %2219 = dma.vmem_to_hbm [thread:$0]  %s2215, 32, %s2217, [#allocation4]
    $region21: #{tpu_custom_call.1} parent=1 // pred_fallthru
      _
    // Predicated region
    $region22: #{tpu_custom_call.1} parent=1 // pred_check
      _
    $region23: #{tpu_custom_call.1} parent=1 // pred_check_branch
      %2221 = sbr.rel (0) target = $region25
    $region24: #{tpu_custom_call.1} parent=1 // pred_region
      %2223 = dma.done [#allocation4], 32
    $region25: #{tpu_custom_call.1} parent=1 // pred_fallthru
      _
    %2224 = vsyncpa [#allocation3], 1
    %2225 = vsyncpa [#allocation6], 1
    %2226 = vsyncpa [#allocation4], 1

</llo_original>
